<compile_context>
chip_gen: v6e
topology: v6e:2x2x1
jax: 0.10.0
libtpu: 0.0.40
codegen_flags: <defaults>
</compile_context>

<pallas_src>
import jax
import jax.numpy as jnp
from jax.experimental import pallas as pl
from jax.experimental.pallas import tpu as pltpu


def _fill_cols(cols_ref, src, H, W, C, zero_borders):
    """Write the 3 dx-shifted taps of `src` (H, W, C) into cols_ref.

    cols_ref has shape (H + 2, W, 3*C) with one zero pad row at the top and
    bottom:  cols_ref[y + 1, x, dx*C:(dx+1)*C] = src[y, x + dx - 1, :]
    (zero where x + dx - 1 is out of the image).

    When zero_borders is False the x-border strips and the pad rows are NOT
    re-written; they must already be zero from an earlier fill in the same
    grid step (they are never overwritten with data).
    """
    cols_ref[1:H + 1, :, C:2 * C] = src                        # dx =  0
    cols_ref[1:H + 1, 1:W, 0:C] = src[:, 0:W - 1, :]           # dx = -1
    cols_ref[1:H + 1, 0:W - 1, 2 * C:3 * C] = src[:, 1:W, :]   # dx = +1
    if zero_borders:
        z_row = jnp.zeros((1, W, 3 * C), cols_ref.dtype)
        cols_ref[0:1] = z_row                                  # pad row (y=-1)
        cols_ref[H + 1:H + 2] = z_row                          # pad row (y=H)
        z_col = jnp.zeros((H, 1, C), cols_ref.dtype)
        cols_ref[1:H + 1, 0:1, 0:C] = z_col                    # x=-1 strip
        cols_ref[1:H + 1, W - 1:W, 2 * C:3 * C] = z_col        # x=W strip


def _conv3x3(cols_ref, w_ref, H, W, C):
    """3x3 conv as 3 accumulating MXU matmuls over row-shifted scratch views.

    w_ref is (9*C, Cout) with rows ordered (ky, kx, cin); block dy uses rows
    [dy*3C : (dy+1)*3C].  Returns an (H*W, Cout) f32 accumulator.
    """
    K = 3 * C
    acc = jnp.dot(cols_ref[0:H].reshape(H * W, K), w_ref[0:K, :],
                  preferred_element_type=jnp.float32)              # ky = 0
    acc += jnp.dot(cols_ref[1:H + 1].reshape(H * W, K), w_ref[K:2 * K, :],
                   preferred_element_type=jnp.float32)             # ky = 1
    acc += jnp.dot(cols_ref[2:H + 2].reshape(H * W, K), w_ref[2 * K:3 * K, :],
                   preferred_element_type=jnp.float32)             # ky = 2
    return acc


def _resblock_kernel(x_ref, w1_ref, w2_ref, b1_ref, b2_ref, o_ref, cols_ref):
    # x_ref : (1, H, W, C)     activations (compute dtype, e.g. bf16)
    # w*_ref: (9*C, C)         conv weights, BN scale folded in (compute dtype)
    # b*_ref: (1, C)           folded BN bias (f32)
    # o_ref : (1, H, W, C)     output (compute dtype)
    # cols_ref: (H+2, W, 3*C)  compute-dtype dx-shift im2col scratch (reused)
    _, H, W, C = x_ref.shape

    # ---- conv1 (+ folded bn1) + relu ----
    _fill_cols(cols_ref, x_ref[0], H, W, C, zero_borders=True)
    out1 = _conv3x3(cols_ref, w1_ref, H, W, C) + b1_ref[...]       # (H*W, C) f32
    out1 = jnp.maximum(out1, 0.0)

    # ---- conv2 (+ folded bn2) + residual add + relu ----
    # borders / pad rows already zeroed by the first fill in this grid step
    _fill_cols(cols_ref, out1.astype(cols_ref.dtype).reshape(H, W, C),
               H, W, C, zero_borders=False)
    out2 = _conv3x3(cols_ref, w2_ref, H, W, C) + b2_ref[...]
    # identity: re-read the input block (bf16), upcast on the fly
    out2 = out2 + x_ref[0].reshape(H * W, C).astype(jnp.float32)
    o_ref[0] = jnp.maximum(out2, 0.0).reshape(H, W, C).astype(o_ref.dtype)


def residual_block(x_nchw, w1_oihw, w2_oihw,
                   gamma1, beta1, mean1, var1,
                   gamma2, beta2, mean2, var2,
                   eps=1e-5, compute_dtype=jnp.bfloat16, out_dtype=None):
    """ResidualBlock forward (stride=1, downsample=None). NCHW in / NCHW out.

    BatchNorm is evaluated in inference mode; its scale is folded into the
    conv weights.  Activations/weights are cast to `compute_dtype` (bf16 by
    default) for HBM traffic and the MXU; accumulation is f32.  The output is
    emitted in `out_dtype` (defaults to `compute_dtype`).
    """
    N, Cin, H, W = x_nchw.shape
    Cout = w1_oihw.shape[0]
    assert Cin == Cout, "skip connection requires in_channels == out_channels"
    out_dtype = compute_dtype if out_dtype is None else out_dtype

    # fold eval-mode BN into per-channel scale/shift, scale into the weights
    s1 = gamma1 / jnp.sqrt(var1 + eps)
    b1 = beta1 - mean1 * s1
    s2 = gamma2 / jnp.sqrt(var2 + eps)
    b2 = beta2 - mean2 * s2

    # OIHW -> (ky*kx*Cin, Cout) matmul weights, BN scale folded on Cout axis
    w1m = (jnp.transpose(w1_oihw, (2, 3, 1, 0)).reshape(9 * Cin, Cout)
           * s1[None, :]).astype(compute_dtype)
    w2m = (jnp.transpose(w2_oihw, (2, 3, 1, 0)).reshape(9 * Cout, Cout)
           * s2[None, :]).astype(compute_dtype)

    x_nhwc = jnp.transpose(x_nchw, (0, 2, 3, 1)).astype(compute_dtype)

    # size the scoped VMEM to the actual working set (with headroom)
    bpe = jnp.dtype(compute_dtype).itemsize
    obe = jnp.dtype(out_dtype).itemsize
    vmem_est = (
        2 * H * W * Cin * bpe                  # x, double-buffered
        + 2 * H * W * Cout * obe               # out, double-buffered
        + 2 * (9 * Cin * Cout + 9 * Cout * Cout) * bpe   # weights (2 bufs)
        + (H + 2) * W * 3 * Cin * bpe          # im2col scratch
        + 4 * H * W * Cout * 4                 # f32 value temporaries
    )
    vmem_limit = max(16 * 1024 * 1024,
                     min(100 * 1024 * 1024, int(vmem_est * 1.5)))

    out_nhwc = pl.pallas_call(
        _resblock_kernel,
        out_shape=jax.ShapeDtypeStruct((N, H, W, Cout), out_dtype),
        grid_spec=pltpu.PrefetchScalarGridSpec(
            num_scalar_prefetch=0,
            grid=(N,),
            in_specs=[
                pl.BlockSpec((1, H, W, Cin), lambda n: (n, 0, 0, 0)),
                pl.BlockSpec((9 * Cin, Cout), lambda n: (0, 0)),
                pl.BlockSpec((9 * Cout, Cout), lambda n: (0, 0)),
                pl.BlockSpec((1, Cout), lambda n: (0, 0)),
                pl.BlockSpec((1, Cout), lambda n: (0, 0)),
            ],
            out_specs=pl.BlockSpec((1, H, W, Cout), lambda n: (n, 0, 0, 0)),
            scratch_shapes=[pltpu.VMEM((H + 2, W, 3 * Cin), compute_dtype)],
        ),
        compiler_params=pltpu.CompilerParams(
            dimension_semantics=("parallel",),
            vmem_limit_bytes=vmem_limit),
    )(x_nhwc, w1m, w2m,
      b1.reshape(1, Cout).astype(jnp.float32),
      b2.reshape(1, Cout).astype(jnp.float32))

    # TODO(synk): drop this transpose when downstream consumers take NHWC.
    return jnp.transpose(out_nhwc, (0, 3, 1, 2))  # back to NCHW


def _reference(x_nchw, w1, w2, s1, b1, s2, b2, compute_dtype):
    """Pure-JAX reference mirroring the kernel's precision path (NCHW)."""
    dn = ('NCHW', 'OIHW', 'NCHW')
    w1f = (w1 * s1[:, None, None, None]).astype(compute_dtype)
    w2f = (w2 * s2[:, None, None, None]).astype(compute_dtype)
    xc = x_nchw.astype(compute_dtype)
    out = jax.lax.conv_general_dilated(xc, w1f, (1, 1), 'SAME',
                                       dimension_numbers=dn,
                                       preferred_element_type=jnp.float32)
    out = jnp.maximum(out + b1[None, :, None, None], 0.0)
    out = jax.lax.conv_general_dilated(out.astype(compute_dtype), w2f, (1, 1),
                                       'SAME', dimension_numbers=dn,
                                       preferred_element_type=jnp.float32)
    out = out + b2[None, :, None, None] + xc.astype(jnp.float32)
    return jnp.maximum(out, 0.0)


if __name__ == "__main__":
    N, C, H, W = 2, 4, 16, 16
    eps = 1e-5

    key = jax.random.PRNGKey(0)
    keys = jax.random.split(key, 8)
    x = jax.random.normal(keys[0], (N, C, H, W), jnp.float32)

    # deterministic synthetic parameters (nn.Conv2d / nn.BatchNorm2d shapes)
    w1 = jax.random.normal(keys[1], (C, C, 3, 3), jnp.float32) * 0.1
    w2 = jax.random.normal(keys[2], (C, C, 3, 3), jnp.float32) * 0.1
    gamma1 = 1.0 + 0.1 * jax.random.normal(keys[3], (C,), jnp.float32)
    beta1 = 0.1 * jax.random.normal(keys[4], (C,), jnp.float32)
    mean1 = 0.05 * jax.random.normal(keys[5], (C,), jnp.float32)
    var1 = jnp.abs(1.0 + 0.1 * jax.random.normal(keys[6], (C,), jnp.float32))
    gamma2 = jnp.ones((C,), jnp.float32) * 0.9
    beta2 = jnp.full((C,), 0.05, jnp.float32)
    mean2 = jnp.full((C,), -0.02, jnp.float32)
    var2 = jnp.full((C,), 1.1, jnp.float32)

    out = residual_block(x, w1, w2,
                         gamma1, beta1, mean1, var1,
                         gamma2, beta2, mean2, var2, eps=eps)
    out = jax.block_until_ready(out)

    # correctness check against a pure-JAX reference with the same bf16/f32
    # precision path (only accumulation order differs; output is bf16)
    s1 = gamma1 / jnp.sqrt(var1 + eps)
    b1 = beta1 - mean1 * s1
    s2 = gamma2 / jnp.sqrt(var2 + eps)
    b2 = beta2 - mean2 * s2
    ref = _reference(x, w1, w2, s1, b1, s2, b2, jnp.bfloat16)
    ref_bf16 = ref.astype(jnp.bfloat16).astype(jnp.float32)

    assert out.shape == (N, C, H, W)
    out_f32 = out.astype(jnp.float32)
    assert jnp.allclose(out_f32, ref_bf16, atol=2e-2, rtol=2e-2), (
        float(jnp.max(jnp.abs(out_f32 - ref_bf16))))

    print("KERNEL_OK")
</pallas_src>

<mosaic_0001>
module attributes {stable_mosaic.version = 11 : i64} {
  func.func @_resblock_kernel(%arg0: i32, %arg1: memref<1x16x16x4xbf16, #tpu.memory_space<vmem>>, %arg2: memref<36x4xbf16, #tpu.memory_space<vmem>>, %arg3: memref<36x4xbf16, #tpu.memory_space<vmem>>, %arg4: memref<1x4xf32, #tpu.memory_space<vmem>>, %arg5: memref<1x4xf32, #tpu.memory_space<vmem>>, %arg6: memref<1x16x16x4xbf16, #tpu.memory_space<vmem>>, %arg7: memref<18x16x12xbf16, #tpu.memory_space<vmem>>) attributes {dimension_semantics = [#tpu.dimension_semantics<parallel>], iteration_bounds = array<i64: 2>, scalar_prefetch = 0 : i64, scratch_operands = 1 : i64, tpu.core_type = #tpu.core_type<tc>, window_params = [{transform_indices = @transform_0, window_bounds = array<i64: 1, 16, 16, 4>}, {pipeline_mode = #tpu.pipeline_mode<synchronous>, transform_indices = @transform_1, window_bounds = array<i64: 36, 4>}, {pipeline_mode = #tpu.pipeline_mode<synchronous>, transform_indices = @transform_2, window_bounds = array<i64: 36, 4>}, {pipeline_mode = #tpu.pipeline_mode<synchronous>, transform_indices = @transform_3, window_bounds = array<i64: 1, 4>}, {pipeline_mode = #tpu.pipeline_mode<synchronous>, transform_indices = @transform_4, window_bounds = array<i64: 1, 4>}, {transform_indices = @transform_5, window_bounds = array<i64: 1, 16, 16, 4>}]} {
    %c0 = arith.constant 0 : index
    %c0_0 = arith.constant 0 : index
    %c0_1 = arith.constant 0 : index
    %c0_2 = arith.constant 0 : index
    %0 = vector.load %arg1[%c0, %c0_0, %c0_1, %c0_2] : memref<1x16x16x4xbf16, #tpu.memory_space<vmem>>, vector<1x16x16x4xbf16>
    %1 = vector.shape_cast %0 : vector<1x16x16x4xbf16> to vector<16x16x4xbf16>
    %c1 = arith.constant 1 : index
    %c0_3 = arith.constant 0 : index
    %c4 = arith.constant 4 : index
    %2 = vector.load %arg7[%c1, %c0_3, %c4] : memref<18x16x12xbf16, #tpu.memory_space<vmem>>, vector<16x16x4xbf16>
    tpu.vector_store %arg7[%c1, %c0_3, %c4], %1 {strides = array<i32>} : memref<18x16x12xbf16, #tpu.memory_space<vmem>>, vector<16x16x4xbf16>,
    %3 = vector.extract_strided_slice %1 {offsets = [0, 0, 0], sizes = [16, 15, 4], strides = [1, 1, 1]} : vector<16x16x4xbf16> to vector<16x15x4xbf16>
    %c1_4 = arith.constant 1 : index
    %c1_5 = arith.constant 1 : index
    %c0_6 = arith.constant 0 : index
    %4 = vector.load %arg7[%c1_4, %c1_5, %c0_6] : memref<18x16x12xbf16, #tpu.memory_space<vmem>>, vector<16x15x4xbf16>
    tpu.vector_store %arg7[%c1_4, %c1_5, %c0_6], %3 {strides = array<i32>} : memref<18x16x12xbf16, #tpu.memory_space<vmem>>, vector<16x15x4xbf16>,
    %5 = vector.extract_strided_slice %1 {offsets = [0, 1, 0], sizes = [16, 15, 4], strides = [1, 1, 1]} : vector<16x16x4xbf16> to vector<16x15x4xbf16>
    %c1_7 = arith.constant 1 : index
    %c0_8 = arith.constant 0 : index
    %c8 = arith.constant 8 : index
    %6 = vector.load %arg7[%c1_7, %c0_8, %c8] : memref<18x16x12xbf16, #tpu.memory_space<vmem>>, vector<16x15x4xbf16>
    tpu.vector_store %arg7[%c1_7, %c0_8, %c8], %5 {strides = array<i32>} : memref<18x16x12xbf16, #tpu.memory_space<vmem>>, vector<16x15x4xbf16>,
    %cst = arith.constant 0.000000e+00 : bf16
    %7 = vector.broadcast %cst : bf16 to vector<1x16x12xbf16>
    %c0_9 = arith.constant 0 : index
    %c0_10 = arith.constant 0 : index
    %c0_11 = arith.constant 0 : index
    %8 = vector.load %arg7[%c0_9, %c0_10, %c0_11] : memref<18x16x12xbf16, #tpu.memory_space<vmem>>, vector<1x16x12xbf16>
    tpu.vector_store %arg7[%c0_9, %c0_10, %c0_11], %7 {strides = array<i32>} : memref<18x16x12xbf16, #tpu.memory_space<vmem>>, vector<1x16x12xbf16>,
    %c17 = arith.constant 17 : index
    %c0_12 = arith.constant 0 : index
    %c0_13 = arith.constant 0 : index
    %9 = vector.load %arg7[%c17, %c0_12, %c0_13] : memref<18x16x12xbf16, #tpu.memory_space<vmem>>, vector<1x16x12xbf16>
    tpu.vector_store %arg7[%c17, %c0_12, %c0_13], %7 {strides = array<i32>} : memref<18x16x12xbf16, #tpu.memory_space<vmem>>, vector<1x16x12xbf16>,
    %cst_14 = arith.constant 0.000000e+00 : bf16
    %10 = vector.broadcast %cst_14 : bf16 to vector<16x1x4xbf16>
    %c1_15 = arith.constant 1 : index
    %c0_16 = arith.constant 0 : index
    %c0_17 = arith.constant 0 : index
    %11 = vector.load %arg7[%c1_15, %c0_16, %c0_17] : memref<18x16x12xbf16, #tpu.memory_space<vmem>>, vector<16x1x4xbf16>
    tpu.vector_store %arg7[%c1_15, %c0_16, %c0_17], %10 {strides = array<i32>} : memref<18x16x12xbf16, #tpu.memory_space<vmem>>, vector<16x1x4xbf16>,
    %c1_18 = arith.constant 1 : index
    %c15 = arith.constant 15 : index
    %c8_19 = arith.constant 8 : index
    %12 = vector.load %arg7[%c1_18, %c15, %c8_19] : memref<18x16x12xbf16, #tpu.memory_space<vmem>>, vector<16x1x4xbf16>
    tpu.vector_store %arg7[%c1_18, %c15, %c8_19], %10 {strides = array<i32>} : memref<18x16x12xbf16, #tpu.memory_space<vmem>>, vector<16x1x4xbf16>,
    %c0_20 = arith.constant 0 : index
    %c0_21 = arith.constant 0 : index
    %c0_22 = arith.constant 0 : index
    %13 = vector.load %arg7[%c0_20, %c0_21, %c0_22] : memref<18x16x12xbf16, #tpu.memory_space<vmem>>, vector<16x16x12xbf16>
    %14 = vector.shape_cast %13 : vector<16x16x12xbf16> to vector<256x12xbf16>
    %c0_23 = arith.constant 0 : index
    %c0_24 = arith.constant 0 : index
    %15 = vector.load %arg2[%c0_23, %c0_24] : memref<36x4xbf16, #tpu.memory_space<vmem>>, vector<12x4xbf16>
    %cst_25 = arith.constant dense<0.000000e+00> : vector<256x4xf32>
    %16 = tpu.matmul %14, %15, %cst_25 {dimension_numbers = #tpu.dot_dimension_numbers<[1], [0], [0], [1], [0, 0, 1, 1], [], []>} : vector<256x12xbf16>, vector<12x4xbf16>, vector<256x4xf32> -> vector<256x4xf32>
    %c1_26 = arith.constant 1 : index
    %c0_27 = arith.constant 0 : index
    %c0_28 = arith.constant 0 : index
    %17 = vector.load %arg7[%c1_26, %c0_27, %c0_28] : memref<18x16x12xbf16, #tpu.memory_space<vmem>>, vector<16x16x12xbf16>
    %18 = vector.shape_cast %17 : vector<16x16x12xbf16> to vector<256x12xbf16>
    %c12 = arith.constant 12 : index
    %c0_29 = arith.constant 0 : index
    %19 = vector.load %arg2[%c12, %c0_29] : memref<36x4xbf16, #tpu.memory_space<vmem>>, vector<12x4xbf16>
    %cst_30 = arith.constant dense<0.000000e+00> : vector<256x4xf32>
    %20 = tpu.matmul %18, %19, %cst_30 {dimension_numbers = #tpu.dot_dimension_numbers<[1], [0], [0], [1], [0, 0, 1, 1], [], []>} : vector<256x12xbf16>, vector<12x4xbf16>, vector<256x4xf32> -> vector<256x4xf32>
    %21 = arith.addf %16, %20 : vector<256x4xf32>
    %c2 = arith.constant 2 : index
    %c0_31 = arith.constant 0 : index
    %c0_32 = arith.constant 0 : index
    %22 = vector.load %arg7[%c2, %c0_31, %c0_32] : memref<18x16x12xbf16, #tpu.memory_space<vmem>>, vector<16x16x12xbf16>
    %23 = vector.shape_cast %22 : vector<16x16x12xbf16> to vector<256x12xbf16>
    %c24 = arith.constant 24 : index
    %c0_33 = arith.constant 0 : index
    %24 = vector.load %arg2[%c24, %c0_33] : memref<36x4xbf16, #tpu.memory_space<vmem>>, vector<12x4xbf16>
    %cst_34 = arith.constant dense<0.000000e+00> : vector<256x4xf32>
    %25 = tpu.matmul %23, %24, %cst_34 {dimension_numbers = #tpu.dot_dimension_numbers<[1], [0], [0], [1], [0, 0, 1, 1], [], []>} : vector<256x12xbf16>, vector<12x4xbf16>, vector<256x4xf32> -> vector<256x4xf32>
    %26 = arith.addf %21, %25 : vector<256x4xf32>
    %c0_35 = arith.constant 0 : index
    %c0_36 = arith.constant 0 : index
    %27 = vector.load %arg4[%c0_35, %c0_36] : memref<1x4xf32, #tpu.memory_space<vmem>>, vector<1x4xf32>
    %28 = vector.broadcast %27 : vector<1x4xf32> to vector<256x4xf32>
    %29 = arith.addf %26, %28 : vector<256x4xf32>
    %cst_37 = arith.constant 0.000000e+00 : f32
    %30 = vector.broadcast %cst_37 : f32 to vector<256x4xf32>
    %31 = arith.maximumf %29, %30 : vector<256x4xf32>
    %32 = arith.truncf %31 : vector<256x4xf32> to vector<256x4xbf16>
    %33 = vector.shape_cast %32 : vector<256x4xbf16> to vector<16x16x4xbf16>
    %c1_38 = arith.constant 1 : index
    %c0_39 = arith.constant 0 : index
    %c4_40 = arith.constant 4 : index
    %34 = vector.load %arg7[%c1_38, %c0_39, %c4_40] : memref<18x16x12xbf16, #tpu.memory_space<vmem>>, vector<16x16x4xbf16>
    tpu.vector_store %arg7[%c1_38, %c0_39, %c4_40], %33 {strides = array<i32>} : memref<18x16x12xbf16, #tpu.memory_space<vmem>>, vector<16x16x4xbf16>,
    %35 = vector.extract_strided_slice %33 {offsets = [0, 0, 0], sizes = [16, 15, 4], strides = [1, 1, 1]} : vector<16x16x4xbf16> to vector<16x15x4xbf16>
    %c1_41 = arith.constant 1 : index
    %c1_42 = arith.constant 1 : index
    %c0_43 = arith.constant 0 : index
    %36 = vector.load %arg7[%c1_41, %c1_42, %c0_43] : memref<18x16x12xbf16, #tpu.memory_space<vmem>>, vector<16x15x4xbf16>
    tpu.vector_store %arg7[%c1_41, %c1_42, %c0_43], %35 {strides = array<i32>} : memref<18x16x12xbf16, #tpu.memory_space<vmem>>, vector<16x15x4xbf16>,
    %37 = vector.extract_strided_slice %33 {offsets = [0, 1, 0], sizes = [16, 15, 4], strides = [1, 1, 1]} : vector<16x16x4xbf16> to vector<16x15x4xbf16>
    %c1_44 = arith.constant 1 : index
    %c0_45 = arith.constant 0 : index
    %c8_46 = arith.constant 8 : index
    %38 = vector.load %arg7[%c1_44, %c0_45, %c8_46] : memref<18x16x12xbf16, #tpu.memory_space<vmem>>, vector<16x15x4xbf16>
    tpu.vector_store %arg7[%c1_44, %c0_45, %c8_46], %37 {strides = array<i32>} : memref<18x16x12xbf16, #tpu.memory_space<vmem>>, vector<16x15x4xbf16>,
    %c0_47 = arith.constant 0 : index
    %c0_48 = arith.constant 0 : index
    %c0_49 = arith.constant 0 : index
    %39 = vector.load %arg7[%c0_47, %c0_48, %c0_49] : memref<18x16x12xbf16, #tpu.memory_space<vmem>>, vector<16x16x12xbf16>
    %40 = vector.shape_cast %39 : vector<16x16x12xbf16> to vector<256x12xbf16>
    %c0_50 = arith.constant 0 : index
    %c0_51 = arith.constant 0 : index
    %41 = vector.load %arg3[%c0_50, %c0_51] : memref<36x4xbf16, #tpu.memory_space<vmem>>, vector<12x4xbf16>
    %cst_52 = arith.constant dense<0.000000e+00> : vector<256x4xf32>
    %42 = tpu.matmul %40, %41, %cst_52 {dimension_numbers = #tpu.dot_dimension_numbers<[1], [0], [0], [1], [0, 0, 1, 1], [], []>} : vector<256x12xbf16>, vector<12x4xbf16>, vector<256x4xf32> -> vector<256x4xf32>
    %c1_53 = arith.constant 1 : index
    %c0_54 = arith.constant 0 : index
    %c0_55 = arith.constant 0 : index
    %43 = vector.load %arg7[%c1_53, %c0_54, %c0_55] : memref<18x16x12xbf16, #tpu.memory_space<vmem>>, vector<16x16x12xbf16>
    %44 = vector.shape_cast %43 : vector<16x16x12xbf16> to vector<256x12xbf16>
    %c12_56 = arith.constant 12 : index
    %c0_57 = arith.constant 0 : index
    %45 = vector.load %arg3[%c12_56, %c0_57] : memref<36x4xbf16, #tpu.memory_space<vmem>>, vector<12x4xbf16>
    %cst_58 = arith.constant dense<0.000000e+00> : vector<256x4xf32>
    %46 = tpu.matmul %44, %45, %cst_58 {dimension_numbers = #tpu.dot_dimension_numbers<[1], [0], [0], [1], [0, 0, 1, 1], [], []>} : vector<256x12xbf16>, vector<12x4xbf16>, vector<256x4xf32> -> vector<256x4xf32>
    %47 = arith.addf %42, %46 : vector<256x4xf32>
    %c2_59 = arith.constant 2 : index
    %c0_60 = arith.constant 0 : index
    %c0_61 = arith.constant 0 : index
    %48 = vector.load %arg7[%c2_59, %c0_60, %c0_61] : memref<18x16x12xbf16, #tpu.memory_space<vmem>>, vector<16x16x12xbf16>
    %49 = vector.shape_cast %48 : vector<16x16x12xbf16> to vector<256x12xbf16>
    %c24_62 = arith.constant 24 : index
    %c0_63 = arith.constant 0 : index
    %50 = vector.load %arg3[%c24_62, %c0_63] : memref<36x4xbf16, #tpu.memory_space<vmem>>, vector<12x4xbf16>
    %cst_64 = arith.constant dense<0.000000e+00> : vector<256x4xf32>
    %51 = tpu.matmul %49, %50, %cst_64 {dimension_numbers = #tpu.dot_dimension_numbers<[1], [0], [0], [1], [0, 0, 1, 1], [], []>} : vector<256x12xbf16>, vector<12x4xbf16>, vector<256x4xf32> -> vector<256x4xf32>
    %52 = arith.addf %47, %51 : vector<256x4xf32>
    %c0_65 = arith.constant 0 : index
    %c0_66 = arith.constant 0 : index
    %53 = vector.load %arg5[%c0_65, %c0_66] : memref<1x4xf32, #tpu.memory_space<vmem>>, vector<1x4xf32>
    %54 = vector.broadcast %53 : vector<1x4xf32> to vector<256x4xf32>
    %55 = arith.addf %52, %54 : vector<256x4xf32>
    %c0_67 = arith.constant 0 : index
    %c0_68 = arith.constant 0 : index
    %c0_69 = arith.constant 0 : index
    %c0_70 = arith.constant 0 : index
    %56 = vector.load %arg1[%c0_67, %c0_68, %c0_69, %c0_70] : memref<1x16x16x4xbf16, #tpu.memory_space<vmem>>, vector<1x16x16x4xbf16>
    %57 = vector.shape_cast %56 : vector<1x16x16x4xbf16> to vector<16x16x4xbf16>
    %58 = vector.shape_cast %57 : vector<16x16x4xbf16> to vector<256x4xbf16>
    %59 = arith.extf %58 : vector<256x4xbf16> to vector<256x4xf32>
    %60 = arith.addf %55, %59 : vector<256x4xf32>
    %cst_71 = arith.constant 0.000000e+00 : f32
    %61 = vector.broadcast %cst_71 : f32 to vector<256x4xf32>
    %62 = arith.maximumf %60, %61 : vector<256x4xf32>
    %63 = vector.shape_cast %62 : vector<256x4xf32> to vector<16x16x4xf32>
    %64 = arith.truncf %63 : vector<16x16x4xf32> to vector<16x16x4xbf16>
    %c0_72 = arith.constant 0 : index
    %c0_73 = arith.constant 0 : index
    %c0_74 = arith.constant 0 : index
    %c0_75 = arith.constant 0 : index
    %65 = vector.load %arg6[%c0_72, %c0_73, %c0_74, %c0_75] : memref<1x16x16x4xbf16, #tpu.memory_space<vmem>>, vector<1x16x16x4xbf16>
    %66 = vector.shape_cast %65 : vector<1x16x16x4xbf16> to vector<16x16x4xbf16>
    %67 = vector.shape_cast %64 : vector<16x16x4xbf16> to vector<1x16x16x4xbf16>
    tpu.vector_store %arg6[%c0_72, %c0_73, %c0_74, %c0_75], %67 {strides = array<i32>} : memref<1x16x16x4xbf16, #tpu.memory_space<vmem>>, vector<1x16x16x4xbf16>,
    return
  }
  func.func @transform_0(%arg0: i32) -> (i32, i32, i32, i32) {
    %c0_i32 = arith.constant 0 : i32
    %c0_i32_0 = arith.constant 0 : i32
    %c0_i32_1 = arith.constant 0 : i32
    %c0_i32_2 = arith.constant 0 : i32
    return %arg0, %c0_i32, %c0_i32_0, %c0_i32_1 : i32, i32, i32, i32
  }
  func.func @transform_1(%arg0: i32) -> (i32, i32) {
    %c0_i32 = arith.constant 0 : i32
    %c0_i32_0 = arith.constant 0 : i32
    %c0_i32_1 = arith.constant 0 : i32
    return %c0_i32, %c0_i32_0 : i32, i32
  }
  func.func @transform_2(%arg0: i32) -> (i32, i32) {
    %c0_i32 = arith.constant 0 : i32
    %c0_i32_0 = arith.constant 0 : i32
    %c0_i32_1 = arith.constant 0 : i32
    return %c0_i32, %c0_i32_0 : i32, i32
  }
  func.func @transform_3(%arg0: i32) -> (i32, i32) {
    %c0_i32 = arith.constant 0 : i32
    %c0_i32_0 = arith.constant 0 : i32
    %c0_i32_1 = arith.constant 0 : i32
    return %c0_i32, %c0_i32_0 : i32, i32
  }
  func.func @transform_4(%arg0: i32) -> (i32, i32) {
    %c0_i32 = arith.constant 0 : i32
    %c0_i32_0 = arith.constant 0 : i32
    %c0_i32_1 = arith.constant 0 : i32
    return %c0_i32, %c0_i32_0 : i32, i32
  }
  func.func @transform_5(%arg0: i32) -> (i32, i32, i32, i32) {
    %c0_i32 = arith.constant 0 : i32
    %c0_i32_0 = arith.constant 0 : i32
    %c0_i32_1 = arith.constant 0 : i32
    %c0_i32_2 = arith.constant 0 : i32
    return %arg0, %c0_i32, %c0_i32_0, %c0_i32_1 : i32, i32, i32, i32
  }
}

</mosaic_0001>

<llo_original>
// kernel: tpu_custom_call.1
$region0: #{tpu_custom_call.1}
  #allocation0 [shape = 'u32[]', space=smem, size = 0x4, offset = 0x4, fixed_abs, tag = 'smem constant byte address 0x4 - core index']
  #allocation1 [shape = 'u32[144,128]{1,0:T(1,128)}', space=vmem, size = 0x12000, scoped, tag = 'internal scratch']
  #allocation2 [shape = 'bf16[18,16,12]{2,1,0:T(8,128)(2,1)}', space=vmem, size = 0x12000, scoped, tag = 'scratch operand']
  %s0 = inlined_call_operand.vmem [shape: bf16[2,16,16,4], index: 0, kind: input, shape index: {}]
  %s1 = inlined_call_operand.vmem [shape: bf16[36,4], index: 1, kind: input, shape index: {}]
  %s2 = inlined_call_operand.vmem [shape: bf16[36,4], index: 2, kind: input, shape index: {}]
  %s3 = inlined_call_operand.vmem [shape: f32[1,4], index: 3, kind: input, shape index: {}]
  %s4 = inlined_call_operand.vmem [shape: f32[1,4], index: 4, kind: input, shape index: {}]
  %s5 = inlined_call_operand.vmem [shape: bf16[2,16,16,4], index: 5, kind: output, shape index: {}]
  %s6 = sld [smem:[#allocation0]]
  $region53: #{tpu_custom_call.1} parent=0
    _
  %s8 = ssub.s32 1, %s6
  %s9 = scalar_select 0, %s8, %s6
  loop: start=0, step=1, limit=4
  $region2: #{tpu_custom_call.1} parent=0 // loop_pre_header
    _
  $region3: #{tpu_custom_call.1} parent=0 // loop_header
    %s11 = sphi 0, %s15
    %p12 = scmp.ge.s32.totalorder %s11, 4
    %s21 = sphi 0, %s23
    %s24 = sphi 0, %s21
    %s25 = sphi 0, %s24
    %s41 = sphi 0, %s25
    %s45 = sphi 0, %s45
    %s47 = sphi 0, %s45
    %s48 = sphi 0, %s47
    %s62 = sphi 0, %s48
    %s66 = sphi 0, %s66
    %s68 = sphi 0, %s66
    %s69 = sphi 0, %s68
    %s83 = sphi 0, %s69
    %s87 = sphi 0, %s87
    %s89 = sphi 0, %s87
    %s90 = sphi 0, %s89
    %s104 = sphi 0, %s90
    %s108 = sphi 0, %s108
    %s110 = sphi 0, %s108
    %s111 = sphi 0, %s110
    %s125 = sphi 0, %s111
    %s131 = sphi 0, %s133
    %s134 = sphi 0, %s131
    %s135 = sphi 0, %s134
    %s151 = sphi 0, %s135
  $region4: #{tpu_custom_call.1} parent=0 // loop_header_branch
    %14 = sbr.rel (%p12) target = $region8
  $region5: #{tpu_custom_call.1} parent=0 // loop_body
    %s16 = ssub.s32 %s11, 1
    %s17 = ssub.s32 %s11, 2
    %s18 = sadd.s32 %s11, 1
    %s19 = ssub.s32 %s11, %s18
    %p20 = scmp.eq.s32.totalorder %s19, 0
    %s22 = sadd.s32 %s21, 1
    %s23 = scalar_select %p20, %s21, %s22
    %p26 = pneg %p20
    %p27 = scmp.eq.s32.totalorder %s11, 1
    %p28 = por %p26, %p27
    %p29 = scmp.ne.s32.totalorder %s21, %s24
    %p30 = scmp.eq.s32.totalorder %s11, 0
    %p31 = por %p29, %p30
    %p32 = scmp.ne.s32.totalorder %s21, %s24
    %p33 = scmp.eq.s32.totalorder %s16, 1
    %p34 = por %p32, %p33
    %p35 = scmp.ne.s32.totalorder %s24, %s25
    %p36 = scmp.eq.s32.totalorder %s16, 0
    %p37 = por %p35, %p36
    %p38 = scmp.ne.s32.totalorder %s24, %s25
    %p39 = scmp.eq.s32.totalorder %s17, 1
    %p40 = por %p38, %p39
    %p42 = scmp.ne.s32.totalorder %s25, %s41
    %p43 = scmp.eq.s32.totalorder %s17, 0
    %p44 = por %p42, %p43
    %s46 = sadd.s32 %s45, 1
    %p49 = scmp.eq.s32.totalorder %s11, 1
    %p50 = scmp.ne.s32.totalorder %s45, %s47
    %p51 = scmp.eq.s32.totalorder %s11, 0
    %p52 = por %p50, %p51
    %p53 = scmp.ne.s32.totalorder %s45, %s47
    %p54 = scmp.eq.s32.totalorder %s16, 1
    %p55 = por %p53, %p54
    %p56 = scmp.ne.s32.totalorder %s47, %s48
    %p57 = scmp.eq.s32.totalorder %s16, 0
    %p58 = por %p56, %p57
    %p59 = scmp.ne.s32.totalorder %s47, %s48
    %p60 = scmp.eq.s32.totalorder %s17, 1
    %p61 = por %p59, %p60
    %p63 = scmp.ne.s32.totalorder %s48, %s62
    %p64 = scmp.eq.s32.totalorder %s17, 0
    %p65 = por %p63, %p64
    %s67 = sadd.s32 %s66, 1
    %p70 = scmp.eq.s32.totalorder %s11, 1
    %p71 = scmp.ne.s32.totalorder %s66, %s68
    %p72 = scmp.eq.s32.totalorder %s11, 0
    %p73 = por %p71, %p72
    %p74 = scmp.ne.s32.totalorder %s66, %s68
    %p75 = scmp.eq.s32.totalorder %s16, 1
    %p76 = por %p74, %p75
    %p77 = scmp.ne.s32.totalorder %s68, %s69
    %p78 = scmp.eq.s32.totalorder %s16, 0
    %p79 = por %p77, %p78
    %p80 = scmp.ne.s32.totalorder %s68, %s69
    %p81 = scmp.eq.s32.totalorder %s17, 1
    %p82 = por %p80, %p81
    %p84 = scmp.ne.s32.totalorder %s69, %s83
    %p85 = scmp.eq.s32.totalorder %s17, 0
    %p86 = por %p84, %p85
    %s88 = sadd.s32 %s87, 1
    %p91 = scmp.eq.s32.totalorder %s11, 1
    %p92 = scmp.ne.s32.totalorder %s87, %s89
    %p93 = scmp.eq.s32.totalorder %s11, 0
    %p94 = por %p92, %p93
    %p95 = scmp.ne.s32.totalorder %s87, %s89
    %p96 = scmp.eq.s32.totalorder %s16, 1
    %p97 = por %p95, %p96
    %p98 = scmp.ne.s32.totalorder %s89, %s90
    %p99 = scmp.eq.s32.totalorder %s16, 0
    %p100 = por %p98, %p99
    %p101 = scmp.ne.s32.totalorder %s89, %s90
    %p102 = scmp.eq.s32.totalorder %s17, 1
    %p103 = por %p101, %p102
    %p105 = scmp.ne.s32.totalorder %s90, %s104
    %p106 = scmp.eq.s32.totalorder %s17, 0
    %p107 = por %p105, %p106
    %s109 = sadd.s32 %s108, 1
    %p112 = scmp.eq.s32.totalorder %s11, 1
    %p113 = scmp.ne.s32.totalorder %s108, %s110
    %p114 = scmp.eq.s32.totalorder %s11, 0
    %p115 = por %p113, %p114
    %p116 = scmp.ne.s32.totalorder %s108, %s110
    %p117 = scmp.eq.s32.totalorder %s16, 1
    %p118 = por %p116, %p117
    %p119 = scmp.ne.s32.totalorder %s110, %s111
    %p120 = scmp.eq.s32.totalorder %s16, 0
    %p121 = por %p119, %p120
    %p122 = scmp.ne.s32.totalorder %s110, %s111
    %p123 = scmp.eq.s32.totalorder %s17, 1
    %p124 = por %p122, %p123
    %p126 = scmp.ne.s32.totalorder %s111, %s125
    %p127 = scmp.eq.s32.totalorder %s17, 0
    %p128 = por %p126, %p127
    %s129 = ssub.s32 %s11, %s18
    %p130 = scmp.eq.s32.totalorder %s129, 0
    %s132 = sadd.s32 %s131, 1
    %s133 = scalar_select %p130, %s131, %s132
    %p136 = pneg %p130
    %p137 = scmp.eq.s32.totalorder %s11, 1
    %p138 = por %p136, %p137
    %p139 = scmp.ne.s32.totalorder %s131, %s134
    %p140 = scmp.eq.s32.totalorder %s11, 0
    %p141 = por %p139, %p140
    %p142 = scmp.ne.s32.totalorder %s131, %s134
    %p143 = scmp.eq.s32.totalorder %s16, 1
    %p144 = por %p142, %p143
    %p145 = scmp.ne.s32.totalorder %s134, %s135
    %p146 = scmp.eq.s32.totalorder %s16, 0
    %p147 = por %p145, %p146
    %p148 = scmp.ne.s32.totalorder %s134, %s135
    %p149 = scmp.eq.s32.totalorder %s17, 1
    %p150 = por %p148, %p149
    %p152 = scmp.ne.s32.totalorder %s135, %s151
    %p153 = scmp.eq.s32.totalorder %s17, 0
    %p154 = por %p152, %p153
    %p155 = scmp.le.s32.totalorder 1, %s11
    %p156 = scmp.lt.s32.totalorder %s11, 3
    %p157 = pnand %p155, %p156
    %p158 = pneg %p157
    // Predicated region
    $region9: #{tpu_custom_call.1} parent=5 // pred_check
      _
    $region10: #{tpu_custom_call.1} parent=5 // pred_check_branch
      %160 = sbr.rel (%p157) target = $region12
    $region11: #{tpu_custom_call.1} parent=5 // pred_region
      %s161 = ssub.s32 %s11, 1
      // Predicated region
      $region13: #{tpu_custom_call.1} parent=11 // pred_check
        %p162 = pneg %p58
      $region14: #{tpu_custom_call.1} parent=11 // pred_check_branch
        %164 = sbr.rel (%p162) target = $region16
      $region15: #{tpu_custom_call.1} parent=11 // pred_region
        _
      $region16: #{tpu_custom_call.1} parent=11 // pred_fallthru
        _
      // Predicated region
      $region17: #{tpu_custom_call.1} parent=11 // pred_check
        %p165 = pneg %p79
      $region18: #{tpu_custom_call.1} parent=11 // pred_check_branch
        %167 = sbr.rel (%p165) target = $region20
      $region19: #{tpu_custom_call.1} parent=11 // pred_region
        _
      $region20: #{tpu_custom_call.1} parent=11 // pred_fallthru
        _
      // Predicated region
      $region21: #{tpu_custom_call.1} parent=11 // pred_check
        %p168 = pneg %p100
      $region22: #{tpu_custom_call.1} parent=11 // pred_check_branch
        %170 = sbr.rel (%p168) target = $region24
      $region23: #{tpu_custom_call.1} parent=11 // pred_region
        _
      $region24: #{tpu_custom_call.1} parent=11 // pred_fallthru
        _
      // Predicated region
      $region25: #{tpu_custom_call.1} parent=11 // pred_check
        %p171 = pneg %p121
      $region26: #{tpu_custom_call.1} parent=11 // pred_check_branch
        %173 = sbr.rel (%p171) target = $region28
      $region27: #{tpu_custom_call.1} parent=11 // pred_region
        _
      $region28: #{tpu_custom_call.1} parent=11 // pred_fallthru
        _
    $region12: #{tpu_custom_call.1} parent=5 // pred_fallthru
      _
    %p174 = scmp.lt.s32.totalorder %s11, 2
    // Predicated region
    $region29: #{tpu_custom_call.1} parent=5 // pred_check
      %p175 = pneg %p174
    $region30: #{tpu_custom_call.1} parent=5 // pred_check_branch
      %177 = sbr.rel (%p175) target = $region32
    $region31: #{tpu_custom_call.1} parent=5 // pred_region
      // Predicated region
      $region33: #{tpu_custom_call.1} parent=31 // pred_check
        %p178 = pneg %p31
      $region34: #{tpu_custom_call.1} parent=31 // pred_check_branch
        %180 = sbr.rel (%p178) target = $region36
      $region35: #{tpu_custom_call.1} parent=31 // pred_region
        %p181 = scmp.lt.s32.totalorder %s11, 1
        %s182 = scalar_select %p181, %s11, 1
        %s183 = smul.addr %s182, 32
        %s184 = smul.addr %s183, 4
        %s185 = scalar_lea.vmem %s0, %s184
      $region36: #{tpu_custom_call.1} parent=31 // pred_fallthru
        _
    $region32: #{tpu_custom_call.1} parent=5 // pred_fallthru
      _
    %p186 = scmp.le.s32.totalorder 1, %s11
    %p187 = scmp.lt.s32.totalorder %s11, 3
    %p188 = pnand %p186, %p187
    %p189 = pneg %p188
    // Predicated region
    $region37: #{tpu_custom_call.1} parent=5 // pred_check
      _
    $region38: #{tpu_custom_call.1} parent=5 // pred_check_branch
      %191 = sbr.rel (%p188) target = $region40
    $region39: #{tpu_custom_call.1} parent=5 // pred_region
      %s192 = ssub.s32 %s11, 1
      %p193 = scmp.lt.s32.totalorder %s16, 1
      %s194 = scalar_select %p193, %s16, 1
      %s195 = smul.addr %s194, 32
      %s196 = smul.addr %s195, 4
      %s197 = scalar_lea.vmem %s0, %s196
      %p198 = pneg %p37
      %p199 = pneg %p34
      %p200 = pneg %p58
      %p201 = pneg %p55
      %p202 = pneg %p79
      %p203 = pneg %p76
      %p204 = pneg %p100
      %p205 = pneg %p97
      %p206 = pneg %p121
      %p207 = pneg %p118
      %p208 = pneg %p147
      %p209 = pneg %p144
      %p210 = scmp.lt.s32.totalorder %s16, 1
      %s211 = scalar_select %p210, %s16, 1
      %s212 = smul.addr %s211, 32
      %s213 = smul.addr %s212, 4
      %s214 = scalar_lea.vmem %s5, %s213
      %p215 = scmp.lt.s32.totalorder %s16, 1
      %s216 = scalar_select %p215, %s16, 1
      %s217 = smul.addr %s216, 32
      %s218 = smul.addr %s217, 4
      %s219 = scalar_lea.vmem %s0, %s218
      %p220 = scmp.lt.s32.totalorder %s16, 1
      %s221 = scalar_select %p220, %s16, 1
      %s222 = smul.addr %s221, 32
      %s223 = smul.addr %s222, 4
      %s224 = scalar_lea.vmem %s5, %s223
      %v226 = vld [vmem:[%s219] sm:$0xf]
      %v227 = vld [vmem:[%s219 + $0x4] sm:$0xf]
      %v228 = vld [vmem:[%s219 + $0x8] sm:$0xf]
      %v229 = vld [vmem:[%s219 + $0xc] sm:$0xf]
      %v230 = vld [vmem:[%s219 + $0x10] sm:$0xf]
      %v231 = vld [vmem:[%s219 + $0x14] sm:$0xf]
      %v232 = vld [vmem:[%s219 + $0x18] sm:$0xf]
      %v233 = vld [vmem:[%s219 + $0x1c] sm:$0xf]
      %v234 = vld [vmem:[%s219 + $0x20] sm:$0xf]
      %v235 = vld [vmem:[%s219 + $0x24] sm:$0xf]
      %v236 = vld [vmem:[%s219 + $0x28] sm:$0xf]
      %v237 = vld [vmem:[%s219 + $0x2c] sm:$0xf]
      %v238 = vld [vmem:[%s219 + $0x30] sm:$0xf]
      %v239 = vld [vmem:[%s219 + $0x34] sm:$0xf]
      %v240 = vld [vmem:[%s219 + $0x38] sm:$0xf]
      %v241 = vld [vmem:[%s219 + $0x3c] sm:$0xf]
      %v242 = vld [vmem:[%s219 + $0x40] sm:$0xf]
      %v243 = vld [vmem:[%s219 + $0x44] sm:$0xf]
      %v244 = vld [vmem:[%s219 + $0x48] sm:$0xf]
      %v245 = vld [vmem:[%s219 + $0x4c] sm:$0xf]
      %v246 = vld [vmem:[%s219 + $0x50] sm:$0xf]
      %v247 = vld [vmem:[%s219 + $0x54] sm:$0xf]
      %v248 = vld [vmem:[%s219 + $0x58] sm:$0xf]
      %v249 = vld [vmem:[%s219 + $0x5c] sm:$0xf]
      %v250 = vld [vmem:[%s219 + $0x60] sm:$0xf]
      %v251 = vld [vmem:[%s219 + $0x64] sm:$0xf]
      %v252 = vld [vmem:[%s219 + $0x68] sm:$0xf]
      %v253 = vld [vmem:[%s219 + $0x6c] sm:$0xf]
      %v254 = vld [vmem:[%s219 + $0x70] sm:$0xf]
      %v255 = vld [vmem:[%s219 + $0x74] sm:$0xf]
      %v256 = vld [vmem:[%s219 + $0x78] sm:$0xf]
      %v257 = vld [vmem:[%s219 + $0x7c] sm:$0xf]
      %290 = vrot.lane.b32.xlu0 %v226, 4
      %v291 = vpop.permute.xlu0 %290
      %292 = vrot.lane.b32.xlu0 %v227, 4
      %v293 = vpop.permute.xlu0 %292
      %294 = vrot.lane.b32.xlu0 %v228, 4
      %v295 = vpop.permute.xlu0 %294
      %296 = vrot.lane.b32.xlu0 %v229, 4
      %v297 = vpop.permute.xlu0 %296
      %298 = vrot.lane.b32.xlu0 %v230, 4
      %v299 = vpop.permute.xlu0 %298
      %300 = vrot.lane.b32.xlu0 %v231, 4
      %v301 = vpop.permute.xlu0 %300
      %302 = vrot.lane.b32.xlu0 %v232, 4
      %v303 = vpop.permute.xlu0 %302
      %304 = vrot.lane.b32.xlu0 %v233, 4
      %v305 = vpop.permute.xlu0 %304
      %306 = vrot.lane.b32.xlu0 %v234, 4
      %v307 = vpop.permute.xlu0 %306
      %308 = vrot.lane.b32.xlu0 %v235, 4
      %v309 = vpop.permute.xlu0 %308
      %310 = vrot.lane.b32.xlu0 %v236, 4
      %v311 = vpop.permute.xlu0 %310
      %312 = vrot.lane.b32.xlu0 %v237, 4
      %v313 = vpop.permute.xlu0 %312
      %314 = vrot.lane.b32.xlu0 %v238, 4
      %v315 = vpop.permute.xlu0 %314
      %316 = vrot.lane.b32.xlu0 %v239, 4
      %v317 = vpop.permute.xlu0 %316
      %318 = vrot.lane.b32.xlu0 %v240, 4
      %v319 = vpop.permute.xlu0 %318
      %320 = vrot.lane.b32.xlu0 %v241, 4
      %v321 = vpop.permute.xlu0 %320
      %322 = vrot.lane.b32.xlu0 %v242, 4
      %v323 = vpop.permute.xlu0 %322
      %324 = vrot.lane.b32.xlu0 %v243, 4
      %v325 = vpop.permute.xlu0 %324
      %326 = vrot.lane.b32.xlu0 %v244, 4
      %v327 = vpop.permute.xlu0 %326
      %328 = vrot.lane.b32.xlu0 %v245, 4
      %v329 = vpop.permute.xlu0 %328
      %330 = vrot.lane.b32.xlu0 %v246, 4
      %v331 = vpop.permute.xlu0 %330
      %332 = vrot.lane.b32.xlu0 %v247, 4
      %v333 = vpop.permute.xlu0 %332
      %334 = vrot.lane.b32.xlu0 %v248, 4
      %v335 = vpop.permute.xlu0 %334
      %336 = vrot.lane.b32.xlu0 %v249, 4
      %v337 = vpop.permute.xlu0 %336
      %338 = vrot.lane.b32.xlu0 %v250, 4
      %v339 = vpop.permute.xlu0 %338
      %340 = vrot.lane.b32.xlu0 %v251, 4
      %v341 = vpop.permute.xlu0 %340
      %342 = vrot.lane.b32.xlu0 %v252, 4
      %v343 = vpop.permute.xlu0 %342
      %344 = vrot.lane.b32.xlu0 %v253, 4
      %v345 = vpop.permute.xlu0 %344
      %346 = vrot.lane.b32.xlu0 %v254, 4
      %v347 = vpop.permute.xlu0 %346
      %348 = vrot.lane.b32.xlu0 %v255, 4
      %v349 = vpop.permute.xlu0 %348
      %350 = vrot.lane.b32.xlu0 %v256, 4
      %v351 = vpop.permute.xlu0 %350
      %352 = vrot.lane.b32.xlu0 %v257, 4
      %v353 = vpop.permute.xlu0 %352
      %s386 = scalar_lea.vmem [#allocation2], 8
      %vm387 = vcmask 60448
      %388 = vst.msk [vmem:[%s386] sm:$0xf] %vm387, %v291
      %389 = vst.msk [vmem:[%s386 + $0x4] sm:$0xf] %vm387, %v293
      %390 = vst.msk [vmem:[%s386 + $0x8] sm:$0xf] %vm387, %v295
      %391 = vst.msk [vmem:[%s386 + $0xc] sm:$0xf] %vm387, %v297
      %392 = vst.msk [vmem:[%s386 + $0x10] sm:$0xf] %vm387, %v299
      %393 = vst.msk [vmem:[%s386 + $0x14] sm:$0xf] %vm387, %v301
      %394 = vst.msk [vmem:[%s386 + $0x18] sm:$0xf] %vm387, %v303
      %395 = vst.msk [vmem:[%s386 + $0x1c] sm:$0xf] %vm387, %v305
      %396 = vst.msk [vmem:[%s386 + $0x20] sm:$0xf] %vm387, %v307
      %397 = vst.msk [vmem:[%s386 + $0x24] sm:$0xf] %vm387, %v309
      %398 = vst.msk [vmem:[%s386 + $0x28] sm:$0xf] %vm387, %v311
      %399 = vst.msk [vmem:[%s386 + $0x2c] sm:$0xf] %vm387, %v313
      %400 = vst.msk [vmem:[%s386 + $0x30] sm:$0xf] %vm387, %v315
      %401 = vst.msk [vmem:[%s386 + $0x34] sm:$0xf] %vm387, %v317
      %402 = vst.msk [vmem:[%s386 + $0x38] sm:$0xf] %vm387, %v319
      %403 = vst.msk [vmem:[%s386 + $0x3c] sm:$0xf] %vm387, %v321
      %404 = vst.msk [vmem:[%s386 + $0x40] sm:$0xf] %vm387, %v323
      %405 = vst.msk [vmem:[%s386 + $0x44] sm:$0xf] %vm387, %v325
      %406 = vst.msk [vmem:[%s386 + $0x48] sm:$0xf] %vm387, %v327
      %407 = vst.msk [vmem:[%s386 + $0x4c] sm:$0xf] %vm387, %v329
      %408 = vst.msk [vmem:[%s386 + $0x50] sm:$0xf] %vm387, %v331
      %409 = vst.msk [vmem:[%s386 + $0x54] sm:$0xf] %vm387, %v333
      %410 = vst.msk [vmem:[%s386 + $0x58] sm:$0xf] %vm387, %v335
      %411 = vst.msk [vmem:[%s386 + $0x5c] sm:$0xf] %vm387, %v337
      %412 = vst.msk [vmem:[%s386 + $0x60] sm:$0xf] %vm387, %v339
      %413 = vst.msk [vmem:[%s386 + $0x64] sm:$0xf] %vm387, %v341
      %414 = vst.msk [vmem:[%s386 + $0x68] sm:$0xf] %vm387, %v343
      %415 = vst.msk [vmem:[%s386 + $0x6c] sm:$0xf] %vm387, %v345
      %416 = vst.msk [vmem:[%s386 + $0x70] sm:$0xf] %vm387, %v347
      %417 = vst.msk [vmem:[%s386 + $0x74] sm:$0xf] %vm387, %v349
      %418 = vst.msk [vmem:[%s386 + $0x78] sm:$0xf] %vm387, %v351
      %419 = vst.msk [vmem:[%s386 + $0x7c] sm:$0xf] %vm387, %v353
      %vm420 = vsmask.f32 256
      %vm421 = vsmask.f32 4368
      %vm422 = vmor %vm420, %vm421
      %v424 = vshrl.u32 %v226, 16
      %v426 = vrot.slane %v424, 7
      %v427 = vshll.u32 %v226, 16
      %v429 = vor.u32 %v426, %v427
      %v430 = vrot.slane %v426, 4
      %v432 = vshrl.u32 %v227, 16
      %v434 = vrot.slane %v432, 7
      %v435 = vshll.u32 %v227, 16
      %v437 = vor.u32 %v434, %v435
      %v438 = vsel %vm422, %v430, %v437
      %v440 = vshrl.u32 %v228, 16
      %v442 = vrot.slane %v440, 7
      %v443 = vshll.u32 %v228, 16
      %v445 = vor.u32 %v442, %v443
      %v446 = vrot.slane %v442, 4
      %v448 = vshrl.u32 %v229, 16
      %v450 = vrot.slane %v448, 7
      %v451 = vshll.u32 %v229, 16
      %v453 = vor.u32 %v450, %v451
      %v454 = vsel %vm422, %v446, %v453
      %v456 = vshrl.u32 %v230, 16
      %v458 = vrot.slane %v456, 7
      %v459 = vshll.u32 %v230, 16
      %v461 = vor.u32 %v458, %v459
      %v462 = vrot.slane %v458, 4
      %v464 = vshrl.u32 %v231, 16
      %v466 = vrot.slane %v464, 7
      %v467 = vshll.u32 %v231, 16
      %v469 = vor.u32 %v466, %v467
      %v470 = vsel %vm422, %v462, %v469
      %v472 = vshrl.u32 %v232, 16
      %v474 = vrot.slane %v472, 7
      %v475 = vshll.u32 %v232, 16
      %v477 = vor.u32 %v474, %v475
      %v478 = vrot.slane %v474, 4
      %v480 = vshrl.u32 %v233, 16
      %v482 = vrot.slane %v480, 7
      %v483 = vshll.u32 %v233, 16
      %v485 = vor.u32 %v482, %v483
      %v486 = vsel %vm422, %v478, %v485
      %v488 = vshrl.u32 %v234, 16
      %v490 = vrot.slane %v488, 7
      %v491 = vshll.u32 %v234, 16
      %v493 = vor.u32 %v490, %v491
      %v494 = vrot.slane %v490, 4
      %v496 = vshrl.u32 %v235, 16
      %v498 = vrot.slane %v496, 7
      %v499 = vshll.u32 %v235, 16
      %v501 = vor.u32 %v498, %v499
      %v502 = vsel %vm422, %v494, %v501
      %v504 = vshrl.u32 %v236, 16
      %v506 = vrot.slane %v504, 7
      %v507 = vshll.u32 %v236, 16
      %v509 = vor.u32 %v506, %v507
      %v510 = vrot.slane %v506, 4
      %v512 = vshrl.u32 %v237, 16
      %v514 = vrot.slane %v512, 7
      %v515 = vshll.u32 %v237, 16
      %v517 = vor.u32 %v514, %v515
      %v518 = vsel %vm422, %v510, %v517
      %v520 = vshrl.u32 %v238, 16
      %v522 = vrot.slane %v520, 7
      %v523 = vshll.u32 %v238, 16
      %v525 = vor.u32 %v522, %v523
      %v526 = vrot.slane %v522, 4
      %v528 = vshrl.u32 %v239, 16
      %v530 = vrot.slane %v528, 7
      %v531 = vshll.u32 %v239, 16
      %v533 = vor.u32 %v530, %v531
      %v534 = vsel %vm422, %v526, %v533
      %v536 = vshrl.u32 %v240, 16
      %v538 = vrot.slane %v536, 7
      %v539 = vshll.u32 %v240, 16
      %v541 = vor.u32 %v538, %v539
      %v542 = vrot.slane %v538, 4
      %v544 = vshrl.u32 %v241, 16
      %v546 = vrot.slane %v544, 7
      %v547 = vshll.u32 %v241, 16
      %v549 = vor.u32 %v546, %v547
      %v550 = vsel %vm422, %v542, %v549
      %v552 = vshrl.u32 %v242, 16
      %v554 = vrot.slane %v552, 7
      %v555 = vshll.u32 %v242, 16
      %v557 = vor.u32 %v554, %v555
      %v558 = vrot.slane %v554, 4
      %v560 = vshrl.u32 %v243, 16
      %v562 = vrot.slane %v560, 7
      %v563 = vshll.u32 %v243, 16
      %v565 = vor.u32 %v562, %v563
      %v566 = vsel %vm422, %v558, %v565
      %v568 = vshrl.u32 %v244, 16
      %v570 = vrot.slane %v568, 7
      %v571 = vshll.u32 %v244, 16
      %v573 = vor.u32 %v570, %v571
      %v574 = vrot.slane %v570, 4
      %v576 = vshrl.u32 %v245, 16
      %v578 = vrot.slane %v576, 7
      %v579 = vshll.u32 %v245, 16
      %v581 = vor.u32 %v578, %v579
      %v582 = vsel %vm422, %v574, %v581
      %v584 = vshrl.u32 %v246, 16
      %v586 = vrot.slane %v584, 7
      %v587 = vshll.u32 %v246, 16
      %v589 = vor.u32 %v586, %v587
      %v590 = vrot.slane %v586, 4
      %v592 = vshrl.u32 %v247, 16
      %v594 = vrot.slane %v592, 7
      %v595 = vshll.u32 %v247, 16
      %v597 = vor.u32 %v594, %v595
      %v598 = vsel %vm422, %v590, %v597
      %v600 = vshrl.u32 %v248, 16
      %v602 = vrot.slane %v600, 7
      %v603 = vshll.u32 %v248, 16
      %v605 = vor.u32 %v602, %v603
      %v606 = vrot.slane %v602, 4
      %v608 = vshrl.u32 %v249, 16
      %v610 = vrot.slane %v608, 7
      %v611 = vshll.u32 %v249, 16
      %v613 = vor.u32 %v610, %v611
      %v614 = vsel %vm422, %v606, %v613
      %v616 = vshrl.u32 %v250, 16
      %v618 = vrot.slane %v616, 7
      %v619 = vshll.u32 %v250, 16
      %v621 = vor.u32 %v618, %v619
      %v622 = vrot.slane %v618, 4
      %v624 = vshrl.u32 %v251, 16
      %v626 = vrot.slane %v624, 7
      %v627 = vshll.u32 %v251, 16
      %v629 = vor.u32 %v626, %v627
      %v630 = vsel %vm422, %v622, %v629
      %v632 = vshrl.u32 %v252, 16
      %v634 = vrot.slane %v632, 7
      %v635 = vshll.u32 %v252, 16
      %v637 = vor.u32 %v634, %v635
      %v638 = vrot.slane %v634, 4
      %v640 = vshrl.u32 %v253, 16
      %v642 = vrot.slane %v640, 7
      %v643 = vshll.u32 %v253, 16
      %v645 = vor.u32 %v642, %v643
      %v646 = vsel %vm422, %v638, %v645
      %v648 = vshrl.u32 %v254, 16
      %v650 = vrot.slane %v648, 7
      %v651 = vshll.u32 %v254, 16
      %v653 = vor.u32 %v650, %v651
      %v654 = vrot.slane %v650, 4
      %v656 = vshrl.u32 %v255, 16
      %v658 = vrot.slane %v656, 7
      %v659 = vshll.u32 %v255, 16
      %v661 = vor.u32 %v658, %v659
      %v662 = vsel %vm422, %v654, %v661
      %v664 = vshrl.u32 %v256, 16
      %v666 = vrot.slane %v664, 7
      %v667 = vshll.u32 %v256, 16
      %v669 = vor.u32 %v666, %v667
      %v670 = vrot.slane %v666, 4
      %v672 = vshrl.u32 %v257, 16
      %v674 = vrot.slane %v672, 7
      %v675 = vshll.u32 %v257, 16
      %v677 = vor.u32 %v674, %v675
      %v678 = vsel %vm422, %v670, %v677
      %vm711 = vcmask 27648
      %vm712 = vsmask.f32 7938
      %vm713 = vmand %vm711, %vm712
      %v714 = vld [vmem:[%s386] sm:$0xf]
      %v715 = vsel %vm713, %v429, %v714
      %716 = vst [vmem:[%s386] sm:$0xf] %v715
      %vm717 = vcmask 27648
      %718 = vst.msk [vmem:[%s386 + $0x4] sm:$0xf] %vm717, %v438
      %v719 = vld [vmem:[%s386 + $0x8] sm:$0xf]
      %v720 = vsel %vm713, %v445, %v719
      %721 = vst [vmem:[%s386 + $0x8] sm:$0xf] %v720
      %722 = vst.msk [vmem:[%s386 + $0xc] sm:$0xf] %vm717, %v454
      %v723 = vld [vmem:[%s386 + $0x10] sm:$0xf]
      %v724 = vsel %vm713, %v461, %v723
      %725 = vst [vmem:[%s386 + $0x10] sm:$0xf] %v724
      %726 = vst.msk [vmem:[%s386 + $0x14] sm:$0xf] %vm717, %v470
      %v727 = vld [vmem:[%s386 + $0x18] sm:$0xf]
      %v728 = vsel %vm713, %v477, %v727
      %729 = vst [vmem:[%s386 + $0x18] sm:$0xf] %v728
      %730 = vst.msk [vmem:[%s386 + $0x1c] sm:$0xf] %vm717, %v486
      %v731 = vld [vmem:[%s386 + $0x20] sm:$0xf]
      %v732 = vsel %vm713, %v493, %v731
      %733 = vst [vmem:[%s386 + $0x20] sm:$0xf] %v732
      %734 = vst.msk [vmem:[%s386 + $0x24] sm:$0xf] %vm717, %v502
      %v735 = vld [vmem:[%s386 + $0x28] sm:$0xf]
      %v736 = vsel %vm713, %v509, %v735
      %737 = vst [vmem:[%s386 + $0x28] sm:$0xf] %v736
      %738 = vst.msk [vmem:[%s386 + $0x2c] sm:$0xf] %vm717, %v518
      %v739 = vld [vmem:[%s386 + $0x30] sm:$0xf]
      %v740 = vsel %vm713, %v525, %v739
      %741 = vst [vmem:[%s386 + $0x30] sm:$0xf] %v740
      %742 = vst.msk [vmem:[%s386 + $0x34] sm:$0xf] %vm717, %v534
      %v743 = vld [vmem:[%s386 + $0x38] sm:$0xf]
      %v744 = vsel %vm713, %v541, %v743
      %745 = vst [vmem:[%s386 + $0x38] sm:$0xf] %v744
      %746 = vst.msk [vmem:[%s386 + $0x3c] sm:$0xf] %vm717, %v550
      %v747 = vld [vmem:[%s386 + $0x40] sm:$0xf]
      %v748 = vsel %vm713, %v557, %v747
      %749 = vst [vmem:[%s386 + $0x40] sm:$0xf] %v748
      %750 = vst.msk [vmem:[%s386 + $0x44] sm:$0xf] %vm717, %v566
      %v751 = vld [vmem:[%s386 + $0x48] sm:$0xf]
      %v752 = vsel %vm713, %v573, %v751
      %753 = vst [vmem:[%s386 + $0x48] sm:$0xf] %v752
      %754 = vst.msk [vmem:[%s386 + $0x4c] sm:$0xf] %vm717, %v582
      %v755 = vld [vmem:[%s386 + $0x50] sm:$0xf]
      %v756 = vsel %vm713, %v589, %v755
      %757 = vst [vmem:[%s386 + $0x50] sm:$0xf] %v756
      %758 = vst.msk [vmem:[%s386 + $0x54] sm:$0xf] %vm717, %v598
      %v759 = vld [vmem:[%s386 + $0x58] sm:$0xf]
      %v760 = vsel %vm713, %v605, %v759
      %761 = vst [vmem:[%s386 + $0x58] sm:$0xf] %v760
      %762 = vst.msk [vmem:[%s386 + $0x5c] sm:$0xf] %vm717, %v614
      %v763 = vld [vmem:[%s386 + $0x60] sm:$0xf]
      %v764 = vsel %vm713, %v621, %v763
      %765 = vst [vmem:[%s386 + $0x60] sm:$0xf] %v764
      %766 = vst.msk [vmem:[%s386 + $0x64] sm:$0xf] %vm717, %v630
      %v767 = vld [vmem:[%s386 + $0x68] sm:$0xf]
      %v768 = vsel %vm713, %v637, %v767
      %769 = vst [vmem:[%s386 + $0x68] sm:$0xf] %v768
      %770 = vst.msk [vmem:[%s386 + $0x6c] sm:$0xf] %vm717, %v646
      %v771 = vld [vmem:[%s386 + $0x70] sm:$0xf]
      %v772 = vsel %vm713, %v653, %v771
      %773 = vst [vmem:[%s386 + $0x70] sm:$0xf] %v772
      %774 = vst.msk [vmem:[%s386 + $0x74] sm:$0xf] %vm717, %v662
      %v775 = vld [vmem:[%s386 + $0x78] sm:$0xf]
      %v776 = vsel %vm713, %v669, %v775
      %777 = vst [vmem:[%s386 + $0x78] sm:$0xf] %v776
      %778 = vst.msk [vmem:[%s386 + $0x7c] sm:$0xf] %vm717, %v678
      %vm779 = vsmask.f32 3328
      %vm780 = vsmask.f32 7440
      %vm781 = vmor %vm779, %vm780
      %v782 = vrot.slane %v424, 4
      %v783 = vrot.slane %v427, 5
      %v784 = vor.u32 %v782, %v783
      %v785 = vrot.slane %v784, 4
      %v786 = vrot.slane %v435, 5
      %v787 = vsel %vm781, %v785, %v786
      %v788 = vrot.slane %v432, 4
      %v789 = vor.u32 %v788, %v786
      %v790 = vrot.slane %v789, 4
      %v791 = vrot.slane %v440, 4
      %v792 = vrot.slane %v443, 5
      %v793 = vor.u32 %v791, %v792
      %v794 = vrot.slane %v793, 4
      %v795 = vrot.slane %v451, 5
      %v796 = vsel %vm781, %v794, %v795
      %v797 = vrot.slane %v448, 4
      %v798 = vor.u32 %v797, %v795
      %v799 = vrot.slane %v798, 4
      %v800 = vrot.slane %v456, 4
      %v801 = vrot.slane %v459, 5
      %v802 = vor.u32 %v800, %v801
      %v803 = vrot.slane %v802, 4
      %v804 = vrot.slane %v467, 5
      %v805 = vsel %vm781, %v803, %v804
      %v806 = vrot.slane %v464, 4
      %v807 = vor.u32 %v806, %v804
      %v808 = vrot.slane %v807, 4
      %v809 = vrot.slane %v472, 4
      %v810 = vrot.slane %v475, 5
      %v811 = vor.u32 %v809, %v810
      %v812 = vrot.slane %v811, 4
      %v813 = vrot.slane %v483, 5
      %v814 = vsel %vm781, %v812, %v813
      %v815 = vrot.slane %v480, 4
      %v816 = vor.u32 %v815, %v813
      %v817 = vrot.slane %v816, 4
      %v818 = vrot.slane %v488, 4
      %v819 = vrot.slane %v491, 5
      %v820 = vor.u32 %v818, %v819
      %v821 = vrot.slane %v820, 4
      %v822 = vrot.slane %v499, 5
      %v823 = vsel %vm781, %v821, %v822
      %v824 = vrot.slane %v496, 4
      %v825 = vor.u32 %v824, %v822
      %v826 = vrot.slane %v825, 4
      %v827 = vrot.slane %v504, 4
      %v828 = vrot.slane %v507, 5
      %v829 = vor.u32 %v827, %v828
      %v830 = vrot.slane %v829, 4
      %v831 = vrot.slane %v515, 5
      %v832 = vsel %vm781, %v830, %v831
      %v833 = vrot.slane %v512, 4
      %v834 = vor.u32 %v833, %v831
      %v835 = vrot.slane %v834, 4
      %v836 = vrot.slane %v520, 4
      %v837 = vrot.slane %v523, 5
      %v838 = vor.u32 %v836, %v837
      %v839 = vrot.slane %v838, 4
      %v840 = vrot.slane %v531, 5
      %v841 = vsel %vm781, %v839, %v840
      %v842 = vrot.slane %v528, 4
      %v843 = vor.u32 %v842, %v840
      %v844 = vrot.slane %v843, 4
      %v845 = vrot.slane %v536, 4
      %v846 = vrot.slane %v539, 5
      %v847 = vor.u32 %v845, %v846
      %v848 = vrot.slane %v847, 4
      %v849 = vrot.slane %v547, 5
      %v850 = vsel %vm781, %v848, %v849
      %v851 = vrot.slane %v544, 4
      %v852 = vor.u32 %v851, %v849
      %v853 = vrot.slane %v852, 4
      %v854 = vrot.slane %v552, 4
      %v855 = vrot.slane %v555, 5
      %v856 = vor.u32 %v854, %v855
      %v857 = vrot.slane %v856, 4
      %v858 = vrot.slane %v563, 5
      %v859 = vsel %vm781, %v857, %v858
      %v860 = vrot.slane %v560, 4
      %v861 = vor.u32 %v860, %v858
      %v862 = vrot.slane %v861, 4
      %v863 = vrot.slane %v568, 4
      %v864 = vrot.slane %v571, 5
      %v865 = vor.u32 %v863, %v864
      %v866 = vrot.slane %v865, 4
      %v867 = vrot.slane %v579, 5
      %v868 = vsel %vm781, %v866, %v867
      %v869 = vrot.slane %v576, 4
      %v870 = vor.u32 %v869, %v867
      %v871 = vrot.slane %v870, 4
      %v872 = vrot.slane %v584, 4
      %v873 = vrot.slane %v587, 5
      %v874 = vor.u32 %v872, %v873
      %v875 = vrot.slane %v874, 4
      %v876 = vrot.slane %v595, 5
      %v877 = vsel %vm781, %v875, %v876
      %v878 = vrot.slane %v592, 4
      %v879 = vor.u32 %v878, %v876
      %v880 = vrot.slane %v879, 4
      %v881 = vrot.slane %v600, 4
      %v882 = vrot.slane %v603, 5
      %v883 = vor.u32 %v881, %v882
      %v884 = vrot.slane %v883, 4
      %v885 = vrot.slane %v611, 5
      %v886 = vsel %vm781, %v884, %v885
      %v887 = vrot.slane %v608, 4
      %v888 = vor.u32 %v887, %v885
      %v889 = vrot.slane %v888, 4
      %v890 = vrot.slane %v616, 4
      %v891 = vrot.slane %v619, 5
      %v892 = vor.u32 %v890, %v891
      %v893 = vrot.slane %v892, 4
      %v894 = vrot.slane %v627, 5
      %v895 = vsel %vm781, %v893, %v894
      %v896 = vrot.slane %v624, 4
      %v897 = vor.u32 %v896, %v894
      %v898 = vrot.slane %v897, 4
      %v899 = vrot.slane %v632, 4
      %v900 = vrot.slane %v635, 5
      %v901 = vor.u32 %v899, %v900
      %v902 = vrot.slane %v901, 4
      %v903 = vrot.slane %v643, 5
      %v904 = vsel %vm781, %v902, %v903
      %v905 = vrot.slane %v640, 4
      %v906 = vor.u32 %v905, %v903
      %v907 = vrot.slane %v906, 4
      %v908 = vrot.slane %v648, 4
      %v909 = vrot.slane %v651, 5
      %v910 = vor.u32 %v908, %v909
      %v911 = vrot.slane %v910, 4
      %v912 = vrot.slane %v659, 5
      %v913 = vsel %vm781, %v911, %v912
      %v914 = vrot.slane %v656, 4
      %v915 = vor.u32 %v914, %v912
      %v916 = vrot.slane %v915, 4
      %v917 = vrot.slane %v664, 4
      %v918 = vrot.slane %v667, 5
      %v919 = vor.u32 %v917, %v918
      %v920 = vrot.slane %v919, 4
      %v921 = vrot.slane %v675, 5
      %v922 = vsel %vm781, %v920, %v921
      %v923 = vrot.slane %v672, 4
      %v924 = vor.u32 %v923, %v921
      %v925 = vrot.slane %v924, 4
      %926 = vrot.lane.b32.xlu0 %v787, 8
      %v927 = vpop.permute.xlu0 %926
      %928 = vrot.lane.b32.xlu0 %v790, 8
      %v929 = vpop.permute.xlu0 %928
      %930 = vrot.lane.b32.xlu0 %v796, 8
      %v931 = vpop.permute.xlu0 %930
      %932 = vrot.lane.b32.xlu0 %v799, 8
      %v933 = vpop.permute.xlu0 %932
      %934 = vrot.lane.b32.xlu0 %v805, 8
      %v935 = vpop.permute.xlu0 %934
      %936 = vrot.lane.b32.xlu0 %v808, 8
      %v937 = vpop.permute.xlu0 %936
      %938 = vrot.lane.b32.xlu0 %v814, 8
      %v939 = vpop.permute.xlu0 %938
      %940 = vrot.lane.b32.xlu0 %v817, 8
      %v941 = vpop.permute.xlu0 %940
      %942 = vrot.lane.b32.xlu0 %v823, 8
      %v943 = vpop.permute.xlu0 %942
      %944 = vrot.lane.b32.xlu0 %v826, 8
      %v945 = vpop.permute.xlu0 %944
      %946 = vrot.lane.b32.xlu0 %v832, 8
      %v947 = vpop.permute.xlu0 %946
      %948 = vrot.lane.b32.xlu0 %v835, 8
      %v949 = vpop.permute.xlu0 %948
      %950 = vrot.lane.b32.xlu0 %v841, 8
      %v951 = vpop.permute.xlu0 %950
      %952 = vrot.lane.b32.xlu0 %v844, 8
      %v953 = vpop.permute.xlu0 %952
      %954 = vrot.lane.b32.xlu0 %v850, 8
      %v955 = vpop.permute.xlu0 %954
      %956 = vrot.lane.b32.xlu0 %v853, 8
      %v957 = vpop.permute.xlu0 %956
      %958 = vrot.lane.b32.xlu0 %v859, 8
      %v959 = vpop.permute.xlu0 %958
      %960 = vrot.lane.b32.xlu0 %v862, 8
      %v961 = vpop.permute.xlu0 %960
      %962 = vrot.lane.b32.xlu0 %v868, 8
      %v963 = vpop.permute.xlu0 %962
      %964 = vrot.lane.b32.xlu0 %v871, 8
      %v965 = vpop.permute.xlu0 %964
      %966 = vrot.lane.b32.xlu0 %v877, 8
      %v967 = vpop.permute.xlu0 %966
      %968 = vrot.lane.b32.xlu0 %v880, 8
      %v969 = vpop.permute.xlu0 %968
      %970 = vrot.lane.b32.xlu0 %v886, 8
      %v971 = vpop.permute.xlu0 %970
      %972 = vrot.lane.b32.xlu0 %v889, 8
      %v973 = vpop.permute.xlu0 %972
      %974 = vrot.lane.b32.xlu0 %v895, 8
      %v975 = vpop.permute.xlu0 %974
      %976 = vrot.lane.b32.xlu0 %v898, 8
      %v977 = vpop.permute.xlu0 %976
      %978 = vrot.lane.b32.xlu0 %v904, 8
      %v979 = vpop.permute.xlu0 %978
      %980 = vrot.lane.b32.xlu0 %v907, 8
      %v981 = vpop.permute.xlu0 %980
      %982 = vrot.lane.b32.xlu0 %v913, 8
      %v983 = vpop.permute.xlu0 %982
      %984 = vrot.lane.b32.xlu0 %v916, 8
      %v985 = vpop.permute.xlu0 %984
      %986 = vrot.lane.b32.xlu0 %v922, 8
      %v987 = vpop.permute.xlu0 %986
      %988 = vrot.lane.b32.xlu0 %v925, 8
      %v989 = vpop.permute.xlu0 %988
      %vm1022 = vcmask 93248
      %1023 = vst.msk [vmem:[%s386] sm:$0xf] %vm1022, %v927
      %vm1024 = vcmask 93248
      %vm1025 = vmand %vm1024, %vm779
      %v1026 = vld [vmem:[%s386 + $0x4] sm:$0xf]
      %v1027 = vsel %vm1025, %v929, %v1026
      %1028 = vst [vmem:[%s386 + $0x4] sm:$0xf] %v1027
      %1029 = vst.msk [vmem:[%s386 + $0x8] sm:$0xf] %vm1022, %v931
      %v1030 = vld [vmem:[%s386 + $0xc] sm:$0xf]
      %v1031 = vsel %vm1025, %v933, %v1030
      %1032 = vst [vmem:[%s386 + $0xc] sm:$0xf] %v1031
      %1033 = vst.msk [vmem:[%s386 + $0x10] sm:$0xf] %vm1022, %v935
      %v1034 = vld [vmem:[%s386 + $0x14] sm:$0xf]
      %v1035 = vsel %vm1025, %v937, %v1034
      %1036 = vst [vmem:[%s386 + $0x14] sm:$0xf] %v1035
      %1037 = vst.msk [vmem:[%s386 + $0x18] sm:$0xf] %vm1022, %v939
      %v1038 = vld [vmem:[%s386 + $0x1c] sm:$0xf]
      %v1039 = vsel %vm1025, %v941, %v1038
      %1040 = vst [vmem:[%s386 + $0x1c] sm:$0xf] %v1039
      %1041 = vst.msk [vmem:[%s386 + $0x20] sm:$0xf] %vm1022, %v943
      %v1042 = vld [vmem:[%s386 + $0x24] sm:$0xf]
      %v1043 = vsel %vm1025, %v945, %v1042
      %1044 = vst [vmem:[%s386 + $0x24] sm:$0xf] %v1043
      %1045 = vst.msk [vmem:[%s386 + $0x28] sm:$0xf] %vm1022, %v947
      %v1046 = vld [vmem:[%s386 + $0x2c] sm:$0xf]
      %v1047 = vsel %vm1025, %v949, %v1046
      %1048 = vst [vmem:[%s386 + $0x2c] sm:$0xf] %v1047
      %1049 = vst.msk [vmem:[%s386 + $0x30] sm:$0xf] %vm1022, %v951
      %v1050 = vld [vmem:[%s386 + $0x34] sm:$0xf]
      %v1051 = vsel %vm1025, %v953, %v1050
      %1052 = vst [vmem:[%s386 + $0x34] sm:$0xf] %v1051
      %1053 = vst.msk [vmem:[%s386 + $0x38] sm:$0xf] %vm1022, %v955
      %v1054 = vld [vmem:[%s386 + $0x3c] sm:$0xf]
      %v1055 = vsel %vm1025, %v957, %v1054
      %1056 = vst [vmem:[%s386 + $0x3c] sm:$0xf] %v1055
      %1057 = vst.msk [vmem:[%s386 + $0x40] sm:$0xf] %vm1022, %v959
      %v1058 = vld [vmem:[%s386 + $0x44] sm:$0xf]
      %v1059 = vsel %vm1025, %v961, %v1058
      %1060 = vst [vmem:[%s386 + $0x44] sm:$0xf] %v1059
      %1061 = vst.msk [vmem:[%s386 + $0x48] sm:$0xf] %vm1022, %v963
      %v1062 = vld [vmem:[%s386 + $0x4c] sm:$0xf]
      %v1063 = vsel %vm1025, %v965, %v1062
      %1064 = vst [vmem:[%s386 + $0x4c] sm:$0xf] %v1063
      %1065 = vst.msk [vmem:[%s386 + $0x50] sm:$0xf] %vm1022, %v967
      %v1066 = vld [vmem:[%s386 + $0x54] sm:$0xf]
      %v1067 = vsel %vm1025, %v969, %v1066
      %1068 = vst [vmem:[%s386 + $0x54] sm:$0xf] %v1067
      %1069 = vst.msk [vmem:[%s386 + $0x58] sm:$0xf] %vm1022, %v971
      %v1070 = vld [vmem:[%s386 + $0x5c] sm:$0xf]
      %v1071 = vsel %vm1025, %v973, %v1070
      %1072 = vst [vmem:[%s386 + $0x5c] sm:$0xf] %v1071
      %1073 = vst.msk [vmem:[%s386 + $0x60] sm:$0xf] %vm1022, %v975
      %v1074 = vld [vmem:[%s386 + $0x64] sm:$0xf]
      %v1075 = vsel %vm1025, %v977, %v1074
      %1076 = vst [vmem:[%s386 + $0x64] sm:$0xf] %v1075
      %1077 = vst.msk [vmem:[%s386 + $0x68] sm:$0xf] %vm1022, %v979
      %v1078 = vld [vmem:[%s386 + $0x6c] sm:$0xf]
      %v1079 = vsel %vm1025, %v981, %v1078
      %1080 = vst [vmem:[%s386 + $0x6c] sm:$0xf] %v1079
      %1081 = vst.msk [vmem:[%s386 + $0x70] sm:$0xf] %vm1022, %v983
      %v1082 = vld [vmem:[%s386 + $0x74] sm:$0xf]
      %v1083 = vsel %vm1025, %v985, %v1082
      %1084 = vst [vmem:[%s386 + $0x74] sm:$0xf] %v1083
      %1085 = vst.msk [vmem:[%s386 + $0x78] sm:$0xf] %vm1022, %v987
      %v1086 = vld [vmem:[%s386 + $0x7c] sm:$0xf]
      %v1087 = vsel %vm1025, %v989, %v1086
      %1088 = vst [vmem:[%s386 + $0x7c] sm:$0xf] %v1087
      %vm1089 = vcmask 93184
      %1090 = vst.msk [vmem:[#allocation2] sm:$0xf] %vm1089, 0
      %1091 = vst.msk [vmem:[#allocation2 + $0x4] sm:$0xf] %vm1089, 0
      %s1092 = scalar_lea.vmem [#allocation2], 136
      %1093 = vst.msk [vmem:[%s1092] sm:$0xf] %vm1089, 0
      %1094 = vst.msk [vmem:[%s1092 + $0x4] sm:$0xf] %vm1089, 0
      %vm1095 = vcmask 24576
      %vm1096 = vmand %vm1095, %vm420
      %v1097 = vld [vmem:[%s386] sm:$0x1]
      %v1098 = vsel %vm1096, 0, %v1097
      %1099 = vst [vmem:[%s386] sm:$0x1] %v1098
      %v1100 = vld [vmem:[%s386 + $0x8] sm:$0x1]
      %v1101 = vsel %vm1096, 0, %v1100
      %1102 = vst [vmem:[%s386 + $0x8] sm:$0x1] %v1101
      %v1103 = vld [vmem:[%s386 + $0x10] sm:$0x1]
      %v1104 = vsel %vm1096, 0, %v1103
      %1105 = vst [vmem:[%s386 + $0x10] sm:$0x1] %v1104
      %v1106 = vld [vmem:[%s386 + $0x18] sm:$0x1]
      %v1107 = vsel %vm1096, 0, %v1106
      %1108 = vst [vmem:[%s386 + $0x18] sm:$0x1] %v1107
      %v1109 = vld [vmem:[%s386 + $0x20] sm:$0x1]
      %v1110 = vsel %vm1096, 0, %v1109
      %1111 = vst [vmem:[%s386 + $0x20] sm:$0x1] %v1110
      %v1112 = vld [vmem:[%s386 + $0x28] sm:$0x1]
      %v1113 = vsel %vm1096, 0, %v1112
      %1114 = vst [vmem:[%s386 + $0x28] sm:$0x1] %v1113
      %v1115 = vld [vmem:[%s386 + $0x30] sm:$0x1]
      %v1116 = vsel %vm1096, 0, %v1115
      %1117 = vst [vmem:[%s386 + $0x30] sm:$0x1] %v1116
      %v1118 = vld [vmem:[%s386 + $0x38] sm:$0x1]
      %v1119 = vsel %vm1096, 0, %v1118
      %1120 = vst [vmem:[%s386 + $0x38] sm:$0x1] %v1119
      %v1121 = vld [vmem:[%s386 + $0x40] sm:$0x1]
      %v1122 = vsel %vm1096, 0, %v1121
      %1123 = vst [vmem:[%s386 + $0x40] sm:$0x1] %v1122
      %v1124 = vld [vmem:[%s386 + $0x48] sm:$0x1]
      %v1125 = vsel %vm1096, 0, %v1124
      %1126 = vst [vmem:[%s386 + $0x48] sm:$0x1] %v1125
      %v1127 = vld [vmem:[%s386 + $0x50] sm:$0x1]
      %v1128 = vsel %vm1096, 0, %v1127
      %1129 = vst [vmem:[%s386 + $0x50] sm:$0x1] %v1128
      %v1130 = vld [vmem:[%s386 + $0x58] sm:$0x1]
      %v1131 = vsel %vm1096, 0, %v1130
      %1132 = vst [vmem:[%s386 + $0x58] sm:$0x1] %v1131
      %v1133 = vld [vmem:[%s386 + $0x60] sm:$0x1]
      %v1134 = vsel %vm1096, 0, %v1133
      %1135 = vst [vmem:[%s386 + $0x60] sm:$0x1] %v1134
      %v1136 = vld [vmem:[%s386 + $0x68] sm:$0x1]
      %v1137 = vsel %vm1096, 0, %v1136
      %1138 = vst [vmem:[%s386 + $0x68] sm:$0x1] %v1137
      %v1139 = vld [vmem:[%s386 + $0x70] sm:$0x1]
      %v1140 = vsel %vm1096, 0, %v1139
      %1141 = vst [vmem:[%s386 + $0x70] sm:$0x1] %v1140
      %v1142 = vld [vmem:[%s386 + $0x78] sm:$0x1]
      %v1143 = vsel %vm1096, 0, %v1142
      %1144 = vst [vmem:[%s386 + $0x78] sm:$0x1] %v1143
      %vm1145 = vcmask 93251
      %vm1146 = vsmask.f32 7950
      %vm1147 = vmand %vm1145, %vm1146
      %v1148 = vld [vmem:[%s386 + $0x4] sm:$0x8]
      %v1149 = vsel %vm1147, 0, %v1148
      %1150 = vst [vmem:[%s386 + $0x4] sm:$0x8] %v1149
      %v1151 = vld [vmem:[%s386 + $0xc] sm:$0x8]
      %v1152 = vsel %vm1147, 0, %v1151
      %1153 = vst [vmem:[%s386 + $0xc] sm:$0x8] %v1152
      %v1154 = vld [vmem:[%s386 + $0x14] sm:$0x8]
      %v1155 = vsel %vm1147, 0, %v1154
      %1156 = vst [vmem:[%s386 + $0x14] sm:$0x8] %v1155
      %v1157 = vld [vmem:[%s386 + $0x1c] sm:$0x8]
      %v1158 = vsel %vm1147, 0, %v1157
      %1159 = vst [vmem:[%s386 + $0x1c] sm:$0x8] %v1158
      %v1160 = vld [vmem:[%s386 + $0x24] sm:$0x8]
      %v1161 = vsel %vm1147, 0, %v1160
      %1162 = vst [vmem:[%s386 + $0x24] sm:$0x8] %v1161
      %v1163 = vld [vmem:[%s386 + $0x2c] sm:$0x8]
      %v1164 = vsel %vm1147, 0, %v1163
      %1165 = vst [vmem:[%s386 + $0x2c] sm:$0x8] %v1164
      %v1166 = vld [vmem:[%s386 + $0x34] sm:$0x8]
      %v1167 = vsel %vm1147, 0, %v1166
      %1168 = vst [vmem:[%s386 + $0x34] sm:$0x8] %v1167
      %v1169 = vld [vmem:[%s386 + $0x3c] sm:$0x8]
      %v1170 = vsel %vm1147, 0, %v1169
      %1171 = vst [vmem:[%s386 + $0x3c] sm:$0x8] %v1170
      %v1172 = vld [vmem:[%s386 + $0x44] sm:$0x8]
      %v1173 = vsel %vm1147, 0, %v1172
      %1174 = vst [vmem:[%s386 + $0x44] sm:$0x8] %v1173
      %v1175 = vld [vmem:[%s386 + $0x4c] sm:$0x8]
      %v1176 = vsel %vm1147, 0, %v1175
      %1177 = vst [vmem:[%s386 + $0x4c] sm:$0x8] %v1176
      %v1178 = vld [vmem:[%s386 + $0x54] sm:$0x8]
      %v1179 = vsel %vm1147, 0, %v1178
      %1180 = vst [vmem:[%s386 + $0x54] sm:$0x8] %v1179
      %v1181 = vld [vmem:[%s386 + $0x5c] sm:$0x8]
      %v1182 = vsel %vm1147, 0, %v1181
      %1183 = vst [vmem:[%s386 + $0x5c] sm:$0x8] %v1182
      %v1184 = vld [vmem:[%s386 + $0x64] sm:$0x8]
      %v1185 = vsel %vm1147, 0, %v1184
      %1186 = vst [vmem:[%s386 + $0x64] sm:$0x8] %v1185
      %v1187 = vld [vmem:[%s386 + $0x6c] sm:$0x8]
      %v1188 = vsel %vm1147, 0, %v1187
      %1189 = vst [vmem:[%s386 + $0x6c] sm:$0x8] %v1188
      %v1190 = vld [vmem:[%s386 + $0x74] sm:$0x8]
      %v1191 = vsel %vm1147, 0, %v1190
      %1192 = vst [vmem:[%s386 + $0x74] sm:$0x8] %v1191
      %v1193 = vld [vmem:[%s386 + $0x7c] sm:$0x8]
      %v1194 = vsel %vm1147, 0, %v1193
      %1195 = vst [vmem:[%s386 + $0x7c] sm:$0x8] %v1194
      %v1196 = vld [vmem:[#allocation2] sm:$0xf]
      %v1197 = vld [vmem:[#allocation2 + $0x4] sm:$0xf]
      %v1198 = vld [vmem:[#allocation2 + $0x8] sm:$0xf]
      %v1199 = vld [vmem:[#allocation2 + $0xc] sm:$0xf]
      %v1200 = vld [vmem:[#allocation2 + $0x10] sm:$0xf]
      %v1201 = vld [vmem:[#allocation2 + $0x14] sm:$0xf]
      %v1202 = vld [vmem:[#allocation2 + $0x18] sm:$0xf]
      %v1203 = vld [vmem:[#allocation2 + $0x1c] sm:$0xf]
      %v1204 = vld [vmem:[#allocation2 + $0x20] sm:$0xf]
      %v1205 = vld [vmem:[#allocation2 + $0x24] sm:$0xf]
      %v1206 = vld [vmem:[#allocation2 + $0x28] sm:$0xf]
      %v1207 = vld [vmem:[#allocation2 + $0x2c] sm:$0xf]
      %v1208 = vld [vmem:[#allocation2 + $0x30] sm:$0xf]
      %v1209 = vld [vmem:[#allocation2 + $0x34] sm:$0xf]
      %v1210 = vld [vmem:[#allocation2 + $0x38] sm:$0xf]
      %v1211 = vld [vmem:[#allocation2 + $0x3c] sm:$0xf]
      %v1212 = vld [vmem:[#allocation2 + $0x40] sm:$0xf]
      %v1213 = vld [vmem:[#allocation2 + $0x44] sm:$0xf]
      %v1214 = vld [vmem:[#allocation2 + $0x48] sm:$0xf]
      %v1215 = vld [vmem:[#allocation2 + $0x4c] sm:$0xf]
      %v1216 = vld [vmem:[#allocation2 + $0x50] sm:$0xf]
      %v1217 = vld [vmem:[#allocation2 + $0x54] sm:$0xf]
      %v1218 = vld [vmem:[#allocation2 + $0x58] sm:$0xf]
      %v1219 = vld [vmem:[#allocation2 + $0x5c] sm:$0xf]
      %v1220 = vld [vmem:[#allocation2 + $0x60] sm:$0xf]
      %v1221 = vld [vmem:[#allocation2 + $0x64] sm:$0xf]
      %v1222 = vld [vmem:[#allocation2 + $0x68] sm:$0xf]
      %v1223 = vld [vmem:[#allocation2 + $0x6c] sm:$0xf]
      %v1224 = vld [vmem:[#allocation2 + $0x70] sm:$0xf]
      %v1225 = vld [vmem:[#allocation2 + $0x74] sm:$0xf]
      %v1226 = vld [vmem:[#allocation2 + $0x78] sm:$0xf]
      %v1227 = vld [vmem:[#allocation2 + $0x7c] sm:$0xf]
      %v1228 = vld [vmem:[%s1] sm:$0xf]
      %v1229 = vld [vmem:[%s1 + $0x4] sm:$0x3]
      %v1230 = vld [vmem:[%s386] sm:$0xf]
      %v1231 = vld [vmem:[%s386 + $0x4] sm:$0xf]
      %v1232 = vld [vmem:[%s386 + $0x8] sm:$0xf]
      %v1233 = vld [vmem:[%s386 + $0xc] sm:$0xf]
      %v1234 = vld [vmem:[%s386 + $0x10] sm:$0xf]
      %v1235 = vld [vmem:[%s386 + $0x14] sm:$0xf]
      %v1236 = vld [vmem:[%s386 + $0x18] sm:$0xf]
      %v1237 = vld [vmem:[%s386 + $0x1c] sm:$0xf]
      %v1238 = vld [vmem:[%s386 + $0x20] sm:$0xf]
      %v1239 = vld [vmem:[%s386 + $0x24] sm:$0xf]
      %v1240 = vld [vmem:[%s386 + $0x28] sm:$0xf]
      %v1241 = vld [vmem:[%s386 + $0x2c] sm:$0xf]
      %v1242 = vld [vmem:[%s386 + $0x30] sm:$0xf]
      %v1243 = vld [vmem:[%s386 + $0x34] sm:$0xf]
      %v1244 = vld [vmem:[%s386 + $0x38] sm:$0xf]
      %v1245 = vld [vmem:[%s386 + $0x3c] sm:$0xf]
      %v1246 = vld [vmem:[%s386 + $0x40] sm:$0xf]
      %v1247 = vld [vmem:[%s386 + $0x44] sm:$0xf]
      %v1248 = vld [vmem:[%s386 + $0x48] sm:$0xf]
      %v1249 = vld [vmem:[%s386 + $0x4c] sm:$0xf]
      %v1250 = vld [vmem:[%s386 + $0x50] sm:$0xf]
      %v1251 = vld [vmem:[%s386 + $0x54] sm:$0xf]
      %v1252 = vld [vmem:[%s386 + $0x58] sm:$0xf]
      %v1253 = vld [vmem:[%s386 + $0x5c] sm:$0xf]
      %v1254 = vld [vmem:[%s386 + $0x60] sm:$0xf]
      %v1255 = vld [vmem:[%s386 + $0x64] sm:$0xf]
      %v1256 = vld [vmem:[%s386 + $0x68] sm:$0xf]
      %v1257 = vld [vmem:[%s386 + $0x6c] sm:$0xf]
      %v1258 = vld [vmem:[%s386 + $0x70] sm:$0xf]
      %v1259 = vld [vmem:[%s386 + $0x74] sm:$0xf]
      %v1260 = vld [vmem:[%s386 + $0x78] sm:$0xf]
      %v1261 = vld [vmem:[%s386 + $0x7c] sm:$0xf]
      %v1262 = vld [vmem:[%s1 + $0x4] sm:$0xc]
      %v1263 = vld [vmem:[%s1 + $0x8] sm:$0xf]
      %v1296 = vunpack.c.l.b16 %v1230
      %v1297 = vunpack.c.l.b16 %v1231
      %v1298 = vunpack.c.l.b16 %v1232
      %v1299 = vunpack.c.l.b16 %v1233
      %v1300 = vunpack.c.l.b16 %v1234
      %v1301 = vunpack.c.l.b16 %v1235
      %v1302 = vunpack.c.l.b16 %v1236
      %v1303 = vunpack.c.l.b16 %v1237
      %v1304 = vunpack.c.l.b16 %v1238
      %v1305 = vunpack.c.l.b16 %v1239
      %v1306 = vunpack.c.l.b16 %v1240
      %v1307 = vunpack.c.l.b16 %v1241
      %v1308 = vunpack.c.l.b16 %v1242
      %v1309 = vunpack.c.l.b16 %v1243
      %v1310 = vunpack.c.l.b16 %v1244
      %v1311 = vunpack.c.l.b16 %v1245
      %v1312 = vunpack.c.l.b16 %v1246
      %v1313 = vunpack.c.l.b16 %v1247
      %v1314 = vunpack.c.l.b16 %v1248
      %v1315 = vunpack.c.l.b16 %v1249
      %v1316 = vunpack.c.l.b16 %v1250
      %v1317 = vunpack.c.l.b16 %v1251
      %v1318 = vunpack.c.l.b16 %v1252
      %v1319 = vunpack.c.l.b16 %v1253
      %v1320 = vunpack.c.l.b16 %v1254
      %v1321 = vunpack.c.l.b16 %v1255
      %v1322 = vunpack.c.l.b16 %v1256
      %v1323 = vunpack.c.l.b16 %v1257
      %v1324 = vunpack.c.l.b16 %v1258
      %v1325 = vunpack.c.l.b16 %v1259
      %v1326 = vunpack.c.l.b16 %v1260
      %v1327 = vunpack.c.l.b16 %v1261
      %v1328 = vpack.c.b16 %v1297, %v1296
      %v1329 = vpack.c.b16 %v1299, %v1298
      %v1330 = vpack.c.b16 %v1301, %v1300
      %v1331 = vpack.c.b16 %v1303, %v1302
      %v1332 = vpack.c.b16 %v1305, %v1304
      %v1333 = vpack.c.b16 %v1307, %v1306
      %v1334 = vpack.c.b16 %v1309, %v1308
      %v1335 = vpack.c.b16 %v1311, %v1310
      %v1336 = vpack.c.b16 %v1313, %v1312
      %v1337 = vpack.c.b16 %v1315, %v1314
      %v1338 = vpack.c.b16 %v1317, %v1316
      %v1339 = vpack.c.b16 %v1319, %v1318
      %v1340 = vpack.c.b16 %v1321, %v1320
      %v1341 = vpack.c.b16 %v1323, %v1322
      %v1342 = vpack.c.b16 %v1325, %v1324
      %v1343 = vpack.c.b16 %v1327, %v1326
      %v1346 = vunpack.c.l.b16 %v1262
      %v1347 = vunpack.c.l.b16 %v1263
      %v1348 = vpack.c.b16 %v1347, %v1346
      %v1349 = vrot.slane %v1348, 2
      %vm1350 = vcmask 97280
      %v1352 = vsel %vm1350, %v1328, 0
      %v1355 = vsel %vm1350, %v1329, 0
      %v1358 = vsel %vm1350, %v1330, 0
      %v1361 = vsel %vm1350, %v1331, 0
      %v1364 = vsel %vm1350, %v1332, 0
      %v1367 = vsel %vm1350, %v1333, 0
      %v1370 = vsel %vm1350, %v1334, 0
      %v1373 = vsel %vm1350, %v1335, 0
      %v1376 = vsel %vm1350, %v1336, 0
      %v1379 = vsel %vm1350, %v1337, 0
      %v1382 = vsel %vm1350, %v1338, 0
      %v1385 = vsel %vm1350, %v1339, 0
      %v1388 = vsel %vm1350, %v1340, 0
      %v1391 = vsel %vm1350, %v1341, 0
      %v1394 = vsel %vm1350, %v1342, 0
      %v1397 = vsel %vm1350, %v1343, 0
      %vm1399 = vcmask 1045504
      %v1401 = vsel %vm1399, %v1349, 0
      %1403 = vmatprep.subr.bf16.mxu0 0
      %1404 = vmatpush1.bf16.msra.mxu0 0
      %1405 = vmatprep.subr.bf16.mxu0 0
      %1406 = vmatpush1.bf16.msra.mxu0 0
      %1407 = vmatprep.subr.bf16.mxu0 0
      %1408 = vmatpush1.bf16.msra.mxu0 0
      %1409 = vmatprep.subr.bf16.mxu0 0
      %1410 = vmatpush1.bf16.msra.mxu0 0
      %1411 = vmatprep.subr.bf16.mxu0 0
      %1412 = vmatpush1.bf16.msra.mxu0 0
      %1413 = vmatprep.subr.bf16.mxu0 0
      %1414 = vmatpush1.bf16.msra.mxu0 0
      %1415 = vmatprep.subr.bf16.mxu0 0
      %1416 = vmatpush1.bf16.msra.mxu0 0
      %1417 = vmatprep.subr.bf16.mxu0 0
      %1418 = vmatpush1.bf16.msra.mxu0 %v1401
      %1419 = vmatprep.subr.bf16.mxu0 0
      %1420 = vmatpush2.bf16.msra.mxu0 0
      %1421 = vmatprep.subr.bf16.mxu0 0
      %1422 = vmatpush2.bf16.msra.mxu0 0
      %1423 = vmatprep.subr.bf16.mxu0 0
      %1424 = vmatpush2.bf16.msra.mxu0 0
      %1425 = vmatprep.subr.bf16.mxu0 0
      %1426 = vmatpush2.bf16.msra.mxu0 0
      %1427 = vmatprep.subr.bf16.mxu0 0
      %1428 = vmatpush2.bf16.msra.mxu0 0
      %1429 = vmatprep.subr.bf16.mxu0 0
      %1430 = vmatpush2.bf16.msra.mxu0 0
      %1431 = vmatprep.subr.bf16.mxu0 0
      %1432 = vmatpush2.bf16.msra.mxu0 0
      %1433 = vmatprep.subr.bf16.mxu0 0
      %1434 = vmatpush2.bf16.msra.mxu0 0
      %1435 = vmatprep.mubr.bf16.mxu0 0
      %1436 = vmatmul.mubr.bf16.gmra.mxu0 %v1352
      %v1437 = vpop.f32.mrf.mxu0
      %v1438 = vadd.f32 0.0, %v1437
      %v1439 = vpop.f32.mrf.mxu0
      %v1440 = vpop.f32.mrf.mxu0
      %v1441 = vadd.f32 0.0, %v1440
      %v1442 = vpop.f32.mrf.mxu0
      %1443 = vmatprep.mubr.bf16.mxu0 0
      %1444 = vmatmul.mubr.bf16.gmra.mxu0 %v1355
      %v1445 = vpop.f32.mrf.mxu0
      %v1446 = vadd.f32 0.0, %v1445
      %v1447 = vpop.f32.mrf.mxu0
      %v1448 = vpop.f32.mrf.mxu0
      %v1449 = vadd.f32 0.0, %v1448
      %v1450 = vpop.f32.mrf.mxu0
      %1451 = vmatprep.mubr.bf16.mxu0 0
      %1452 = vmatmul.mubr.bf16.gmra.mxu0 %v1358
      %v1453 = vpop.f32.mrf.mxu0
      %v1454 = vadd.f32 0.0, %v1453
      %v1455 = vpop.f32.mrf.mxu0
      %v1456 = vpop.f32.mrf.mxu0
      %v1457 = vadd.f32 0.0, %v1456
      %v1458 = vpop.f32.mrf.mxu0
      %1459 = vmatprep.mubr.bf16.mxu0 0
      %1460 = vmatmul.mubr.bf16.gmra.mxu0 %v1361
      %v1461 = vpop.f32.mrf.mxu0
      %v1462 = vadd.f32 0.0, %v1461
      %v1463 = vpop.f32.mrf.mxu0
      %v1464 = vpop.f32.mrf.mxu0
      %v1465 = vadd.f32 0.0, %v1464
      %v1466 = vpop.f32.mrf.mxu0
      %1467 = vmatprep.mubr.bf16.mxu0 0
      %1468 = vmatmul.mubr.bf16.gmra.mxu0 %v1364
      %v1469 = vpop.f32.mrf.mxu0
      %v1470 = vadd.f32 0.0, %v1469
      %v1471 = vpop.f32.mrf.mxu0
      %v1472 = vpop.f32.mrf.mxu0
      %v1473 = vadd.f32 0.0, %v1472
      %v1474 = vpop.f32.mrf.mxu0
      %1475 = vmatprep.mubr.bf16.mxu0 0
      %1476 = vmatmul.mubr.bf16.gmra.mxu0 %v1367
      %v1477 = vpop.f32.mrf.mxu0
      %v1478 = vadd.f32 0.0, %v1477
      %v1479 = vpop.f32.mrf.mxu0
      %v1480 = vpop.f32.mrf.mxu0
      %v1481 = vadd.f32 0.0, %v1480
      %v1482 = vpop.f32.mrf.mxu0
      %1483 = vmatprep.mubr.bf16.mxu0 0
      %1484 = vmatmul.mubr.bf16.gmra.mxu0 %v1370
      %v1485 = vpop.f32.mrf.mxu0
      %v1486 = vadd.f32 0.0, %v1485
      %v1487 = vpop.f32.mrf.mxu0
      %v1488 = vpop.f32.mrf.mxu0
      %v1489 = vadd.f32 0.0, %v1488
      %v1490 = vpop.f32.mrf.mxu0
      %1491 = vmatprep.mubr.bf16.mxu0 0
      %1492 = vmatmul.mubr.bf16.gmra.mxu0 %v1373
      %v1493 = vpop.f32.mrf.mxu0
      %v1494 = vadd.f32 0.0, %v1493
      %v1495 = vpop.f32.mrf.mxu0
      %v1496 = vpop.f32.mrf.mxu0
      %v1497 = vadd.f32 0.0, %v1496
      %v1498 = vpop.f32.mrf.mxu0
      %1499 = vmatprep.mubr.bf16.mxu0 0
      %1500 = vmatmul.mubr.bf16.gmra.mxu0 %v1376
      %v1501 = vpop.f32.mrf.mxu0
      %v1502 = vadd.f32 0.0, %v1501
      %v1503 = vpop.f32.mrf.mxu0
      %v1504 = vpop.f32.mrf.mxu0
      %v1505 = vadd.f32 0.0, %v1504
      %v1506 = vpop.f32.mrf.mxu0
      %1507 = vmatprep.mubr.bf16.mxu0 0
      %1508 = vmatmul.mubr.bf16.gmra.mxu0 %v1379
      %v1509 = vpop.f32.mrf.mxu0
      %v1510 = vadd.f32 0.0, %v1509
      %v1511 = vpop.f32.mrf.mxu0
      %v1512 = vpop.f32.mrf.mxu0
      %v1513 = vadd.f32 0.0, %v1512
      %v1514 = vpop.f32.mrf.mxu0
      %1515 = vmatprep.mubr.bf16.mxu0 0
      %1516 = vmatmul.mubr.bf16.gmra.mxu0 %v1382
      %v1517 = vpop.f32.mrf.mxu0
      %v1518 = vadd.f32 0.0, %v1517
      %v1519 = vpop.f32.mrf.mxu0
      %v1520 = vpop.f32.mrf.mxu0
      %v1521 = vadd.f32 0.0, %v1520
      %v1522 = vpop.f32.mrf.mxu0
      %1523 = vmatprep.mubr.bf16.mxu0 0
      %1524 = vmatmul.mubr.bf16.gmra.mxu0 %v1385
      %v1525 = vpop.f32.mrf.mxu0
      %v1526 = vadd.f32 0.0, %v1525
      %v1527 = vpop.f32.mrf.mxu0
      %v1528 = vpop.f32.mrf.mxu0
      %v1529 = vadd.f32 0.0, %v1528
      %v1530 = vpop.f32.mrf.mxu0
      %1531 = vmatprep.mubr.bf16.mxu0 0
      %1532 = vmatmul.mubr.bf16.gmra.mxu0 %v1388
      %v1533 = vpop.f32.mrf.mxu0
      %v1534 = vadd.f32 0.0, %v1533
      %v1535 = vpop.f32.mrf.mxu0
      %v1536 = vpop.f32.mrf.mxu0
      %v1537 = vadd.f32 0.0, %v1536
      %v1538 = vpop.f32.mrf.mxu0
      %1539 = vmatprep.mubr.bf16.mxu0 0
      %1540 = vmatmul.mubr.bf16.gmra.mxu0 %v1391
      %v1541 = vpop.f32.mrf.mxu0
      %v1542 = vadd.f32 0.0, %v1541
      %v1543 = vpop.f32.mrf.mxu0
      %v1544 = vpop.f32.mrf.mxu0
      %v1545 = vadd.f32 0.0, %v1544
      %v1546 = vpop.f32.mrf.mxu0
      %1547 = vmatprep.mubr.bf16.mxu0 0
      %1548 = vmatmul.mubr.bf16.gmra.mxu0 %v1394
      %v1549 = vpop.f32.mrf.mxu0
      %v1550 = vadd.f32 0.0, %v1549
      %v1551 = vpop.f32.mrf.mxu0
      %v1552 = vpop.f32.mrf.mxu0
      %v1553 = vadd.f32 0.0, %v1552
      %v1554 = vpop.f32.mrf.mxu0
      %1555 = vmatprep.mubr.bf16.mxu0 0
      %1556 = vmatmul.mubr.bf16.gmra.mxu0 %v1397
      %v1557 = vpop.f32.mrf.mxu0
      %v1558 = vadd.f32 0.0, %v1557
      %v1559 = vpop.f32.mrf.mxu0
      %v1560 = vpop.f32.mrf.mxu0
      %v1561 = vadd.f32 0.0, %v1560
      %v1562 = vpop.f32.mrf.mxu0
      %1563 = vdwg.mxu0
      %v1596 = vunpack.c.l.b16 %v1196
      %v1597 = vunpack.c.l.b16 %v1197
      %v1598 = vunpack.c.l.b16 %v1198
      %v1599 = vunpack.c.l.b16 %v1199
      %v1600 = vunpack.c.l.b16 %v1200
      %v1601 = vunpack.c.l.b16 %v1201
      %v1602 = vunpack.c.l.b16 %v1202
      %v1603 = vunpack.c.l.b16 %v1203
      %v1604 = vunpack.c.l.b16 %v1204
      %v1605 = vunpack.c.l.b16 %v1205
      %v1606 = vunpack.c.l.b16 %v1206
      %v1607 = vunpack.c.l.b16 %v1207
      %v1608 = vunpack.c.l.b16 %v1208
      %v1609 = vunpack.c.l.b16 %v1209
      %v1610 = vunpack.c.l.b16 %v1210
      %v1611 = vunpack.c.l.b16 %v1211
      %v1612 = vunpack.c.l.b16 %v1212
      %v1613 = vunpack.c.l.b16 %v1213
      %v1614 = vunpack.c.l.b16 %v1214
      %v1615 = vunpack.c.l.b16 %v1215
      %v1616 = vunpack.c.l.b16 %v1216
      %v1617 = vunpack.c.l.b16 %v1217
      %v1618 = vunpack.c.l.b16 %v1218
      %v1619 = vunpack.c.l.b16 %v1219
      %v1620 = vunpack.c.l.b16 %v1220
      %v1621 = vunpack.c.l.b16 %v1221
      %v1622 = vunpack.c.l.b16 %v1222
      %v1623 = vunpack.c.l.b16 %v1223
      %v1624 = vunpack.c.l.b16 %v1224
      %v1625 = vunpack.c.l.b16 %v1225
      %v1626 = vunpack.c.l.b16 %v1226
      %v1627 = vunpack.c.l.b16 %v1227
      %v1628 = vpack.c.b16 %v1597, %v1596
      %v1629 = vpack.c.b16 %v1599, %v1598
      %v1630 = vpack.c.b16 %v1601, %v1600
      %v1631 = vpack.c.b16 %v1603, %v1602
      %v1632 = vpack.c.b16 %v1605, %v1604
      %v1633 = vpack.c.b16 %v1607, %v1606
      %v1634 = vpack.c.b16 %v1609, %v1608
      %v1635 = vpack.c.b16 %v1611, %v1610
      %v1636 = vpack.c.b16 %v1613, %v1612
      %v1637 = vpack.c.b16 %v1615, %v1614
      %v1638 = vpack.c.b16 %v1617, %v1616
      %v1639 = vpack.c.b16 %v1619, %v1618
      %v1640 = vpack.c.b16 %v1621, %v1620
      %v1641 = vpack.c.b16 %v1623, %v1622
      %v1642 = vpack.c.b16 %v1625, %v1624
      %v1643 = vpack.c.b16 %v1627, %v1626
      %v1646 = vunpack.c.l.b16 %v1228
      %v1647 = vunpack.c.l.b16 %v1229
      %v1648 = vpack.c.b16 %v1647, %v1646
      %v1650 = vsel %vm1350, %v1628, 0
      %v1653 = vsel %vm1350, %v1629, 0
      %v1656 = vsel %vm1350, %v1630, 0
      %v1659 = vsel %vm1350, %v1631, 0
      %v1662 = vsel %vm1350, %v1632, 0
      %v1665 = vsel %vm1350, %v1633, 0
      %v1668 = vsel %vm1350, %v1634, 0
      %v1671 = vsel %vm1350, %v1635, 0
      %v1674 = vsel %vm1350, %v1636, 0
      %v1677 = vsel %vm1350, %v1637, 0
      %v1680 = vsel %vm1350, %v1638, 0
      %v1683 = vsel %vm1350, %v1639, 0
      %v1686 = vsel %vm1350, %v1640, 0
      %v1689 = vsel %vm1350, %v1641, 0
      %v1692 = vsel %vm1350, %v1642, 0
      %v1695 = vsel %vm1350, %v1643, 0
      %v1698 = vsel %vm1399, %v1648, 0
      %1700 = vmatprep.subr.bf16.mxu0 0
      %1701 = vmatpush1.bf16.msra.mxu0 0
      %1702 = vmatprep.subr.bf16.mxu0 0
      %1703 = vmatpush1.bf16.msra.mxu0 0
      %1704 = vmatprep.subr.bf16.mxu0 0
      %1705 = vmatpush1.bf16.msra.mxu0 0
      %1706 = vmatprep.subr.bf16.mxu0 0
      %1707 = vmatpush1.bf16.msra.mxu0 0
      %1708 = vmatprep.subr.bf16.mxu0 0
      %1709 = vmatpush1.bf16.msra.mxu0 0
      %1710 = vmatprep.subr.bf16.mxu0 0
      %1711 = vmatpush1.bf16.msra.mxu0 0
      %1712 = vmatprep.subr.bf16.mxu0 0
      %1713 = vmatpush1.bf16.msra.mxu0 0
      %1714 = vmatprep.subr.bf16.mxu0 0
      %1715 = vmatpush1.bf16.msra.mxu0 %v1698
      %1716 = vmatprep.subr.bf16.mxu0 0
      %1717 = vmatpush2.bf16.msra.mxu0 0
      %1718 = vmatprep.subr.bf16.mxu0 0
      %1719 = vmatpush2.bf16.msra.mxu0 0
      %1720 = vmatprep.subr.bf16.mxu0 0
      %1721 = vmatpush2.bf16.msra.mxu0 0
      %1722 = vmatprep.subr.bf16.mxu0 0
      %1723 = vmatpush2.bf16.msra.mxu0 0
      %1724 = vmatprep.subr.bf16.mxu0 0
      %1725 = vmatpush2.bf16.msra.mxu0 0
      %1726 = vmatprep.subr.bf16.mxu0 0
      %1727 = vmatpush2.bf16.msra.mxu0 0
      %1728 = vmatprep.subr.bf16.mxu0 0
      %1729 = vmatpush2.bf16.msra.mxu0 0
      %1730 = vmatprep.subr.bf16.mxu0 0
      %1731 = vmatpush2.bf16.msra.mxu0 0
      %1732 = vmatprep.mubr.bf16.mxu0 0
      %1733 = vmatmul.mubr.bf16.gmra.mxu0 %v1650
      %v1734 = vpop.f32.mrf.mxu0
      %v1735 = vadd.f32 %v1438, %v1734
      %v1736 = vpop.f32.mrf.mxu0
      %v1737 = vpop.f32.mrf.mxu0
      %v1738 = vadd.f32 %v1441, %v1737
      %v1739 = vpop.f32.mrf.mxu0
      %1740 = vmatprep.mubr.bf16.mxu0 0
      %1741 = vmatmul.mubr.bf16.gmra.mxu0 %v1653
      %v1742 = vpop.f32.mrf.mxu0
      %v1743 = vadd.f32 %v1446, %v1742
      %v1744 = vpop.f32.mrf.mxu0
      %v1745 = vpop.f32.mrf.mxu0
      %v1746 = vadd.f32 %v1449, %v1745
      %v1747 = vpop.f32.mrf.mxu0
      %1748 = vmatprep.mubr.bf16.mxu0 0
      %1749 = vmatmul.mubr.bf16.gmra.mxu0 %v1656
      %v1750 = vpop.f32.mrf.mxu0
      %v1751 = vadd.f32 %v1454, %v1750
      %v1752 = vpop.f32.mrf.mxu0
      %v1753 = vpop.f32.mrf.mxu0
      %v1754 = vadd.f32 %v1457, %v1753
      %v1755 = vpop.f32.mrf.mxu0
      %1756 = vmatprep.mubr.bf16.mxu0 0
      %1757 = vmatmul.mubr.bf16.gmra.mxu0 %v1659
      %v1758 = vpop.f32.mrf.mxu0
      %v1759 = vadd.f32 %v1462, %v1758
      %v1760 = vpop.f32.mrf.mxu0
      %v1761 = vpop.f32.mrf.mxu0
      %v1762 = vadd.f32 %v1465, %v1761
      %v1763 = vpop.f32.mrf.mxu0
      %1764 = vmatprep.mubr.bf16.mxu0 0
      %1765 = vmatmul.mubr.bf16.gmra.mxu0 %v1662
      %v1766 = vpop.f32.mrf.mxu0
      %v1767 = vadd.f32 %v1470, %v1766
      %v1768 = vpop.f32.mrf.mxu0
      %v1769 = vpop.f32.mrf.mxu0
      %v1770 = vadd.f32 %v1473, %v1769
      %v1771 = vpop.f32.mrf.mxu0
      %1772 = vmatprep.mubr.bf16.mxu0 0
      %1773 = vmatmul.mubr.bf16.gmra.mxu0 %v1665
      %v1774 = vpop.f32.mrf.mxu0
      %v1775 = vadd.f32 %v1478, %v1774
      %v1776 = vpop.f32.mrf.mxu0
      %v1777 = vpop.f32.mrf.mxu0
      %v1778 = vadd.f32 %v1481, %v1777
      %v1779 = vpop.f32.mrf.mxu0
      %1780 = vmatprep.mubr.bf16.mxu0 0
      %1781 = vmatmul.mubr.bf16.gmra.mxu0 %v1668
      %v1782 = vpop.f32.mrf.mxu0
      %v1783 = vadd.f32 %v1486, %v1782
      %v1784 = vpop.f32.mrf.mxu0
      %v1785 = vpop.f32.mrf.mxu0
      %v1786 = vadd.f32 %v1489, %v1785
      %v1787 = vpop.f32.mrf.mxu0
      %1788 = vmatprep.mubr.bf16.mxu0 0
      %1789 = vmatmul.mubr.bf16.gmra.mxu0 %v1671
      %v1790 = vpop.f32.mrf.mxu0
      %v1791 = vadd.f32 %v1494, %v1790
      %v1792 = vpop.f32.mrf.mxu0
      %v1793 = vpop.f32.mrf.mxu0
      %v1794 = vadd.f32 %v1497, %v1793
      %v1795 = vpop.f32.mrf.mxu0
      %1796 = vmatprep.mubr.bf16.mxu0 0
      %1797 = vmatmul.mubr.bf16.gmra.mxu0 %v1674
      %v1798 = vpop.f32.mrf.mxu0
      %v1799 = vadd.f32 %v1502, %v1798
      %v1800 = vpop.f32.mrf.mxu0
      %v1801 = vpop.f32.mrf.mxu0
      %v1802 = vadd.f32 %v1505, %v1801
      %v1803 = vpop.f32.mrf.mxu0
      %1804 = vmatprep.mubr.bf16.mxu0 0
      %1805 = vmatmul.mubr.bf16.gmra.mxu0 %v1677
      %v1806 = vpop.f32.mrf.mxu0
      %v1807 = vadd.f32 %v1510, %v1806
      %v1808 = vpop.f32.mrf.mxu0
      %v1809 = vpop.f32.mrf.mxu0
      %v1810 = vadd.f32 %v1513, %v1809
      %v1811 = vpop.f32.mrf.mxu0
      %1812 = vmatprep.mubr.bf16.mxu0 0
      %1813 = vmatmul.mubr.bf16.gmra.mxu0 %v1680
      %v1814 = vpop.f32.mrf.mxu0
      %v1815 = vadd.f32 %v1518, %v1814
      %v1816 = vpop.f32.mrf.mxu0
      %v1817 = vpop.f32.mrf.mxu0
      %v1818 = vadd.f32 %v1521, %v1817
      %v1819 = vpop.f32.mrf.mxu0
      %1820 = vmatprep.mubr.bf16.mxu0 0
      %1821 = vmatmul.mubr.bf16.gmra.mxu0 %v1683
      %v1822 = vpop.f32.mrf.mxu0
      %v1823 = vadd.f32 %v1526, %v1822
      %v1824 = vpop.f32.mrf.mxu0
      %v1825 = vpop.f32.mrf.mxu0
      %v1826 = vadd.f32 %v1529, %v1825
      %v1827 = vpop.f32.mrf.mxu0
      %1828 = vmatprep.mubr.bf16.mxu0 0
      %1829 = vmatmul.mubr.bf16.gmra.mxu0 %v1686
      %v1830 = vpop.f32.mrf.mxu0
      %v1831 = vadd.f32 %v1534, %v1830
      %v1832 = vpop.f32.mrf.mxu0
      %v1833 = vpop.f32.mrf.mxu0
      %v1834 = vadd.f32 %v1537, %v1833
      %v1835 = vpop.f32.mrf.mxu0
      %1836 = vmatprep.mubr.bf16.mxu0 0
      %1837 = vmatmul.mubr.bf16.gmra.mxu0 %v1689
      %v1838 = vpop.f32.mrf.mxu0
      %v1839 = vadd.f32 %v1542, %v1838
      %v1840 = vpop.f32.mrf.mxu0
      %v1841 = vpop.f32.mrf.mxu0
      %v1842 = vadd.f32 %v1545, %v1841
      %v1843 = vpop.f32.mrf.mxu0
      %1844 = vmatprep.mubr.bf16.mxu0 0
      %1845 = vmatmul.mubr.bf16.gmra.mxu0 %v1692
      %v1846 = vpop.f32.mrf.mxu0
      %v1847 = vadd.f32 %v1550, %v1846
      %v1848 = vpop.f32.mrf.mxu0
      %v1849 = vpop.f32.mrf.mxu0
      %v1850 = vadd.f32 %v1553, %v1849
      %v1851 = vpop.f32.mrf.mxu0
      %1852 = vmatprep.mubr.bf16.mxu0 0
      %1853 = vmatmul.mubr.bf16.gmra.mxu0 %v1695
      %v1854 = vpop.f32.mrf.mxu0
      %v1855 = vadd.f32 %v1558, %v1854
      %v1856 = vpop.f32.mrf.mxu0
      %v1857 = vpop.f32.mrf.mxu0
      %v1858 = vadd.f32 %v1561, %v1857
      %v1859 = vpop.f32.mrf.mxu0
      %1860 = vdwg.mxu0
      %s1861 = scalar_lea.vmem [#allocation2], 16
      %v1862 = vld [vmem:[%s1861] sm:$0xf]
      %v1863 = vld [vmem:[%s1861 + $0x4] sm:$0xf]
      %v1864 = vld [vmem:[%s1861 + $0x8] sm:$0xf]
      %v1865 = vld [vmem:[%s1861 + $0xc] sm:$0xf]
      %v1866 = vld [vmem:[%s1861 + $0x10] sm:$0xf]
      %v1867 = vld [vmem:[%s1861 + $0x14] sm:$0xf]
      %v1868 = vld [vmem:[%s1861 + $0x18] sm:$0xf]
      %v1869 = vld [vmem:[%s1861 + $0x1c] sm:$0xf]
      %v1870 = vld [vmem:[%s1861 + $0x20] sm:$0xf]
      %v1871 = vld [vmem:[%s1861 + $0x24] sm:$0xf]
      %v1872 = vld [vmem:[%s1861 + $0x28] sm:$0xf]
      %v1873 = vld [vmem:[%s1861 + $0x2c] sm:$0xf]
      %v1874 = vld [vmem:[%s1861 + $0x30] sm:$0xf]
      %v1875 = vld [vmem:[%s1861 + $0x34] sm:$0xf]
      %v1876 = vld [vmem:[%s1861 + $0x38] sm:$0xf]
      %v1877 = vld [vmem:[%s1861 + $0x3c] sm:$0xf]
      %v1878 = vld [vmem:[%s1861 + $0x40] sm:$0xf]
      %v1879 = vld [vmem:[%s1861 + $0x44] sm:$0xf]
      %v1880 = vld [vmem:[%s1861 + $0x48] sm:$0xf]
      %v1881 = vld [vmem:[%s1861 + $0x4c] sm:$0xf]
      %v1882 = vld [vmem:[%s1861 + $0x50] sm:$0xf]
      %v1883 = vld [vmem:[%s1861 + $0x54] sm:$0xf]
      %v1884 = vld [vmem:[%s1861 + $0x58] sm:$0xf]
      %v1885 = vld [vmem:[%s1861 + $0x5c] sm:$0xf]
      %v1886 = vld [vmem:[%s1861 + $0x60] sm:$0xf]
      %v1887 = vld [vmem:[%s1861 + $0x64] sm:$0xf]
      %v1888 = vld [vmem:[%s1861 + $0x68] sm:$0xf]
      %v1889 = vld [vmem:[%s1861 + $0x6c] sm:$0xf]
      %v1890 = vld [vmem:[%s1861 + $0x70] sm:$0xf]
      %v1891 = vld [vmem:[%s1861 + $0x74] sm:$0xf]
      %v1892 = vld [vmem:[%s1861 + $0x78] sm:$0xf]
      %v1893 = vld [vmem:[%s1861 + $0x7c] sm:$0xf]
      %v1894 = vld [vmem:[%s1 + $0xc] sm:$0xf]
      %v1895 = vld [vmem:[%s1 + $0x10] sm:$0x3]
      %v1928 = vunpack.c.l.b16 %v1862
      %v1929 = vunpack.c.l.b16 %v1863
      %v1930 = vunpack.c.l.b16 %v1864
      %v1931 = vunpack.c.l.b16 %v1865
      %v1932 = vunpack.c.l.b16 %v1866
      %v1933 = vunpack.c.l.b16 %v1867
      %v1934 = vunpack.c.l.b16 %v1868
      %v1935 = vunpack.c.l.b16 %v1869
      %v1936 = vunpack.c.l.b16 %v1870
      %v1937 = vunpack.c.l.b16 %v1871
      %v1938 = vunpack.c.l.b16 %v1872
      %v1939 = vunpack.c.l.b16 %v1873
      %v1940 = vunpack.c.l.b16 %v1874
      %v1941 = vunpack.c.l.b16 %v1875
      %v1942 = vunpack.c.l.b16 %v1876
      %v1943 = vunpack.c.l.b16 %v1877
      %v1944 = vunpack.c.l.b16 %v1878
      %v1945 = vunpack.c.l.b16 %v1879
      %v1946 = vunpack.c.l.b16 %v1880
      %v1947 = vunpack.c.l.b16 %v1881
      %v1948 = vunpack.c.l.b16 %v1882
      %v1949 = vunpack.c.l.b16 %v1883
      %v1950 = vunpack.c.l.b16 %v1884
      %v1951 = vunpack.c.l.b16 %v1885
      %v1952 = vunpack.c.l.b16 %v1886
      %v1953 = vunpack.c.l.b16 %v1887
      %v1954 = vunpack.c.l.b16 %v1888
      %v1955 = vunpack.c.l.b16 %v1889
      %v1956 = vunpack.c.l.b16 %v1890
      %v1957 = vunpack.c.l.b16 %v1891
      %v1958 = vunpack.c.l.b16 %v1892
      %v1959 = vunpack.c.l.b16 %v1893
      %v1960 = vpack.c.b16 %v1929, %v1928
      %v1961 = vpack.c.b16 %v1931, %v1930
      %v1962 = vpack.c.b16 %v1933, %v1932
      %v1963 = vpack.c.b16 %v1935, %v1934
      %v1964 = vpack.c.b16 %v1937, %v1936
      %v1965 = vpack.c.b16 %v1939, %v1938
      %v1966 = vpack.c.b16 %v1941, %v1940
      %v1967 = vpack.c.b16 %v1943, %v1942
      %v1968 = vpack.c.b16 %v1945, %v1944
      %v1969 = vpack.c.b16 %v1947, %v1946
      %v1970 = vpack.c.b16 %v1949, %v1948
      %v1971 = vpack.c.b16 %v1951, %v1950
      %v1972 = vpack.c.b16 %v1953, %v1952
      %v1973 = vpack.c.b16 %v1955, %v1954
      %v1974 = vpack.c.b16 %v1957, %v1956
      %v1975 = vpack.c.b16 %v1959, %v1958
      %v1978 = vunpack.c.l.b16 %v1894
      %v1979 = vunpack.c.l.b16 %v1895
      %v1980 = vpack.c.b16 %v1979, %v1978
      %v1982 = vsel %vm1350, %v1960, 0
      %v1985 = vsel %vm1350, %v1961, 0
      %v1988 = vsel %vm1350, %v1962, 0
      %v1991 = vsel %vm1350, %v1963, 0
      %v1994 = vsel %vm1350, %v1964, 0
      %v1997 = vsel %vm1350, %v1965, 0
      %v2000 = vsel %vm1350, %v1966, 0
      %v2003 = vsel %vm1350, %v1967, 0
      %v2006 = vsel %vm1350, %v1968, 0
      %v2009 = vsel %vm1350, %v1969, 0
      %v2012 = vsel %vm1350, %v1970, 0
      %v2015 = vsel %vm1350, %v1971, 0
      %v2018 = vsel %vm1350, %v1972, 0
      %v2021 = vsel %vm1350, %v1973, 0
      %v2024 = vsel %vm1350, %v1974, 0
      %v2027 = vsel %vm1350, %v1975, 0
      %v2030 = vsel %vm1399, %v1980, 0
      %2032 = vmatprep.subr.bf16.mxu0 0
      %2033 = vmatpush1.bf16.msra.mxu0 0
      %2034 = vmatprep.subr.bf16.mxu0 0
      %2035 = vmatpush1.bf16.msra.mxu0 0
      %2036 = vmatprep.subr.bf16.mxu0 0
      %2037 = vmatpush1.bf16.msra.mxu0 0
      %2038 = vmatprep.subr.bf16.mxu0 0
      %2039 = vmatpush1.bf16.msra.mxu0 0
      %2040 = vmatprep.subr.bf16.mxu0 0
      %2041 = vmatpush1.bf16.msra.mxu0 0
      %2042 = vmatprep.subr.bf16.mxu0 0
      %2043 = vmatpush1.bf16.msra.mxu0 0
      %2044 = vmatprep.subr.bf16.mxu0 0
      %2045 = vmatpush1.bf16.msra.mxu0 0
      %2046 = vmatprep.subr.bf16.mxu0 0
      %2047 = vmatpush1.bf16.msra.mxu0 %v2030
      %2048 = vmatprep.subr.bf16.mxu0 0
      %2049 = vmatpush2.bf16.msra.mxu0 0
      %2050 = vmatprep.subr.bf16.mxu0 0
      %2051 = vmatpush2.bf16.msra.mxu0 0
      %2052 = vmatprep.subr.bf16.mxu0 0
      %2053 = vmatpush2.bf16.msra.mxu0 0
      %2054 = vmatprep.subr.bf16.mxu0 0
      %2055 = vmatpush2.bf16.msra.mxu0 0
      %2056 = vmatprep.subr.bf16.mxu0 0
      %2057 = vmatpush2.bf16.msra.mxu0 0
      %2058 = vmatprep.subr.bf16.mxu0 0
      %2059 = vmatpush2.bf16.msra.mxu0 0
      %2060 = vmatprep.subr.bf16.mxu0 0
      %2061 = vmatpush2.bf16.msra.mxu0 0
      %2062 = vmatprep.subr.bf16.mxu0 0
      %2063 = vmatpush2.bf16.msra.mxu0 0
      %2064 = vmatprep.mubr.bf16.mxu0 0
      %2065 = vmatmul.mubr.bf16.gmra.mxu0 %v1982
      %v2066 = vpop.f32.mrf.mxu0
      %v2067 = vadd.f32 0.0, %v2066
      %v2068 = vpop.f32.mrf.mxu0
      %v2069 = vpop.f32.mrf.mxu0
      %v2070 = vadd.f32 0.0, %v2069
      %v2071 = vpop.f32.mrf.mxu0
      %2072 = vmatprep.mubr.bf16.mxu0 0
      %2073 = vmatmul.mubr.bf16.gmra.mxu0 %v1985
      %v2074 = vpop.f32.mrf.mxu0
      %v2075 = vadd.f32 0.0, %v2074
      %v2076 = vpop.f32.mrf.mxu0
      %v2077 = vpop.f32.mrf.mxu0
      %v2078 = vadd.f32 0.0, %v2077
      %v2079 = vpop.f32.mrf.mxu0
      %2080 = vmatprep.mubr.bf16.mxu0 0
      %2081 = vmatmul.mubr.bf16.gmra.mxu0 %v1988
      %v2082 = vpop.f32.mrf.mxu0
      %v2083 = vadd.f32 0.0, %v2082
      %v2084 = vpop.f32.mrf.mxu0
      %v2085 = vpop.f32.mrf.mxu0
      %v2086 = vadd.f32 0.0, %v2085
      %v2087 = vpop.f32.mrf.mxu0
      %2088 = vmatprep.mubr.bf16.mxu0 0
      %2089 = vmatmul.mubr.bf16.gmra.mxu0 %v1991
      %v2090 = vpop.f32.mrf.mxu0
      %v2091 = vadd.f32 0.0, %v2090
      %v2092 = vpop.f32.mrf.mxu0
      %v2093 = vpop.f32.mrf.mxu0
      %v2094 = vadd.f32 0.0, %v2093
      %v2095 = vpop.f32.mrf.mxu0
      %2096 = vmatprep.mubr.bf16.mxu0 0
      %2097 = vmatmul.mubr.bf16.gmra.mxu0 %v1994
      %v2098 = vpop.f32.mrf.mxu0
      %v2099 = vadd.f32 0.0, %v2098
      %v2100 = vpop.f32.mrf.mxu0
      %v2101 = vpop.f32.mrf.mxu0
      %v2102 = vadd.f32 0.0, %v2101
      %v2103 = vpop.f32.mrf.mxu0
      %2104 = vmatprep.mubr.bf16.mxu0 0
      %2105 = vmatmul.mubr.bf16.gmra.mxu0 %v1997
      %v2106 = vpop.f32.mrf.mxu0
      %v2107 = vadd.f32 0.0, %v2106
      %v2108 = vpop.f32.mrf.mxu0
      %v2109 = vpop.f32.mrf.mxu0
      %v2110 = vadd.f32 0.0, %v2109
      %v2111 = vpop.f32.mrf.mxu0
      %2112 = vmatprep.mubr.bf16.mxu0 0
      %2113 = vmatmul.mubr.bf16.gmra.mxu0 %v2000
      %v2114 = vpop.f32.mrf.mxu0
      %v2115 = vadd.f32 0.0, %v2114
      %v2116 = vpop.f32.mrf.mxu0
      %v2117 = vpop.f32.mrf.mxu0
      %v2118 = vadd.f32 0.0, %v2117
      %v2119 = vpop.f32.mrf.mxu0
      %2120 = vmatprep.mubr.bf16.mxu0 0
      %2121 = vmatmul.mubr.bf16.gmra.mxu0 %v2003
      %v2122 = vpop.f32.mrf.mxu0
      %v2123 = vadd.f32 0.0, %v2122
      %v2124 = vpop.f32.mrf.mxu0
      %v2125 = vpop.f32.mrf.mxu0
      %v2126 = vadd.f32 0.0, %v2125
      %v2127 = vpop.f32.mrf.mxu0
      %2128 = vmatprep.mubr.bf16.mxu0 0
      %2129 = vmatmul.mubr.bf16.gmra.mxu0 %v2006
      %v2130 = vpop.f32.mrf.mxu0
      %v2131 = vadd.f32 0.0, %v2130
      %v2132 = vpop.f32.mrf.mxu0
      %v2133 = vpop.f32.mrf.mxu0
      %v2134 = vadd.f32 0.0, %v2133
      %v2135 = vpop.f32.mrf.mxu0
      %2136 = vmatprep.mubr.bf16.mxu0 0
      %2137 = vmatmul.mubr.bf16.gmra.mxu0 %v2009
      %v2138 = vpop.f32.mrf.mxu0
      %v2139 = vadd.f32 0.0, %v2138
      %v2140 = vpop.f32.mrf.mxu0
      %v2141 = vpop.f32.mrf.mxu0
      %v2142 = vadd.f32 0.0, %v2141
      %v2143 = vpop.f32.mrf.mxu0
      %2144 = vmatprep.mubr.bf16.mxu0 0
      %2145 = vmatmul.mubr.bf16.gmra.mxu0 %v2012
      %v2146 = vpop.f32.mrf.mxu0
      %v2147 = vadd.f32 0.0, %v2146
      %v2148 = vpop.f32.mrf.mxu0
      %v2149 = vpop.f32.mrf.mxu0
      %v2150 = vadd.f32 0.0, %v2149
      %v2151 = vpop.f32.mrf.mxu0
      %2152 = vmatprep.mubr.bf16.mxu0 0
      %2153 = vmatmul.mubr.bf16.gmra.mxu0 %v2015
      %v2154 = vpop.f32.mrf.mxu0
      %v2155 = vadd.f32 0.0, %v2154
      %v2156 = vpop.f32.mrf.mxu0
      %v2157 = vpop.f32.mrf.mxu0
      %v2158 = vadd.f32 0.0, %v2157
      %v2159 = vpop.f32.mrf.mxu0
      %2160 = vmatprep.mubr.bf16.mxu0 0
      %2161 = vmatmul.mubr.bf16.gmra.mxu0 %v2018
      %v2162 = vpop.f32.mrf.mxu0
      %v2163 = vadd.f32 0.0, %v2162
      %v2164 = vpop.f32.mrf.mxu0
      %v2165 = vpop.f32.mrf.mxu0
      %v2166 = vadd.f32 0.0, %v2165
      %v2167 = vpop.f32.mrf.mxu0
      %2168 = vmatprep.mubr.bf16.mxu0 0
      %2169 = vmatmul.mubr.bf16.gmra.mxu0 %v2021
      %v2170 = vpop.f32.mrf.mxu0
      %v2171 = vadd.f32 0.0, %v2170
      %v2172 = vpop.f32.mrf.mxu0
      %v2173 = vpop.f32.mrf.mxu0
      %v2174 = vadd.f32 0.0, %v2173
      %v2175 = vpop.f32.mrf.mxu0
      %2176 = vmatprep.mubr.bf16.mxu0 0
      %2177 = vmatmul.mubr.bf16.gmra.mxu0 %v2024
      %v2178 = vpop.f32.mrf.mxu0
      %v2179 = vadd.f32 0.0, %v2178
      %v2180 = vpop.f32.mrf.mxu0
      %v2181 = vpop.f32.mrf.mxu0
      %v2182 = vadd.f32 0.0, %v2181
      %v2183 = vpop.f32.mrf.mxu0
      %2184 = vmatprep.mubr.bf16.mxu0 0
      %2185 = vmatmul.mubr.bf16.gmra.mxu0 %v2027
      %v2186 = vpop.f32.mrf.mxu0
      %v2187 = vadd.f32 0.0, %v2186
      %v2188 = vpop.f32.mrf.mxu0
      %v2189 = vpop.f32.mrf.mxu0
      %v2190 = vadd.f32 0.0, %v2189
      %v2191 = vpop.f32.mrf.mxu0
      %2192 = vdwg.mxu0
      %v2193 = vadd.f32 %v1735, %v2067
      %v2194 = vadd.f32 %v1738, %v2070
      %v2195 = vadd.f32 %v1743, %v2075
      %v2196 = vadd.f32 %v1746, %v2078
      %v2197 = vadd.f32 %v1751, %v2083
      %v2198 = vadd.f32 %v1754, %v2086
      %v2199 = vadd.f32 %v1759, %v2091
      %v2200 = vadd.f32 %v1762, %v2094
      %v2201 = vadd.f32 %v1767, %v2099
      %v2202 = vadd.f32 %v1770, %v2102
      %v2203 = vadd.f32 %v1775, %v2107
      %v2204 = vadd.f32 %v1778, %v2110
      %v2205 = vadd.f32 %v1783, %v2115
      %v2206 = vadd.f32 %v1786, %v2118
      %v2207 = vadd.f32 %v1791, %v2123
      %v2208 = vadd.f32 %v1794, %v2126
      %v2209 = vadd.f32 %v1799, %v2131
      %v2210 = vadd.f32 %v1802, %v2134
      %v2211 = vadd.f32 %v1807, %v2139
      %v2212 = vadd.f32 %v1810, %v2142
      %v2213 = vadd.f32 %v1815, %v2147
      %v2214 = vadd.f32 %v1818, %v2150
      %v2215 = vadd.f32 %v1823, %v2155
      %v2216 = vadd.f32 %v1826, %v2158
      %v2217 = vadd.f32 %v1831, %v2163
      %v2218 = vadd.f32 %v1834, %v2166
      %v2219 = vadd.f32 %v1839, %v2171
      %v2220 = vadd.f32 %v1842, %v2174
      %v2221 = vadd.f32 %v1847, %v2179
      %v2222 = vadd.f32 %v1850, %v2182
      %v2223 = vadd.f32 %v1855, %v2187
      %v2224 = vadd.f32 %v1858, %v2190
      %v2225 = vld [vmem:[%s3] sm:$0x1]
      %v2227 = vlaneseq
      %v2228 = vshrl.u32 %v2227, 7
      %v2229 = vsub.s32 0, %v2228
      %v2230 = vrot.slane %v2225, %v2229
      %v2232 = vadd.f32 %v2193, %v2230
      %v2233 = vadd.f32 %v2194, %v2230
      %v2234 = vadd.f32 %v2195, %v2230
      %v2235 = vadd.f32 %v2196, %v2230
      %v2236 = vadd.f32 %v2197, %v2230
      %v2237 = vadd.f32 %v2198, %v2230
      %v2238 = vadd.f32 %v2199, %v2230
      %v2239 = vadd.f32 %v2200, %v2230
      %v2240 = vadd.f32 %v2201, %v2230
      %v2241 = vadd.f32 %v2202, %v2230
      %v2242 = vadd.f32 %v2203, %v2230
      %v2243 = vadd.f32 %v2204, %v2230
      %v2244 = vadd.f32 %v2205, %v2230
      %v2245 = vadd.f32 %v2206, %v2230
      %v2246 = vadd.f32 %v2207, %v2230
      %v2247 = vadd.f32 %v2208, %v2230
      %v2248 = vadd.f32 %v2209, %v2230
      %v2249 = vadd.f32 %v2210, %v2230
      %v2250 = vadd.f32 %v2211, %v2230
      %v2251 = vadd.f32 %v2212, %v2230
      %v2252 = vadd.f32 %v2213, %v2230
      %v2253 = vadd.f32 %v2214, %v2230
      %v2254 = vadd.f32 %v2215, %v2230
      %v2255 = vadd.f32 %v2216, %v2230
      %v2256 = vadd.f32 %v2217, %v2230
      %v2257 = vadd.f32 %v2218, %v2230
      %v2258 = vadd.f32 %v2219, %v2230
      %v2259 = vadd.f32 %v2220, %v2230
      %v2260 = vadd.f32 %v2221, %v2230
      %v2261 = vadd.f32 %v2222, %v2230
      %v2262 = vadd.f32 %v2223, %v2230
      %v2263 = vadd.f32 %v2224, %v2230
      %v2264 = vmax.f32 %v2232, 0.0
      %v2265 = vmax.f32 %v2233, 0.0
      %v2266 = vmax.f32 %v2234, 0.0
      %v2267 = vmax.f32 %v2235, 0.0
      %v2268 = vmax.f32 %v2236, 0.0
      %v2269 = vmax.f32 %v2237, 0.0
      %v2270 = vmax.f32 %v2238, 0.0
      %v2271 = vmax.f32 %v2239, 0.0
      %v2272 = vmax.f32 %v2240, 0.0
      %v2273 = vmax.f32 %v2241, 0.0
      %v2274 = vmax.f32 %v2242, 0.0
      %v2275 = vmax.f32 %v2243, 0.0
      %v2276 = vmax.f32 %v2244, 0.0
      %v2277 = vmax.f32 %v2245, 0.0
      %v2278 = vmax.f32 %v2246, 0.0
      %v2279 = vmax.f32 %v2247, 0.0
      %v2280 = vmax.f32 %v2248, 0.0
      %v2281 = vmax.f32 %v2249, 0.0
      %v2282 = vmax.f32 %v2250, 0.0
      %v2283 = vmax.f32 %v2251, 0.0
      %v2284 = vmax.f32 %v2252, 0.0
      %v2285 = vmax.f32 %v2253, 0.0
      %v2286 = vmax.f32 %v2254, 0.0
      %v2287 = vmax.f32 %v2255, 0.0
      %v2288 = vmax.f32 %v2256, 0.0
      %v2289 = vmax.f32 %v2257, 0.0
      %v2290 = vmax.f32 %v2258, 0.0
      %v2291 = vmax.f32 %v2259, 0.0
      %v2292 = vmax.f32 %v2260, 0.0
      %v2293 = vmax.f32 %v2261, 0.0
      %v2294 = vmax.f32 %v2262, 0.0
      %v2295 = vmax.f32 %v2263, 0.0
      %v2296 = vpack.c.bf16 %v2265, %v2264
      %v2297 = vpack.c.bf16 %v2267, %v2266
      %v2298 = vpack.c.bf16 %v2269, %v2268
      %v2299 = vpack.c.bf16 %v2271, %v2270
      %v2300 = vpack.c.bf16 %v2273, %v2272
      %v2301 = vpack.c.bf16 %v2275, %v2274
      %v2302 = vpack.c.bf16 %v2277, %v2276
      %v2303 = vpack.c.bf16 %v2279, %v2278
      %v2304 = vpack.c.bf16 %v2281, %v2280
      %v2305 = vpack.c.bf16 %v2283, %v2282
      %v2306 = vpack.c.bf16 %v2285, %v2284
      %v2307 = vpack.c.bf16 %v2287, %v2286
      %v2308 = vpack.c.bf16 %v2289, %v2288
      %v2309 = vpack.c.bf16 %v2291, %v2290
      %v2310 = vpack.c.bf16 %v2293, %v2292
      %v2311 = vpack.c.bf16 %v2295, %v2294
      %v2328 = vunpack.c.l.b16 %v2296
      %v2329 = vunpack.c.h.b16 %v2296
      %v2330 = vunpack.c.l.b16 %v2297
      %v2331 = vunpack.c.h.b16 %v2297
      %v2332 = vunpack.c.l.b16 %v2298
      %v2333 = vunpack.c.h.b16 %v2298
      %v2334 = vunpack.c.l.b16 %v2299
      %v2335 = vunpack.c.h.b16 %v2299
      %v2336 = vunpack.c.l.b16 %v2300
      %v2337 = vunpack.c.h.b16 %v2300
      %v2338 = vunpack.c.l.b16 %v2301
      %v2339 = vunpack.c.h.b16 %v2301
      %v2340 = vunpack.c.l.b16 %v2302
      %v2341 = vunpack.c.h.b16 %v2302
      %v2342 = vunpack.c.l.b16 %v2303
      %v2343 = vunpack.c.h.b16 %v2303
      %v2344 = vunpack.c.l.b16 %v2304
      %v2345 = vunpack.c.h.b16 %v2304
      %v2346 = vunpack.c.l.b16 %v2305
      %v2347 = vunpack.c.h.b16 %v2305
      %v2348 = vunpack.c.l.b16 %v2306
      %v2349 = vunpack.c.h.b16 %v2306
      %v2350 = vunpack.c.l.b16 %v2307
      %v2351 = vunpack.c.h.b16 %v2307
      %v2352 = vunpack.c.l.b16 %v2308
      %v2353 = vunpack.c.h.b16 %v2308
      %v2354 = vunpack.c.l.b16 %v2309
      %v2355 = vunpack.c.h.b16 %v2309
      %v2356 = vunpack.c.l.b16 %v2310
      %v2357 = vunpack.c.h.b16 %v2310
      %v2358 = vunpack.c.l.b16 %v2311
      %v2359 = vunpack.c.h.b16 %v2311
      %v2360 = vpack.c.b16 %v2328, %v2328
      %v2361 = vpack.c.b16 %v2329, %v2329
      %v2362 = vpack.c.b16 %v2330, %v2330
      %v2363 = vpack.c.b16 %v2331, %v2331
      %v2364 = vpack.c.b16 %v2332, %v2332
      %v2365 = vpack.c.b16 %v2333, %v2333
      %v2366 = vpack.c.b16 %v2334, %v2334
      %v2367 = vpack.c.b16 %v2335, %v2335
      %v2368 = vpack.c.b16 %v2336, %v2336
      %v2369 = vpack.c.b16 %v2337, %v2337
      %v2370 = vpack.c.b16 %v2338, %v2338
      %v2371 = vpack.c.b16 %v2339, %v2339
      %v2372 = vpack.c.b16 %v2340, %v2340
      %v2373 = vpack.c.b16 %v2341, %v2341
      %v2374 = vpack.c.b16 %v2342, %v2342
      %v2375 = vpack.c.b16 %v2343, %v2343
      %v2376 = vpack.c.b16 %v2344, %v2344
      %v2377 = vpack.c.b16 %v2345, %v2345
      %v2378 = vpack.c.b16 %v2346, %v2346
      %v2379 = vpack.c.b16 %v2347, %v2347
      %v2380 = vpack.c.b16 %v2348, %v2348
      %v2381 = vpack.c.b16 %v2349, %v2349
      %v2382 = vpack.c.b16 %v2350, %v2350
      %v2383 = vpack.c.b16 %v2351, %v2351
      %v2384 = vpack.c.b16 %v2352, %v2352
      %v2385 = vpack.c.b16 %v2353, %v2353
      %v2386 = vpack.c.b16 %v2354, %v2354
      %v2387 = vpack.c.b16 %v2355, %v2355
      %v2388 = vpack.c.b16 %v2356, %v2356
      %v2389 = vpack.c.b16 %v2357, %v2357
      %v2390 = vpack.c.b16 %v2358, %v2358
      %v2391 = vpack.c.b16 %v2359, %v2359
      %2392 = vrot.lane.b32.xlu0 %v2360, 4
      %v2393 = vpop.permute.xlu0 %2392
      %2394 = vrot.lane.b32.xlu0 %v2361, 4
      %v2395 = vpop.permute.xlu0 %2394
      %2396 = vrot.lane.b32.xlu0 %v2362, 4
      %v2397 = vpop.permute.xlu0 %2396
      %2398 = vrot.lane.b32.xlu0 %v2363, 4
      %v2399 = vpop.permute.xlu0 %2398
      %2400 = vrot.lane.b32.xlu0 %v2364, 4
      %v2401 = vpop.permute.xlu0 %2400
      %2402 = vrot.lane.b32.xlu0 %v2365, 4
      %v2403 = vpop.permute.xlu0 %2402
      %2404 = vrot.lane.b32.xlu0 %v2366, 4
      %v2405 = vpop.permute.xlu0 %2404
      %2406 = vrot.lane.b32.xlu0 %v2367, 4
      %v2407 = vpop.permute.xlu0 %2406
      %2408 = vrot.lane.b32.xlu0 %v2368, 4
      %v2409 = vpop.permute.xlu0 %2408
      %2410 = vrot.lane.b32.xlu0 %v2369, 4
      %v2411 = vpop.permute.xlu0 %2410
      %2412 = vrot.lane.b32.xlu0 %v2370, 4
      %v2413 = vpop.permute.xlu0 %2412
      %2414 = vrot.lane.b32.xlu0 %v2371, 4
      %v2415 = vpop.permute.xlu0 %2414
      %2416 = vrot.lane.b32.xlu0 %v2372, 4
      %v2417 = vpop.permute.xlu0 %2416
      %2418 = vrot.lane.b32.xlu0 %v2373, 4
      %v2419 = vpop.permute.xlu0 %2418
      %2420 = vrot.lane.b32.xlu0 %v2374, 4
      %v2421 = vpop.permute.xlu0 %2420
      %2422 = vrot.lane.b32.xlu0 %v2375, 4
      %v2423 = vpop.permute.xlu0 %2422
      %2424 = vrot.lane.b32.xlu0 %v2376, 4
      %v2425 = vpop.permute.xlu0 %2424
      %2426 = vrot.lane.b32.xlu0 %v2377, 4
      %v2427 = vpop.permute.xlu0 %2426
      %2428 = vrot.lane.b32.xlu0 %v2378, 4
      %v2429 = vpop.permute.xlu0 %2428
      %2430 = vrot.lane.b32.xlu0 %v2379, 4
      %v2431 = vpop.permute.xlu0 %2430
      %2432 = vrot.lane.b32.xlu0 %v2380, 4
      %v2433 = vpop.permute.xlu0 %2432
      %2434 = vrot.lane.b32.xlu0 %v2381, 4
      %v2435 = vpop.permute.xlu0 %2434
      %2436 = vrot.lane.b32.xlu0 %v2382, 4
      %v2437 = vpop.permute.xlu0 %2436
      %2438 = vrot.lane.b32.xlu0 %v2383, 4
      %v2439 = vpop.permute.xlu0 %2438
      %2440 = vrot.lane.b32.xlu0 %v2384, 4
      %v2441 = vpop.permute.xlu0 %2440
      %2442 = vrot.lane.b32.xlu0 %v2385, 4
      %v2443 = vpop.permute.xlu0 %2442
      %2444 = vrot.lane.b32.xlu0 %v2386, 4
      %v2445 = vpop.permute.xlu0 %2444
      %2446 = vrot.lane.b32.xlu0 %v2387, 4
      %v2447 = vpop.permute.xlu0 %2446
      %2448 = vrot.lane.b32.xlu0 %v2388, 4
      %v2449 = vpop.permute.xlu0 %2448
      %2450 = vrot.lane.b32.xlu0 %v2389, 4
      %v2451 = vpop.permute.xlu0 %2450
      %2452 = vrot.lane.b32.xlu0 %v2390, 4
      %v2453 = vpop.permute.xlu0 %2452
      %2454 = vrot.lane.b32.xlu0 %v2391, 4
      %v2455 = vpop.permute.xlu0 %2454
      %2488 = vst.msk [vmem:[%s386] sm:$0xf] %vm387, %v2393
      %2489 = vst.msk [vmem:[%s386 + $0x4] sm:$0xf] %vm387, %v2395
      %2490 = vst.msk [vmem:[%s386 + $0x8] sm:$0xf] %vm387, %v2397
      %2491 = vst.msk [vmem:[%s386 + $0xc] sm:$0xf] %vm387, %v2399
      %2492 = vst.msk [vmem:[%s386 + $0x10] sm:$0xf] %vm387, %v2401
      %2493 = vst.msk [vmem:[%s386 + $0x14] sm:$0xf] %vm387, %v2403
      %2494 = vst.msk [vmem:[%s386 + $0x18] sm:$0xf] %vm387, %v2405
      %2495 = vst.msk [vmem:[%s386 + $0x1c] sm:$0xf] %vm387, %v2407
      %2496 = vst.msk [vmem:[%s386 + $0x20] sm:$0xf] %vm387, %v2409
      %2497 = vst.msk [vmem:[%s386 + $0x24] sm:$0xf] %vm387, %v2411
      %2498 = vst.msk [vmem:[%s386 + $0x28] sm:$0xf] %vm387, %v2413
      %2499 = vst.msk [vmem:[%s386 + $0x2c] sm:$0xf] %vm387, %v2415
      %2500 = vst.msk [vmem:[%s386 + $0x30] sm:$0xf] %vm387, %v2417
      %2501 = vst.msk [vmem:[%s386 + $0x34] sm:$0xf] %vm387, %v2419
      %2502 = vst.msk [vmem:[%s386 + $0x38] sm:$0xf] %vm387, %v2421
      %2503 = vst.msk [vmem:[%s386 + $0x3c] sm:$0xf] %vm387, %v2423
      %2504 = vst.msk [vmem:[%s386 + $0x40] sm:$0xf] %vm387, %v2425
      %2505 = vst.msk [vmem:[%s386 + $0x44] sm:$0xf] %vm387, %v2427
      %2506 = vst.msk [vmem:[%s386 + $0x48] sm:$0xf] %vm387, %v2429
      %2507 = vst.msk [vmem:[%s386 + $0x4c] sm:$0xf] %vm387, %v2431
      %2508 = vst.msk [vmem:[%s386 + $0x50] sm:$0xf] %vm387, %v2433
      %2509 = vst.msk [vmem:[%s386 + $0x54] sm:$0xf] %vm387, %v2435
      %2510 = vst.msk [vmem:[%s386 + $0x58] sm:$0xf] %vm387, %v2437
      %2511 = vst.msk [vmem:[%s386 + $0x5c] sm:$0xf] %vm387, %v2439
      %2512 = vst.msk [vmem:[%s386 + $0x60] sm:$0xf] %vm387, %v2441
      %2513 = vst.msk [vmem:[%s386 + $0x64] sm:$0xf] %vm387, %v2443
      %2514 = vst.msk [vmem:[%s386 + $0x68] sm:$0xf] %vm387, %v2445
      %2515 = vst.msk [vmem:[%s386 + $0x6c] sm:$0xf] %vm387, %v2447
      %2516 = vst.msk [vmem:[%s386 + $0x70] sm:$0xf] %vm387, %v2449
      %2517 = vst.msk [vmem:[%s386 + $0x74] sm:$0xf] %vm387, %v2451
      %2518 = vst.msk [vmem:[%s386 + $0x78] sm:$0xf] %vm387, %v2453
      %2519 = vst.msk [vmem:[%s386 + $0x7c] sm:$0xf] %vm387, %v2455
      %v2521 = vshrl.u32 %v2360, 16
      %v2523 = vrot.slane %v2521, 7
      %v2524 = vshll.u32 %v2360, 16
      %v2526 = vor.u32 %v2523, %v2524
      %v2527 = vrot.slane %v2523, 4
      %v2529 = vshrl.u32 %v2361, 16
      %v2531 = vrot.slane %v2529, 7
      %v2532 = vshll.u32 %v2361, 16
      %v2534 = vor.u32 %v2531, %v2532
      %v2535 = vsel %vm422, %v2527, %v2534
      %v2537 = vshrl.u32 %v2362, 16
      %v2539 = vrot.slane %v2537, 7
      %v2540 = vshll.u32 %v2362, 16
      %v2542 = vor.u32 %v2539, %v2540
      %v2543 = vrot.slane %v2539, 4
      %v2545 = vshrl.u32 %v2363, 16
      %v2547 = vrot.slane %v2545, 7
      %v2548 = vshll.u32 %v2363, 16
      %v2550 = vor.u32 %v2547, %v2548
      %v2551 = vsel %vm422, %v2543, %v2550
      %v2553 = vshrl.u32 %v2364, 16
      %v2555 = vrot.slane %v2553, 7
      %v2556 = vshll.u32 %v2364, 16
      %v2558 = vor.u32 %v2555, %v2556
      %v2559 = vrot.slane %v2555, 4
      %v2561 = vshrl.u32 %v2365, 16
      %v2563 = vrot.slane %v2561, 7
      %v2564 = vshll.u32 %v2365, 16
      %v2566 = vor.u32 %v2563, %v2564
      %v2567 = vsel %vm422, %v2559, %v2566
      %v2569 = vshrl.u32 %v2366, 16
      %v2571 = vrot.slane %v2569, 7
      %v2572 = vshll.u32 %v2366, 16
      %v2574 = vor.u32 %v2571, %v2572
      %v2575 = vrot.slane %v2571, 4
      %v2577 = vshrl.u32 %v2367, 16
      %v2579 = vrot.slane %v2577, 7
      %v2580 = vshll.u32 %v2367, 16
      %v2582 = vor.u32 %v2579, %v2580
      %v2583 = vsel %vm422, %v2575, %v2582
      %v2585 = vshrl.u32 %v2368, 16
      %v2587 = vrot.slane %v2585, 7
      %v2588 = vshll.u32 %v2368, 16
      %v2590 = vor.u32 %v2587, %v2588
      %v2591 = vrot.slane %v2587, 4
      %v2593 = vshrl.u32 %v2369, 16
      %v2595 = vrot.slane %v2593, 7
      %v2596 = vshll.u32 %v2369, 16
      %v2598 = vor.u32 %v2595, %v2596
      %v2599 = vsel %vm422, %v2591, %v2598
      %v2601 = vshrl.u32 %v2370, 16
      %v2603 = vrot.slane %v2601, 7
      %v2604 = vshll.u32 %v2370, 16
      %v2606 = vor.u32 %v2603, %v2604
      %v2607 = vrot.slane %v2603, 4
      %v2609 = vshrl.u32 %v2371, 16
      %v2611 = vrot.slane %v2609, 7
      %v2612 = vshll.u32 %v2371, 16
      %v2614 = vor.u32 %v2611, %v2612
      %v2615 = vsel %vm422, %v2607, %v2614
      %v2617 = vshrl.u32 %v2372, 16
      %v2619 = vrot.slane %v2617, 7
      %v2620 = vshll.u32 %v2372, 16
      %v2622 = vor.u32 %v2619, %v2620
      %v2623 = vrot.slane %v2619, 4
      %v2625 = vshrl.u32 %v2373, 16
      %v2627 = vrot.slane %v2625, 7
      %v2628 = vshll.u32 %v2373, 16
      %v2630 = vor.u32 %v2627, %v2628
      %v2631 = vsel %vm422, %v2623, %v2630
      %v2633 = vshrl.u32 %v2374, 16
      %v2635 = vrot.slane %v2633, 7
      %v2636 = vshll.u32 %v2374, 16
      %v2638 = vor.u32 %v2635, %v2636
      %v2639 = vrot.slane %v2635, 4
      %v2641 = vshrl.u32 %v2375, 16
      %v2643 = vrot.slane %v2641, 7
      %v2644 = vshll.u32 %v2375, 16
      %v2646 = vor.u32 %v2643, %v2644
      %v2647 = vsel %vm422, %v2639, %v2646
      %v2649 = vshrl.u32 %v2376, 16
      %v2651 = vrot.slane %v2649, 7
      %v2652 = vshll.u32 %v2376, 16
      %v2654 = vor.u32 %v2651, %v2652
      %v2655 = vrot.slane %v2651, 4
      %v2657 = vshrl.u32 %v2377, 16
      %v2659 = vrot.slane %v2657, 7
      %v2660 = vshll.u32 %v2377, 16
      %v2662 = vor.u32 %v2659, %v2660
      %v2663 = vsel %vm422, %v2655, %v2662
      %v2665 = vshrl.u32 %v2378, 16
      %v2667 = vrot.slane %v2665, 7
      %v2668 = vshll.u32 %v2378, 16
      %v2670 = vor.u32 %v2667, %v2668
      %v2671 = vrot.slane %v2667, 4
      %v2673 = vshrl.u32 %v2379, 16
      %v2675 = vrot.slane %v2673, 7
      %v2676 = vshll.u32 %v2379, 16
      %v2678 = vor.u32 %v2675, %v2676
      %v2679 = vsel %vm422, %v2671, %v2678
      %v2681 = vshrl.u32 %v2380, 16
      %v2683 = vrot.slane %v2681, 7
      %v2684 = vshll.u32 %v2380, 16
      %v2686 = vor.u32 %v2683, %v2684
      %v2687 = vrot.slane %v2683, 4
      %v2689 = vshrl.u32 %v2381, 16
      %v2691 = vrot.slane %v2689, 7
      %v2692 = vshll.u32 %v2381, 16
      %v2694 = vor.u32 %v2691, %v2692
      %v2695 = vsel %vm422, %v2687, %v2694
      %v2697 = vshrl.u32 %v2382, 16
      %v2699 = vrot.slane %v2697, 7
      %v2700 = vshll.u32 %v2382, 16
      %v2702 = vor.u32 %v2699, %v2700
      %v2703 = vrot.slane %v2699, 4
      %v2705 = vshrl.u32 %v2383, 16
      %v2707 = vrot.slane %v2705, 7
      %v2708 = vshll.u32 %v2383, 16
      %v2710 = vor.u32 %v2707, %v2708
      %v2711 = vsel %vm422, %v2703, %v2710
      %v2713 = vshrl.u32 %v2384, 16
      %v2715 = vrot.slane %v2713, 7
      %v2716 = vshll.u32 %v2384, 16
      %v2718 = vor.u32 %v2715, %v2716
      %v2719 = vrot.slane %v2715, 4
      %v2721 = vshrl.u32 %v2385, 16
      %v2723 = vrot.slane %v2721, 7
      %v2724 = vshll.u32 %v2385, 16
      %v2726 = vor.u32 %v2723, %v2724
      %v2727 = vsel %vm422, %v2719, %v2726
      %v2729 = vshrl.u32 %v2386, 16
      %v2731 = vrot.slane %v2729, 7
      %v2732 = vshll.u32 %v2386, 16
      %v2734 = vor.u32 %v2731, %v2732
      %v2735 = vrot.slane %v2731, 4
      %v2737 = vshrl.u32 %v2387, 16
      %v2739 = vrot.slane %v2737, 7
      %v2740 = vshll.u32 %v2387, 16
      %v2742 = vor.u32 %v2739, %v2740
      %v2743 = vsel %vm422, %v2735, %v2742
      %v2745 = vshrl.u32 %v2388, 16
      %v2747 = vrot.slane %v2745, 7
      %v2748 = vshll.u32 %v2388, 16
      %v2750 = vor.u32 %v2747, %v2748
      %v2751 = vrot.slane %v2747, 4
      %v2753 = vshrl.u32 %v2389, 16
      %v2755 = vrot.slane %v2753, 7
      %v2756 = vshll.u32 %v2389, 16
      %v2758 = vor.u32 %v2755, %v2756
      %v2759 = vsel %vm422, %v2751, %v2758
      %v2761 = vshrl.u32 %v2390, 16
      %v2763 = vrot.slane %v2761, 7
      %v2764 = vshll.u32 %v2390, 16
      %v2766 = vor.u32 %v2763, %v2764
      %v2767 = vrot.slane %v2763, 4
      %v2769 = vshrl.u32 %v2391, 16
      %v2771 = vrot.slane %v2769, 7
      %v2772 = vshll.u32 %v2391, 16
      %v2774 = vor.u32 %v2771, %v2772
      %v2775 = vsel %vm422, %v2767, %v2774
      %v2808 = vld [vmem:[%s386] sm:$0xf]
      %v2809 = vsel %vm713, %v2526, %v2808
      %2810 = vst [vmem:[%s386] sm:$0xf] %v2809
      %2811 = vst.msk [vmem:[%s386 + $0x4] sm:$0xf] %vm717, %v2535
      %v2812 = vld [vmem:[%s386 + $0x8] sm:$0xf]
      %v2813 = vsel %vm713, %v2542, %v2812
      %2814 = vst [vmem:[%s386 + $0x8] sm:$0xf] %v2813
      %2815 = vst.msk [vmem:[%s386 + $0xc] sm:$0xf] %vm717, %v2551
      %v2816 = vld [vmem:[%s386 + $0x10] sm:$0xf]
      %v2817 = vsel %vm713, %v2558, %v2816
      %2818 = vst [vmem:[%s386 + $0x10] sm:$0xf] %v2817
      %2819 = vst.msk [vmem:[%s386 + $0x14] sm:$0xf] %vm717, %v2567
      %v2820 = vld [vmem:[%s386 + $0x18] sm:$0xf]
      %v2821 = vsel %vm713, %v2574, %v2820
      %2822 = vst [vmem:[%s386 + $0x18] sm:$0xf] %v2821
      %2823 = vst.msk [vmem:[%s386 + $0x1c] sm:$0xf] %vm717, %v2583
      %v2824 = vld [vmem:[%s386 + $0x20] sm:$0xf]
      %v2825 = vsel %vm713, %v2590, %v2824
      %2826 = vst [vmem:[%s386 + $0x20] sm:$0xf] %v2825
      %2827 = vst.msk [vmem:[%s386 + $0x24] sm:$0xf] %vm717, %v2599
      %v2828 = vld [vmem:[%s386 + $0x28] sm:$0xf]
      %v2829 = vsel %vm713, %v2606, %v2828
      %2830 = vst [vmem:[%s386 + $0x28] sm:$0xf] %v2829
      %2831 = vst.msk [vmem:[%s386 + $0x2c] sm:$0xf] %vm717, %v2615
      %v2832 = vld [vmem:[%s386 + $0x30] sm:$0xf]
      %v2833 = vsel %vm713, %v2622, %v2832
      %2834 = vst [vmem:[%s386 + $0x30] sm:$0xf] %v2833
      %2835 = vst.msk [vmem:[%s386 + $0x34] sm:$0xf] %vm717, %v2631
      %v2836 = vld [vmem:[%s386 + $0x38] sm:$0xf]
      %v2837 = vsel %vm713, %v2638, %v2836
      %2838 = vst [vmem:[%s386 + $0x38] sm:$0xf] %v2837
      %2839 = vst.msk [vmem:[%s386 + $0x3c] sm:$0xf] %vm717, %v2647
      %v2840 = vld [vmem:[%s386 + $0x40] sm:$0xf]
      %v2841 = vsel %vm713, %v2654, %v2840
      %2842 = vst [vmem:[%s386 + $0x40] sm:$0xf] %v2841
      %2843 = vst.msk [vmem:[%s386 + $0x44] sm:$0xf] %vm717, %v2663
      %v2844 = vld [vmem:[%s386 + $0x48] sm:$0xf]
      %v2845 = vsel %vm713, %v2670, %v2844
      %2846 = vst [vmem:[%s386 + $0x48] sm:$0xf] %v2845
      %2847 = vst.msk [vmem:[%s386 + $0x4c] sm:$0xf] %vm717, %v2679
      %v2848 = vld [vmem:[%s386 + $0x50] sm:$0xf]
      %v2849 = vsel %vm713, %v2686, %v2848
      %2850 = vst [vmem:[%s386 + $0x50] sm:$0xf] %v2849
      %2851 = vst.msk [vmem:[%s386 + $0x54] sm:$0xf] %vm717, %v2695
      %v2852 = vld [vmem:[%s386 + $0x58] sm:$0xf]
      %v2853 = vsel %vm713, %v2702, %v2852
      %2854 = vst [vmem:[%s386 + $0x58] sm:$0xf] %v2853
      %2855 = vst.msk [vmem:[%s386 + $0x5c] sm:$0xf] %vm717, %v2711
      %v2856 = vld [vmem:[%s386 + $0x60] sm:$0xf]
      %v2857 = vsel %vm713, %v2718, %v2856
      %2858 = vst [vmem:[%s386 + $0x60] sm:$0xf] %v2857
      %2859 = vst.msk [vmem:[%s386 + $0x64] sm:$0xf] %vm717, %v2727
      %v2860 = vld [vmem:[%s386 + $0x68] sm:$0xf]
      %v2861 = vsel %vm713, %v2734, %v2860
      %2862 = vst [vmem:[%s386 + $0x68] sm:$0xf] %v2861
      %2863 = vst.msk [vmem:[%s386 + $0x6c] sm:$0xf] %vm717, %v2743
      %v2864 = vld [vmem:[%s386 + $0x70] sm:$0xf]
      %v2865 = vsel %vm713, %v2750, %v2864
      %2866 = vst [vmem:[%s386 + $0x70] sm:$0xf] %v2865
      %2867 = vst.msk [vmem:[%s386 + $0x74] sm:$0xf] %vm717, %v2759
      %v2868 = vld [vmem:[%s386 + $0x78] sm:$0xf]
      %v2869 = vsel %vm713, %v2766, %v2868
      %2870 = vst [vmem:[%s386 + $0x78] sm:$0xf] %v2869
      %2871 = vst.msk [vmem:[%s386 + $0x7c] sm:$0xf] %vm717, %v2775
      %v2872 = vrot.slane %v2521, 4
      %v2873 = vrot.slane %v2524, 5
      %v2874 = vor.u32 %v2872, %v2873
      %v2875 = vrot.slane %v2874, 4
      %v2876 = vrot.slane %v2532, 5
      %v2877 = vsel %vm781, %v2875, %v2876
      %v2878 = vrot.slane %v2529, 4
      %v2879 = vor.u32 %v2878, %v2876
      %v2880 = vrot.slane %v2879, 4
      %v2881 = vrot.slane %v2537, 4
      %v2882 = vrot.slane %v2540, 5
      %v2883 = vor.u32 %v2881, %v2882
      %v2884 = vrot.slane %v2883, 4
      %v2885 = vrot.slane %v2548, 5
      %v2886 = vsel %vm781, %v2884, %v2885
      %v2887 = vrot.slane %v2545, 4
      %v2888 = vor.u32 %v2887, %v2885
      %v2889 = vrot.slane %v2888, 4
      %v2890 = vrot.slane %v2553, 4
      %v2891 = vrot.slane %v2556, 5
      %v2892 = vor.u32 %v2890, %v2891
      %v2893 = vrot.slane %v2892, 4
      %v2894 = vrot.slane %v2564, 5
      %v2895 = vsel %vm781, %v2893, %v2894
      %v2896 = vrot.slane %v2561, 4
      %v2897 = vor.u32 %v2896, %v2894
      %v2898 = vrot.slane %v2897, 4
      %v2899 = vrot.slane %v2569, 4
      %v2900 = vrot.slane %v2572, 5
      %v2901 = vor.u32 %v2899, %v2900
      %v2902 = vrot.slane %v2901, 4
      %v2903 = vrot.slane %v2580, 5
      %v2904 = vsel %vm781, %v2902, %v2903
      %v2905 = vrot.slane %v2577, 4
      %v2906 = vor.u32 %v2905, %v2903
      %v2907 = vrot.slane %v2906, 4
      %v2908 = vrot.slane %v2585, 4
      %v2909 = vrot.slane %v2588, 5
      %v2910 = vor.u32 %v2908, %v2909
      %v2911 = vrot.slane %v2910, 4
      %v2912 = vrot.slane %v2596, 5
      %v2913 = vsel %vm781, %v2911, %v2912
      %v2914 = vrot.slane %v2593, 4
      %v2915 = vor.u32 %v2914, %v2912
      %v2916 = vrot.slane %v2915, 4
      %v2917 = vrot.slane %v2601, 4
      %v2918 = vrot.slane %v2604, 5
      %v2919 = vor.u32 %v2917, %v2918
      %v2920 = vrot.slane %v2919, 4
      %v2921 = vrot.slane %v2612, 5
      %v2922 = vsel %vm781, %v2920, %v2921
      %v2923 = vrot.slane %v2609, 4
      %v2924 = vor.u32 %v2923, %v2921
      %v2925 = vrot.slane %v2924, 4
      %v2926 = vrot.slane %v2617, 4
      %v2927 = vrot.slane %v2620, 5
      %v2928 = vor.u32 %v2926, %v2927
      %v2929 = vrot.slane %v2928, 4
      %v2930 = vrot.slane %v2628, 5
      %v2931 = vsel %vm781, %v2929, %v2930
      %v2932 = vrot.slane %v2625, 4
      %v2933 = vor.u32 %v2932, %v2930
      %v2934 = vrot.slane %v2933, 4
      %v2935 = vrot.slane %v2633, 4
      %v2936 = vrot.slane %v2636, 5
      %v2937 = vor.u32 %v2935, %v2936
      %v2938 = vrot.slane %v2937, 4
      %v2939 = vrot.slane %v2644, 5
      %v2940 = vsel %vm781, %v2938, %v2939
      %v2941 = vrot.slane %v2641, 4
      %v2942 = vor.u32 %v2941, %v2939
      %v2943 = vrot.slane %v2942, 4
      %v2944 = vrot.slane %v2649, 4
      %v2945 = vrot.slane %v2652, 5
      %v2946 = vor.u32 %v2944, %v2945
      %v2947 = vrot.slane %v2946, 4
      %v2948 = vrot.slane %v2660, 5
      %v2949 = vsel %vm781, %v2947, %v2948
      %v2950 = vrot.slane %v2657, 4
      %v2951 = vor.u32 %v2950, %v2948
      %v2952 = vrot.slane %v2951, 4
      %v2953 = vrot.slane %v2665, 4
      %v2954 = vrot.slane %v2668, 5
      %v2955 = vor.u32 %v2953, %v2954
      %v2956 = vrot.slane %v2955, 4
      %v2957 = vrot.slane %v2676, 5
      %v2958 = vsel %vm781, %v2956, %v2957
      %v2959 = vrot.slane %v2673, 4
      %v2960 = vor.u32 %v2959, %v2957
      %v2961 = vrot.slane %v2960, 4
      %v2962 = vrot.slane %v2681, 4
      %v2963 = vrot.slane %v2684, 5
      %v2964 = vor.u32 %v2962, %v2963
      %v2965 = vrot.slane %v2964, 4
      %v2966 = vrot.slane %v2692, 5
      %v2967 = vsel %vm781, %v2965, %v2966
      %v2968 = vrot.slane %v2689, 4
      %v2969 = vor.u32 %v2968, %v2966
      %v2970 = vrot.slane %v2969, 4
      %v2971 = vrot.slane %v2697, 4
      %v2972 = vrot.slane %v2700, 5
      %v2973 = vor.u32 %v2971, %v2972
      %v2974 = vrot.slane %v2973, 4
      %v2975 = vrot.slane %v2708, 5
      %v2976 = vsel %vm781, %v2974, %v2975
      %v2977 = vrot.slane %v2705, 4
      %v2978 = vor.u32 %v2977, %v2975
      %v2979 = vrot.slane %v2978, 4
      %v2980 = vrot.slane %v2713, 4
      %v2981 = vrot.slane %v2716, 5
      %v2982 = vor.u32 %v2980, %v2981
      %v2983 = vrot.slane %v2982, 4
      %v2984 = vrot.slane %v2724, 5
      %v2985 = vsel %vm781, %v2983, %v2984
      %v2986 = vrot.slane %v2721, 4
      %v2987 = vor.u32 %v2986, %v2984
      %v2988 = vrot.slane %v2987, 4
      %v2989 = vrot.slane %v2729, 4
      %v2990 = vrot.slane %v2732, 5
      %v2991 = vor.u32 %v2989, %v2990
      %v2992 = vrot.slane %v2991, 4
      %v2993 = vrot.slane %v2740, 5
      %v2994 = vsel %vm781, %v2992, %v2993
      %v2995 = vrot.slane %v2737, 4
      %v2996 = vor.u32 %v2995, %v2993
      %v2997 = vrot.slane %v2996, 4
      %v2998 = vrot.slane %v2745, 4
      %v2999 = vrot.slane %v2748, 5
      %v3000 = vor.u32 %v2998, %v2999
      %v3001 = vrot.slane %v3000, 4
      %v3002 = vrot.slane %v2756, 5
      %v3003 = vsel %vm781, %v3001, %v3002
      %v3004 = vrot.slane %v2753, 4
      %v3005 = vor.u32 %v3004, %v3002
      %v3006 = vrot.slane %v3005, 4
      %v3007 = vrot.slane %v2761, 4
      %v3008 = vrot.slane %v2764, 5
      %v3009 = vor.u32 %v3007, %v3008
      %v3010 = vrot.slane %v3009, 4
      %v3011 = vrot.slane %v2772, 5
      %v3012 = vsel %vm781, %v3010, %v3011
      %v3013 = vrot.slane %v2769, 4
      %v3014 = vor.u32 %v3013, %v3011
      %v3015 = vrot.slane %v3014, 4
      %3016 = vrot.lane.b32.xlu0 %v2877, 8
      %v3017 = vpop.permute.xlu0 %3016
      %3018 = vrot.lane.b32.xlu0 %v2880, 8
      %v3019 = vpop.permute.xlu0 %3018
      %3020 = vrot.lane.b32.xlu0 %v2886, 8
      %v3021 = vpop.permute.xlu0 %3020
      %3022 = vrot.lane.b32.xlu0 %v2889, 8
      %v3023 = vpop.permute.xlu0 %3022
      %3024 = vrot.lane.b32.xlu0 %v2895, 8
      %v3025 = vpop.permute.xlu0 %3024
      %3026 = vrot.lane.b32.xlu0 %v2898, 8
      %v3027 = vpop.permute.xlu0 %3026
      %3028 = vrot.lane.b32.xlu0 %v2904, 8
      %v3029 = vpop.permute.xlu0 %3028
      %3030 = vrot.lane.b32.xlu0 %v2907, 8
      %v3031 = vpop.permute.xlu0 %3030
      %3032 = vrot.lane.b32.xlu0 %v2913, 8
      %v3033 = vpop.permute.xlu0 %3032
      %3034 = vrot.lane.b32.xlu0 %v2916, 8
      %v3035 = vpop.permute.xlu0 %3034
      %3036 = vrot.lane.b32.xlu0 %v2922, 8
      %v3037 = vpop.permute.xlu0 %3036
      %3038 = vrot.lane.b32.xlu0 %v2925, 8
      %v3039 = vpop.permute.xlu0 %3038
      %3040 = vrot.lane.b32.xlu0 %v2931, 8
      %v3041 = vpop.permute.xlu0 %3040
      %3042 = vrot.lane.b32.xlu0 %v2934, 8
      %v3043 = vpop.permute.xlu0 %3042
      %3044 = vrot.lane.b32.xlu0 %v2940, 8
      %v3045 = vpop.permute.xlu0 %3044
      %3046 = vrot.lane.b32.xlu0 %v2943, 8
      %v3047 = vpop.permute.xlu0 %3046
      %3048 = vrot.lane.b32.xlu0 %v2949, 8
      %v3049 = vpop.permute.xlu0 %3048
      %3050 = vrot.lane.b32.xlu0 %v2952, 8
      %v3051 = vpop.permute.xlu0 %3050
      %3052 = vrot.lane.b32.xlu0 %v2958, 8
      %v3053 = vpop.permute.xlu0 %3052
      %3054 = vrot.lane.b32.xlu0 %v2961, 8
      %v3055 = vpop.permute.xlu0 %3054
      %3056 = vrot.lane.b32.xlu0 %v2967, 8
      %v3057 = vpop.permute.xlu0 %3056
      %3058 = vrot.lane.b32.xlu0 %v2970, 8
      %v3059 = vpop.permute.xlu0 %3058
      %3060 = vrot.lane.b32.xlu0 %v2976, 8
      %v3061 = vpop.permute.xlu0 %3060
      %3062 = vrot.lane.b32.xlu0 %v2979, 8
      %v3063 = vpop.permute.xlu0 %3062
      %3064 = vrot.lane.b32.xlu0 %v2985, 8
      %v3065 = vpop.permute.xlu0 %3064
      %3066 = vrot.lane.b32.xlu0 %v2988, 8
      %v3067 = vpop.permute.xlu0 %3066
      %3068 = vrot.lane.b32.xlu0 %v2994, 8
      %v3069 = vpop.permute.xlu0 %3068
      %3070 = vrot.lane.b32.xlu0 %v2997, 8
      %v3071 = vpop.permute.xlu0 %3070
      %3072 = vrot.lane.b32.xlu0 %v3003, 8
      %v3073 = vpop.permute.xlu0 %3072
      %3074 = vrot.lane.b32.xlu0 %v3006, 8
      %v3075 = vpop.permute.xlu0 %3074
      %3076 = vrot.lane.b32.xlu0 %v3012, 8
      %v3077 = vpop.permute.xlu0 %3076
      %3078 = vrot.lane.b32.xlu0 %v3015, 8
      %v3079 = vpop.permute.xlu0 %3078
      %3112 = vst.msk [vmem:[%s386] sm:$0xf] %vm1022, %v3017
      %v3113 = vld [vmem:[%s386 + $0x4] sm:$0xf]
      %v3114 = vsel %vm1025, %v3019, %v3113
      %3115 = vst [vmem:[%s386 + $0x4] sm:$0xf] %v3114
      %3116 = vst.msk [vmem:[%s386 + $0x8] sm:$0xf] %vm1022, %v3021
      %v3117 = vld [vmem:[%s386 + $0xc] sm:$0xf]
      %v3118 = vsel %vm1025, %v3023, %v3117
      %3119 = vst [vmem:[%s386 + $0xc] sm:$0xf] %v3118
      %3120 = vst.msk [vmem:[%s386 + $0x10] sm:$0xf] %vm1022, %v3025
      %v3121 = vld [vmem:[%s386 + $0x14] sm:$0xf]
      %v3122 = vsel %vm1025, %v3027, %v3121
      %3123 = vst [vmem:[%s386 + $0x14] sm:$0xf] %v3122
      %3124 = vst.msk [vmem:[%s386 + $0x18] sm:$0xf] %vm1022, %v3029
      %v3125 = vld [vmem:[%s386 + $0x1c] sm:$0xf]
      %v3126 = vsel %vm1025, %v3031, %v3125
      %3127 = vst [vmem:[%s386 + $0x1c] sm:$0xf] %v3126
      %3128 = vst.msk [vmem:[%s386 + $0x20] sm:$0xf] %vm1022, %v3033
      %v3129 = vld [vmem:[%s386 + $0x24] sm:$0xf]
      %v3130 = vsel %vm1025, %v3035, %v3129
      %3131 = vst [vmem:[%s386 + $0x24] sm:$0xf] %v3130
      %3132 = vst.msk [vmem:[%s386 + $0x28] sm:$0xf] %vm1022, %v3037
      %v3133 = vld [vmem:[%s386 + $0x2c] sm:$0xf]
      %v3134 = vsel %vm1025, %v3039, %v3133
      %3135 = vst [vmem:[%s386 + $0x2c] sm:$0xf] %v3134
      %3136 = vst.msk [vmem:[%s386 + $0x30] sm:$0xf] %vm1022, %v3041
      %v3137 = vld [vmem:[%s386 + $0x34] sm:$0xf]
      %v3138 = vsel %vm1025, %v3043, %v3137
      %3139 = vst [vmem:[%s386 + $0x34] sm:$0xf] %v3138
      %3140 = vst.msk [vmem:[%s386 + $0x38] sm:$0xf] %vm1022, %v3045
      %v3141 = vld [vmem:[%s386 + $0x3c] sm:$0xf]
      %v3142 = vsel %vm1025, %v3047, %v3141
      %3143 = vst [vmem:[%s386 + $0x3c] sm:$0xf] %v3142
      %3144 = vst.msk [vmem:[%s386 + $0x40] sm:$0xf] %vm1022, %v3049
      %v3145 = vld [vmem:[%s386 + $0x44] sm:$0xf]
      %v3146 = vsel %vm1025, %v3051, %v3145
      %3147 = vst [vmem:[%s386 + $0x44] sm:$0xf] %v3146
      %3148 = vst.msk [vmem:[%s386 + $0x48] sm:$0xf] %vm1022, %v3053
      %v3149 = vld [vmem:[%s386 + $0x4c] sm:$0xf]
      %v3150 = vsel %vm1025, %v3055, %v3149
      %3151 = vst [vmem:[%s386 + $0x4c] sm:$0xf] %v3150
      %3152 = vst.msk [vmem:[%s386 + $0x50] sm:$0xf] %vm1022, %v3057
      %v3153 = vld [vmem:[%s386 + $0x54] sm:$0xf]
      %v3154 = vsel %vm1025, %v3059, %v3153
      %3155 = vst [vmem:[%s386 + $0x54] sm:$0xf] %v3154
      %3156 = vst.msk [vmem:[%s386 + $0x58] sm:$0xf] %vm1022, %v3061
      %v3157 = vld [vmem:[%s386 + $0x5c] sm:$0xf]
      %v3158 = vsel %vm1025, %v3063, %v3157
      %3159 = vst [vmem:[%s386 + $0x5c] sm:$0xf] %v3158
      %3160 = vst.msk [vmem:[%s386 + $0x60] sm:$0xf] %vm1022, %v3065
      %v3161 = vld [vmem:[%s386 + $0x64] sm:$0xf]
      %v3162 = vsel %vm1025, %v3067, %v3161
      %3163 = vst [vmem:[%s386 + $0x64] sm:$0xf] %v3162
      %3164 = vst.msk [vmem:[%s386 + $0x68] sm:$0xf] %vm1022, %v3069
      %v3165 = vld [vmem:[%s386 + $0x6c] sm:$0xf]
      %v3166 = vsel %vm1025, %v3071, %v3165
      %3167 = vst [vmem:[%s386 + $0x6c] sm:$0xf] %v3166
      %3168 = vst.msk [vmem:[%s386 + $0x70] sm:$0xf] %vm1022, %v3073
      %v3169 = vld [vmem:[%s386 + $0x74] sm:$0xf]
      %v3170 = vsel %vm1025, %v3075, %v3169
      %3171 = vst [vmem:[%s386 + $0x74] sm:$0xf] %v3170
      %3172 = vst.msk [vmem:[%s386 + $0x78] sm:$0xf] %vm1022, %v3077
      %v3173 = vld [vmem:[%s386 + $0x7c] sm:$0xf]
      %v3174 = vsel %vm1025, %v3079, %v3173
      %3175 = vst [vmem:[%s386 + $0x7c] sm:$0xf] %v3174
      %v3176 = vld [vmem:[#allocation2] sm:$0xf]
      %v3177 = vld [vmem:[#allocation2 + $0x4] sm:$0xf]
      %v3178 = vld [vmem:[#allocation2 + $0x8] sm:$0xf]
      %v3179 = vld [vmem:[#allocation2 + $0xc] sm:$0xf]
      %v3180 = vld [vmem:[#allocation2 + $0x10] sm:$0xf]
      %v3181 = vld [vmem:[#allocation2 + $0x14] sm:$0xf]
      %v3182 = vld [vmem:[#allocation2 + $0x18] sm:$0xf]
      %v3183 = vld [vmem:[#allocation2 + $0x1c] sm:$0xf]
      %v3184 = vld [vmem:[#allocation2 + $0x20] sm:$0xf]
      %v3185 = vld [vmem:[#allocation2 + $0x24] sm:$0xf]
      %v3186 = vld [vmem:[#allocation2 + $0x28] sm:$0xf]
      %v3187 = vld [vmem:[#allocation2 + $0x2c] sm:$0xf]
      %v3188 = vld [vmem:[#allocation2 + $0x30] sm:$0xf]
      %v3189 = vld [vmem:[#allocation2 + $0x34] sm:$0xf]
      %v3190 = vld [vmem:[#allocation2 + $0x38] sm:$0xf]
      %v3191 = vld [vmem:[#allocation2 + $0x3c] sm:$0xf]
      %v3192 = vld [vmem:[#allocation2 + $0x40] sm:$0xf]
      %v3193 = vld [vmem:[#allocation2 + $0x44] sm:$0xf]
      %v3194 = vld [vmem:[#allocation2 + $0x48] sm:$0xf]
      %v3195 = vld [vmem:[#allocation2 + $0x4c] sm:$0xf]
      %v3196 = vld [vmem:[#allocation2 + $0x50] sm:$0xf]
      %v3197 = vld [vmem:[#allocation2 + $0x54] sm:$0xf]
      %v3198 = vld [vmem:[#allocation2 + $0x58] sm:$0xf]
      %v3199 = vld [vmem:[#allocation2 + $0x5c] sm:$0xf]
      %v3200 = vld [vmem:[#allocation2 + $0x60] sm:$0xf]
      %v3201 = vld [vmem:[#allocation2 + $0x64] sm:$0xf]
      %v3202 = vld [vmem:[#allocation2 + $0x68] sm:$0xf]
      %v3203 = vld [vmem:[#allocation2 + $0x6c] sm:$0xf]
      %v3204 = vld [vmem:[#allocation2 + $0x70] sm:$0xf]
      %v3205 = vld [vmem:[#allocation2 + $0x74] sm:$0xf]
      %v3206 = vld [vmem:[#allocation2 + $0x78] sm:$0xf]
      %v3207 = vld [vmem:[#allocation2 + $0x7c] sm:$0xf]
      %v3208 = vld [vmem:[%s2] sm:$0xf]
      %v3209 = vld [vmem:[%s2 + $0x4] sm:$0x3]
      %v3210 = vld [vmem:[%s386] sm:$0xf]
      %v3211 = vld [vmem:[%s386 + $0x4] sm:$0xf]
      %v3212 = vld [vmem:[%s386 + $0x8] sm:$0xf]
      %v3213 = vld [vmem:[%s386 + $0xc] sm:$0xf]
      %v3214 = vld [vmem:[%s386 + $0x10] sm:$0xf]
      %v3215 = vld [vmem:[%s386 + $0x14] sm:$0xf]
      %v3216 = vld [vmem:[%s386 + $0x18] sm:$0xf]
      %v3217 = vld [vmem:[%s386 + $0x1c] sm:$0xf]
      %v3218 = vld [vmem:[%s386 + $0x20] sm:$0xf]
      %v3219 = vld [vmem:[%s386 + $0x24] sm:$0xf]
      %v3220 = vld [vmem:[%s386 + $0x28] sm:$0xf]
      %v3221 = vld [vmem:[%s386 + $0x2c] sm:$0xf]
      %v3222 = vld [vmem:[%s386 + $0x30] sm:$0xf]
      %v3223 = vld [vmem:[%s386 + $0x34] sm:$0xf]
      %v3224 = vld [vmem:[%s386 + $0x38] sm:$0xf]
      %v3225 = vld [vmem:[%s386 + $0x3c] sm:$0xf]
      %v3226 = vld [vmem:[%s386 + $0x40] sm:$0xf]
      %v3227 = vld [vmem:[%s386 + $0x44] sm:$0xf]
      %v3228 = vld [vmem:[%s386 + $0x48] sm:$0xf]
      %v3229 = vld [vmem:[%s386 + $0x4c] sm:$0xf]
      %v3230 = vld [vmem:[%s386 + $0x50] sm:$0xf]
      %v3231 = vld [vmem:[%s386 + $0x54] sm:$0xf]
      %v3232 = vld [vmem:[%s386 + $0x58] sm:$0xf]
      %v3233 = vld [vmem:[%s386 + $0x5c] sm:$0xf]
      %v3234 = vld [vmem:[%s386 + $0x60] sm:$0xf]
      %v3235 = vld [vmem:[%s386 + $0x64] sm:$0xf]
      %v3236 = vld [vmem:[%s386 + $0x68] sm:$0xf]
      %v3237 = vld [vmem:[%s386 + $0x6c] sm:$0xf]
      %v3238 = vld [vmem:[%s386 + $0x70] sm:$0xf]
      %v3239 = vld [vmem:[%s386 + $0x74] sm:$0xf]
      %v3240 = vld [vmem:[%s386 + $0x78] sm:$0xf]
      %v3241 = vld [vmem:[%s386 + $0x7c] sm:$0xf]
      %v3242 = vld [vmem:[%s2 + $0x4] sm:$0xc]
      %v3243 = vld [vmem:[%s2 + $0x8] sm:$0xf]
      %v3276 = vunpack.c.l.b16 %v3210
      %v3277 = vunpack.c.l.b16 %v3211
      %v3278 = vunpack.c.l.b16 %v3212
      %v3279 = vunpack.c.l.b16 %v3213
      %v3280 = vunpack.c.l.b16 %v3214
      %v3281 = vunpack.c.l.b16 %v3215
      %v3282 = vunpack.c.l.b16 %v3216
      %v3283 = vunpack.c.l.b16 %v3217
      %v3284 = vunpack.c.l.b16 %v3218
      %v3285 = vunpack.c.l.b16 %v3219
      %v3286 = vunpack.c.l.b16 %v3220
      %v3287 = vunpack.c.l.b16 %v3221
      %v3288 = vunpack.c.l.b16 %v3222
      %v3289 = vunpack.c.l.b16 %v3223
      %v3290 = vunpack.c.l.b16 %v3224
      %v3291 = vunpack.c.l.b16 %v3225
      %v3292 = vunpack.c.l.b16 %v3226
      %v3293 = vunpack.c.l.b16 %v3227
      %v3294 = vunpack.c.l.b16 %v3228
      %v3295 = vunpack.c.l.b16 %v3229
      %v3296 = vunpack.c.l.b16 %v3230
      %v3297 = vunpack.c.l.b16 %v3231
      %v3298 = vunpack.c.l.b16 %v3232
      %v3299 = vunpack.c.l.b16 %v3233
      %v3300 = vunpack.c.l.b16 %v3234
      %v3301 = vunpack.c.l.b16 %v3235
      %v3302 = vunpack.c.l.b16 %v3236
      %v3303 = vunpack.c.l.b16 %v3237
      %v3304 = vunpack.c.l.b16 %v3238
      %v3305 = vunpack.c.l.b16 %v3239
      %v3306 = vunpack.c.l.b16 %v3240
      %v3307 = vunpack.c.l.b16 %v3241
      %v3308 = vpack.c.b16 %v3277, %v3276
      %v3309 = vpack.c.b16 %v3279, %v3278
      %v3310 = vpack.c.b16 %v3281, %v3280
      %v3311 = vpack.c.b16 %v3283, %v3282
      %v3312 = vpack.c.b16 %v3285, %v3284
      %v3313 = vpack.c.b16 %v3287, %v3286
      %v3314 = vpack.c.b16 %v3289, %v3288
      %v3315 = vpack.c.b16 %v3291, %v3290
      %v3316 = vpack.c.b16 %v3293, %v3292
      %v3317 = vpack.c.b16 %v3295, %v3294
      %v3318 = vpack.c.b16 %v3297, %v3296
      %v3319 = vpack.c.b16 %v3299, %v3298
      %v3320 = vpack.c.b16 %v3301, %v3300
      %v3321 = vpack.c.b16 %v3303, %v3302
      %v3322 = vpack.c.b16 %v3305, %v3304
      %v3323 = vpack.c.b16 %v3307, %v3306
      %v3326 = vunpack.c.l.b16 %v3242
      %v3327 = vunpack.c.l.b16 %v3243
      %v3328 = vpack.c.b16 %v3327, %v3326
      %v3329 = vrot.slane %v3328, 2
      %v3331 = vsel %vm1350, %v3308, 0
      %v3334 = vsel %vm1350, %v3309, 0
      %v3337 = vsel %vm1350, %v3310, 0
      %v3340 = vsel %vm1350, %v3311, 0
      %v3343 = vsel %vm1350, %v3312, 0
      %v3346 = vsel %vm1350, %v3313, 0
      %v3349 = vsel %vm1350, %v3314, 0
      %v3352 = vsel %vm1350, %v3315, 0
      %v3355 = vsel %vm1350, %v3316, 0
      %v3358 = vsel %vm1350, %v3317, 0
      %v3361 = vsel %vm1350, %v3318, 0
      %v3364 = vsel %vm1350, %v3319, 0
      %v3367 = vsel %vm1350, %v3320, 0
      %v3370 = vsel %vm1350, %v3321, 0
      %v3373 = vsel %vm1350, %v3322, 0
      %v3376 = vsel %vm1350, %v3323, 0
      %v3379 = vsel %vm1399, %v3329, 0
      %3381 = vmatprep.subr.bf16.mxu0 0
      %3382 = vmatpush1.bf16.msra.mxu0 0
      %3383 = vmatprep.subr.bf16.mxu0 0
      %3384 = vmatpush1.bf16.msra.mxu0 0
      %3385 = vmatprep.subr.bf16.mxu0 0
      %3386 = vmatpush1.bf16.msra.mxu0 0
      %3387 = vmatprep.subr.bf16.mxu0 0
      %3388 = vmatpush1.bf16.msra.mxu0 0
      %3389 = vmatprep.subr.bf16.mxu0 0
      %3390 = vmatpush1.bf16.msra.mxu0 0
      %3391 = vmatprep.subr.bf16.mxu0 0
      %3392 = vmatpush1.bf16.msra.mxu0 0
      %3393 = vmatprep.subr.bf16.mxu0 0
      %3394 = vmatpush1.bf16.msra.mxu0 0
      %3395 = vmatprep.subr.bf16.mxu0 0
      %3396 = vmatpush1.bf16.msra.mxu0 %v3379
      %3397 = vmatprep.subr.bf16.mxu0 0
      %3398 = vmatpush2.bf16.msra.mxu0 0
      %3399 = vmatprep.subr.bf16.mxu0 0
      %3400 = vmatpush2.bf16.msra.mxu0 0
      %3401 = vmatprep.subr.bf16.mxu0 0
      %3402 = vmatpush2.bf16.msra.mxu0 0
      %3403 = vmatprep.subr.bf16.mxu0 0
      %3404 = vmatpush2.bf16.msra.mxu0 0
      %3405 = vmatprep.subr.bf16.mxu0 0
      %3406 = vmatpush2.bf16.msra.mxu0 0
      %3407 = vmatprep.subr.bf16.mxu0 0
      %3408 = vmatpush2.bf16.msra.mxu0 0
      %3409 = vmatprep.subr.bf16.mxu0 0
      %3410 = vmatpush2.bf16.msra.mxu0 0
      %3411 = vmatprep.subr.bf16.mxu0 0
      %3412 = vmatpush2.bf16.msra.mxu0 0
      %3413 = vmatprep.mubr.bf16.mxu0 0
      %3414 = vmatmul.mubr.bf16.gmra.mxu0 %v3331
      %v3415 = vpop.f32.mrf.mxu0
      %v3416 = vadd.f32 0.0, %v3415
      %v3417 = vpop.f32.mrf.mxu0
      %v3418 = vpop.f32.mrf.mxu0
      %v3419 = vadd.f32 0.0, %v3418
      %v3420 = vpop.f32.mrf.mxu0
      %3421 = vmatprep.mubr.bf16.mxu0 0
      %3422 = vmatmul.mubr.bf16.gmra.mxu0 %v3334
      %v3423 = vpop.f32.mrf.mxu0
      %v3424 = vadd.f32 0.0, %v3423
      %v3425 = vpop.f32.mrf.mxu0
      %v3426 = vpop.f32.mrf.mxu0
      %v3427 = vadd.f32 0.0, %v3426
      %v3428 = vpop.f32.mrf.mxu0
      %3429 = vmatprep.mubr.bf16.mxu0 0
      %3430 = vmatmul.mubr.bf16.gmra.mxu0 %v3337
      %v3431 = vpop.f32.mrf.mxu0
      %v3432 = vadd.f32 0.0, %v3431
      %v3433 = vpop.f32.mrf.mxu0
      %v3434 = vpop.f32.mrf.mxu0
      %v3435 = vadd.f32 0.0, %v3434
      %v3436 = vpop.f32.mrf.mxu0
      %3437 = vmatprep.mubr.bf16.mxu0 0
      %3438 = vmatmul.mubr.bf16.gmra.mxu0 %v3340
      %v3439 = vpop.f32.mrf.mxu0
      %v3440 = vadd.f32 0.0, %v3439
      %v3441 = vpop.f32.mrf.mxu0
      %v3442 = vpop.f32.mrf.mxu0
      %v3443 = vadd.f32 0.0, %v3442
      %v3444 = vpop.f32.mrf.mxu0
      %3445 = vmatprep.mubr.bf16.mxu0 0
      %3446 = vmatmul.mubr.bf16.gmra.mxu0 %v3343
      %v3447 = vpop.f32.mrf.mxu0
      %v3448 = vadd.f32 0.0, %v3447
      %v3449 = vpop.f32.mrf.mxu0
      %v3450 = vpop.f32.mrf.mxu0
      %v3451 = vadd.f32 0.0, %v3450
      %v3452 = vpop.f32.mrf.mxu0
      %3453 = vmatprep.mubr.bf16.mxu0 0
      %3454 = vmatmul.mubr.bf16.gmra.mxu0 %v3346
      %v3455 = vpop.f32.mrf.mxu0
      %v3456 = vadd.f32 0.0, %v3455
      %v3457 = vpop.f32.mrf.mxu0
      %v3458 = vpop.f32.mrf.mxu0
      %v3459 = vadd.f32 0.0, %v3458
      %v3460 = vpop.f32.mrf.mxu0
      %3461 = vmatprep.mubr.bf16.mxu0 0
      %3462 = vmatmul.mubr.bf16.gmra.mxu0 %v3349
      %v3463 = vpop.f32.mrf.mxu0
      %v3464 = vadd.f32 0.0, %v3463
      %v3465 = vpop.f32.mrf.mxu0
      %v3466 = vpop.f32.mrf.mxu0
      %v3467 = vadd.f32 0.0, %v3466
      %v3468 = vpop.f32.mrf.mxu0
      %3469 = vmatprep.mubr.bf16.mxu0 0
      %3470 = vmatmul.mubr.bf16.gmra.mxu0 %v3352
      %v3471 = vpop.f32.mrf.mxu0
      %v3472 = vadd.f32 0.0, %v3471
      %v3473 = vpop.f32.mrf.mxu0
      %v3474 = vpop.f32.mrf.mxu0
      %v3475 = vadd.f32 0.0, %v3474
      %v3476 = vpop.f32.mrf.mxu0
      %3477 = vmatprep.mubr.bf16.mxu0 0
      %3478 = vmatmul.mubr.bf16.gmra.mxu0 %v3355
      %v3479 = vpop.f32.mrf.mxu0
      %v3480 = vadd.f32 0.0, %v3479
      %v3481 = vpop.f32.mrf.mxu0
      %v3482 = vpop.f32.mrf.mxu0
      %v3483 = vadd.f32 0.0, %v3482
      %v3484 = vpop.f32.mrf.mxu0
      %3485 = vmatprep.mubr.bf16.mxu0 0
      %3486 = vmatmul.mubr.bf16.gmra.mxu0 %v3358
      %v3487 = vpop.f32.mrf.mxu0
      %v3488 = vadd.f32 0.0, %v3487
      %v3489 = vpop.f32.mrf.mxu0
      %v3490 = vpop.f32.mrf.mxu0
      %v3491 = vadd.f32 0.0, %v3490
      %v3492 = vpop.f32.mrf.mxu0
      %3493 = vmatprep.mubr.bf16.mxu0 0
      %3494 = vmatmul.mubr.bf16.gmra.mxu0 %v3361
      %v3495 = vpop.f32.mrf.mxu0
      %v3496 = vadd.f32 0.0, %v3495
      %v3497 = vpop.f32.mrf.mxu0
      %v3498 = vpop.f32.mrf.mxu0
      %v3499 = vadd.f32 0.0, %v3498
      %v3500 = vpop.f32.mrf.mxu0
      %3501 = vmatprep.mubr.bf16.mxu0 0
      %3502 = vmatmul.mubr.bf16.gmra.mxu0 %v3364
      %v3503 = vpop.f32.mrf.mxu0
      %v3504 = vadd.f32 0.0, %v3503
      %v3505 = vpop.f32.mrf.mxu0
      %v3506 = vpop.f32.mrf.mxu0
      %v3507 = vadd.f32 0.0, %v3506
      %v3508 = vpop.f32.mrf.mxu0
      %3509 = vmatprep.mubr.bf16.mxu0 0
      %3510 = vmatmul.mubr.bf16.gmra.mxu0 %v3367
      %v3511 = vpop.f32.mrf.mxu0
      %v3512 = vadd.f32 0.0, %v3511
      %v3513 = vpop.f32.mrf.mxu0
      %v3514 = vpop.f32.mrf.mxu0
      %v3515 = vadd.f32 0.0, %v3514
      %v3516 = vpop.f32.mrf.mxu0
      %3517 = vmatprep.mubr.bf16.mxu0 0
      %3518 = vmatmul.mubr.bf16.gmra.mxu0 %v3370
      %v3519 = vpop.f32.mrf.mxu0
      %v3520 = vadd.f32 0.0, %v3519
      %v3521 = vpop.f32.mrf.mxu0
      %v3522 = vpop.f32.mrf.mxu0
      %v3523 = vadd.f32 0.0, %v3522
      %v3524 = vpop.f32.mrf.mxu0
      %3525 = vmatprep.mubr.bf16.mxu0 0
      %3526 = vmatmul.mubr.bf16.gmra.mxu0 %v3373
      %v3527 = vpop.f32.mrf.mxu0
      %v3528 = vadd.f32 0.0, %v3527
      %v3529 = vpop.f32.mrf.mxu0
      %v3530 = vpop.f32.mrf.mxu0
      %v3531 = vadd.f32 0.0, %v3530
      %v3532 = vpop.f32.mrf.mxu0
      %3533 = vmatprep.mubr.bf16.mxu0 0
      %3534 = vmatmul.mubr.bf16.gmra.mxu0 %v3376
      %v3535 = vpop.f32.mrf.mxu0
      %v3536 = vadd.f32 0.0, %v3535
      %v3537 = vpop.f32.mrf.mxu0
      %v3538 = vpop.f32.mrf.mxu0
      %v3539 = vadd.f32 0.0, %v3538
      %v3540 = vpop.f32.mrf.mxu0
      %3541 = vdwg.mxu0
      %v3574 = vunpack.c.l.b16 %v3176
      %v3575 = vunpack.c.l.b16 %v3177
      %v3576 = vunpack.c.l.b16 %v3178
      %v3577 = vunpack.c.l.b16 %v3179
      %v3578 = vunpack.c.l.b16 %v3180
      %v3579 = vunpack.c.l.b16 %v3181
      %v3580 = vunpack.c.l.b16 %v3182
      %v3581 = vunpack.c.l.b16 %v3183
      %v3582 = vunpack.c.l.b16 %v3184
      %v3583 = vunpack.c.l.b16 %v3185
      %v3584 = vunpack.c.l.b16 %v3186
      %v3585 = vunpack.c.l.b16 %v3187
      %v3586 = vunpack.c.l.b16 %v3188
      %v3587 = vunpack.c.l.b16 %v3189
      %v3588 = vunpack.c.l.b16 %v3190
      %v3589 = vunpack.c.l.b16 %v3191
      %v3590 = vunpack.c.l.b16 %v3192
      %v3591 = vunpack.c.l.b16 %v3193
      %v3592 = vunpack.c.l.b16 %v3194
      %v3593 = vunpack.c.l.b16 %v3195
      %v3594 = vunpack.c.l.b16 %v3196
      %v3595 = vunpack.c.l.b16 %v3197
      %v3596 = vunpack.c.l.b16 %v3198
      %v3597 = vunpack.c.l.b16 %v3199
      %v3598 = vunpack.c.l.b16 %v3200
      %v3599 = vunpack.c.l.b16 %v3201
      %v3600 = vunpack.c.l.b16 %v3202
      %v3601 = vunpack.c.l.b16 %v3203
      %v3602 = vunpack.c.l.b16 %v3204
      %v3603 = vunpack.c.l.b16 %v3205
      %v3604 = vunpack.c.l.b16 %v3206
      %v3605 = vunpack.c.l.b16 %v3207
      %v3606 = vpack.c.b16 %v3575, %v3574
      %v3607 = vpack.c.b16 %v3577, %v3576
      %v3608 = vpack.c.b16 %v3579, %v3578
      %v3609 = vpack.c.b16 %v3581, %v3580
      %v3610 = vpack.c.b16 %v3583, %v3582
      %v3611 = vpack.c.b16 %v3585, %v3584
      %v3612 = vpack.c.b16 %v3587, %v3586
      %v3613 = vpack.c.b16 %v3589, %v3588
      %v3614 = vpack.c.b16 %v3591, %v3590
      %v3615 = vpack.c.b16 %v3593, %v3592
      %v3616 = vpack.c.b16 %v3595, %v3594
      %v3617 = vpack.c.b16 %v3597, %v3596
      %v3618 = vpack.c.b16 %v3599, %v3598
      %v3619 = vpack.c.b16 %v3601, %v3600
      %v3620 = vpack.c.b16 %v3603, %v3602
      %v3621 = vpack.c.b16 %v3605, %v3604
      %v3624 = vunpack.c.l.b16 %v3208
      %v3625 = vunpack.c.l.b16 %v3209
      %v3626 = vpack.c.b16 %v3625, %v3624
      %v3628 = vsel %vm1350, %v3606, 0
      %v3631 = vsel %vm1350, %v3607, 0
      %v3634 = vsel %vm1350, %v3608, 0
      %v3637 = vsel %vm1350, %v3609, 0
      %v3640 = vsel %vm1350, %v3610, 0
      %v3643 = vsel %vm1350, %v3611, 0
      %v3646 = vsel %vm1350, %v3612, 0
      %v3649 = vsel %vm1350, %v3613, 0
      %v3652 = vsel %vm1350, %v3614, 0
      %v3655 = vsel %vm1350, %v3615, 0
      %v3658 = vsel %vm1350, %v3616, 0
      %v3661 = vsel %vm1350, %v3617, 0
      %v3664 = vsel %vm1350, %v3618, 0
      %v3667 = vsel %vm1350, %v3619, 0
      %v3670 = vsel %vm1350, %v3620, 0
      %v3673 = vsel %vm1350, %v3621, 0
      %v3676 = vsel %vm1399, %v3626, 0
      %3678 = vmatprep.subr.bf16.mxu0 0
      %3679 = vmatpush1.bf16.msra.mxu0 0
      %3680 = vmatprep.subr.bf16.mxu0 0
      %3681 = vmatpush1.bf16.msra.mxu0 0
      %3682 = vmatprep.subr.bf16.mxu0 0
      %3683 = vmatpush1.bf16.msra.mxu0 0
      %3684 = vmatprep.subr.bf16.mxu0 0
      %3685 = vmatpush1.bf16.msra.mxu0 0
      %3686 = vmatprep.subr.bf16.mxu0 0
      %3687 = vmatpush1.bf16.msra.mxu0 0
      %3688 = vmatprep.subr.bf16.mxu0 0
      %3689 = vmatpush1.bf16.msra.mxu0 0
      %3690 = vmatprep.subr.bf16.mxu0 0
      %3691 = vmatpush1.bf16.msra.mxu0 0
      %3692 = vmatprep.subr.bf16.mxu0 0
      %3693 = vmatpush1.bf16.msra.mxu0 %v3676
      %3694 = vmatprep.subr.bf16.mxu0 0
      %3695 = vmatpush2.bf16.msra.mxu0 0
      %3696 = vmatprep.subr.bf16.mxu0 0
      %3697 = vmatpush2.bf16.msra.mxu0 0
      %3698 = vmatprep.subr.bf16.mxu0 0
      %3699 = vmatpush2.bf16.msra.mxu0 0
      %3700 = vmatprep.subr.bf16.mxu0 0
      %3701 = vmatpush2.bf16.msra.mxu0 0
      %3702 = vmatprep.subr.bf16.mxu0 0
      %3703 = vmatpush2.bf16.msra.mxu0 0
      %3704 = vmatprep.subr.bf16.mxu0 0
      %3705 = vmatpush2.bf16.msra.mxu0 0
      %3706 = vmatprep.subr.bf16.mxu0 0
      %3707 = vmatpush2.bf16.msra.mxu0 0
      %3708 = vmatprep.subr.bf16.mxu0 0
      %3709 = vmatpush2.bf16.msra.mxu0 0
      %3710 = vmatprep.mubr.bf16.mxu0 0
      %3711 = vmatmul.mubr.bf16.gmra.mxu0 %v3628
      %v3712 = vpop.f32.mrf.mxu0
      %v3713 = vadd.f32 %v3416, %v3712
      %v3714 = vpop.f32.mrf.mxu0
      %v3715 = vpop.f32.mrf.mxu0
      %v3716 = vadd.f32 %v3419, %v3715
      %v3717 = vpop.f32.mrf.mxu0
      %3718 = vmatprep.mubr.bf16.mxu0 0
      %3719 = vmatmul.mubr.bf16.gmra.mxu0 %v3631
      %v3720 = vpop.f32.mrf.mxu0
      %v3721 = vadd.f32 %v3424, %v3720
      %v3722 = vpop.f32.mrf.mxu0
      %v3723 = vpop.f32.mrf.mxu0
      %v3724 = vadd.f32 %v3427, %v3723
      %v3725 = vpop.f32.mrf.mxu0
      %3726 = vmatprep.mubr.bf16.mxu0 0
      %3727 = vmatmul.mubr.bf16.gmra.mxu0 %v3634
      %v3728 = vpop.f32.mrf.mxu0
      %v3729 = vadd.f32 %v3432, %v3728
      %v3730 = vpop.f32.mrf.mxu0
      %v3731 = vpop.f32.mrf.mxu0
      %v3732 = vadd.f32 %v3435, %v3731
      %v3733 = vpop.f32.mrf.mxu0
      %3734 = vmatprep.mubr.bf16.mxu0 0
      %3735 = vmatmul.mubr.bf16.gmra.mxu0 %v3637
      %v3736 = vpop.f32.mrf.mxu0
      %v3737 = vadd.f32 %v3440, %v3736
      %v3738 = vpop.f32.mrf.mxu0
      %v3739 = vpop.f32.mrf.mxu0
      %v3740 = vadd.f32 %v3443, %v3739
      %v3741 = vpop.f32.mrf.mxu0
      %3742 = vmatprep.mubr.bf16.mxu0 0
      %3743 = vmatmul.mubr.bf16.gmra.mxu0 %v3640
      %v3744 = vpop.f32.mrf.mxu0
      %v3745 = vadd.f32 %v3448, %v3744
      %v3746 = vpop.f32.mrf.mxu0
      %v3747 = vpop.f32.mrf.mxu0
      %v3748 = vadd.f32 %v3451, %v3747
      %v3749 = vpop.f32.mrf.mxu0
      %3750 = vmatprep.mubr.bf16.mxu0 0
      %3751 = vmatmul.mubr.bf16.gmra.mxu0 %v3643
      %v3752 = vpop.f32.mrf.mxu0
      %v3753 = vadd.f32 %v3456, %v3752
      %v3754 = vpop.f32.mrf.mxu0
      %v3755 = vpop.f32.mrf.mxu0
      %v3756 = vadd.f32 %v3459, %v3755
      %v3757 = vpop.f32.mrf.mxu0
      %3758 = vmatprep.mubr.bf16.mxu0 0
      %3759 = vmatmul.mubr.bf16.gmra.mxu0 %v3646
      %v3760 = vpop.f32.mrf.mxu0
      %v3761 = vadd.f32 %v3464, %v3760
      %v3762 = vpop.f32.mrf.mxu0
      %v3763 = vpop.f32.mrf.mxu0
      %v3764 = vadd.f32 %v3467, %v3763
      %v3765 = vpop.f32.mrf.mxu0
      %3766 = vmatprep.mubr.bf16.mxu0 0
      %3767 = vmatmul.mubr.bf16.gmra.mxu0 %v3649
      %v3768 = vpop.f32.mrf.mxu0
      %v3769 = vadd.f32 %v3472, %v3768
      %v3770 = vpop.f32.mrf.mxu0
      %v3771 = vpop.f32.mrf.mxu0
      %v3772 = vadd.f32 %v3475, %v3771
      %v3773 = vpop.f32.mrf.mxu0
      %3774 = vmatprep.mubr.bf16.mxu0 0
      %3775 = vmatmul.mubr.bf16.gmra.mxu0 %v3652
      %v3776 = vpop.f32.mrf.mxu0
      %v3777 = vadd.f32 %v3480, %v3776
      %v3778 = vpop.f32.mrf.mxu0
      %v3779 = vpop.f32.mrf.mxu0
      %v3780 = vadd.f32 %v3483, %v3779
      %v3781 = vpop.f32.mrf.mxu0
      %3782 = vmatprep.mubr.bf16.mxu0 0
      %3783 = vmatmul.mubr.bf16.gmra.mxu0 %v3655
      %v3784 = vpop.f32.mrf.mxu0
      %v3785 = vadd.f32 %v3488, %v3784
      %v3786 = vpop.f32.mrf.mxu0
      %v3787 = vpop.f32.mrf.mxu0
      %v3788 = vadd.f32 %v3491, %v3787
      %v3789 = vpop.f32.mrf.mxu0
      %3790 = vmatprep.mubr.bf16.mxu0 0
      %3791 = vmatmul.mubr.bf16.gmra.mxu0 %v3658
      %v3792 = vpop.f32.mrf.mxu0
      %v3793 = vadd.f32 %v3496, %v3792
      %v3794 = vpop.f32.mrf.mxu0
      %v3795 = vpop.f32.mrf.mxu0
      %v3796 = vadd.f32 %v3499, %v3795
      %v3797 = vpop.f32.mrf.mxu0
      %3798 = vmatprep.mubr.bf16.mxu0 0
      %3799 = vmatmul.mubr.bf16.gmra.mxu0 %v3661
      %v3800 = vpop.f32.mrf.mxu0
      %v3801 = vadd.f32 %v3504, %v3800
      %v3802 = vpop.f32.mrf.mxu0
      %v3803 = vpop.f32.mrf.mxu0
      %v3804 = vadd.f32 %v3507, %v3803
      %v3805 = vpop.f32.mrf.mxu0
      %3806 = vmatprep.mubr.bf16.mxu0 0
      %3807 = vmatmul.mubr.bf16.gmra.mxu0 %v3664
      %v3808 = vpop.f32.mrf.mxu0
      %v3809 = vadd.f32 %v3512, %v3808
      %v3810 = vpop.f32.mrf.mxu0
      %v3811 = vpop.f32.mrf.mxu0
      %v3812 = vadd.f32 %v3515, %v3811
      %v3813 = vpop.f32.mrf.mxu0
      %3814 = vmatprep.mubr.bf16.mxu0 0
      %3815 = vmatmul.mubr.bf16.gmra.mxu0 %v3667
      %v3816 = vpop.f32.mrf.mxu0
      %v3817 = vadd.f32 %v3520, %v3816
      %v3818 = vpop.f32.mrf.mxu0
      %v3819 = vpop.f32.mrf.mxu0
      %v3820 = vadd.f32 %v3523, %v3819
      %v3821 = vpop.f32.mrf.mxu0
      %3822 = vmatprep.mubr.bf16.mxu0 0
      %3823 = vmatmul.mubr.bf16.gmra.mxu0 %v3670
      %v3824 = vpop.f32.mrf.mxu0
      %v3825 = vadd.f32 %v3528, %v3824
      %v3826 = vpop.f32.mrf.mxu0
      %v3827 = vpop.f32.mrf.mxu0
      %v3828 = vadd.f32 %v3531, %v3827
      %v3829 = vpop.f32.mrf.mxu0
      %3830 = vmatprep.mubr.bf16.mxu0 0
      %3831 = vmatmul.mubr.bf16.gmra.mxu0 %v3673
      %v3832 = vpop.f32.mrf.mxu0
      %v3833 = vadd.f32 %v3536, %v3832
      %v3834 = vpop.f32.mrf.mxu0
      %v3835 = vpop.f32.mrf.mxu0
      %v3836 = vadd.f32 %v3539, %v3835
      %v3837 = vpop.f32.mrf.mxu0
      %3838 = vdwg.mxu0
      %v3839 = vld [vmem:[%s1861] sm:$0xf]
      %v3840 = vld [vmem:[%s1861 + $0x4] sm:$0xf]
      %v3841 = vld [vmem:[%s1861 + $0x8] sm:$0xf]
      %v3842 = vld [vmem:[%s1861 + $0xc] sm:$0xf]
      %v3843 = vld [vmem:[%s1861 + $0x10] sm:$0xf]
      %v3844 = vld [vmem:[%s1861 + $0x14] sm:$0xf]
      %v3845 = vld [vmem:[%s1861 + $0x18] sm:$0xf]
      %v3846 = vld [vmem:[%s1861 + $0x1c] sm:$0xf]
      %v3847 = vld [vmem:[%s1861 + $0x20] sm:$0xf]
      %v3848 = vld [vmem:[%s1861 + $0x24] sm:$0xf]
      %v3849 = vld [vmem:[%s1861 + $0x28] sm:$0xf]
      %v3850 = vld [vmem:[%s1861 + $0x2c] sm:$0xf]
      %v3851 = vld [vmem:[%s1861 + $0x30] sm:$0xf]
      %v3852 = vld [vmem:[%s1861 + $0x34] sm:$0xf]
      %v3853 = vld [vmem:[%s1861 + $0x38] sm:$0xf]
      %v3854 = vld [vmem:[%s1861 + $0x3c] sm:$0xf]
      %v3855 = vld [vmem:[%s1861 + $0x40] sm:$0xf]
      %v3856 = vld [vmem:[%s1861 + $0x44] sm:$0xf]
      %v3857 = vld [vmem:[%s1861 + $0x48] sm:$0xf]
      %v3858 = vld [vmem:[%s1861 + $0x4c] sm:$0xf]
      %v3859 = vld [vmem:[%s1861 + $0x50] sm:$0xf]
      %v3860 = vld [vmem:[%s1861 + $0x54] sm:$0xf]
      %v3861 = vld [vmem:[%s1861 + $0x58] sm:$0xf]
      %v3862 = vld [vmem:[%s1861 + $0x5c] sm:$0xf]
      %v3863 = vld [vmem:[%s1861 + $0x60] sm:$0xf]
      %v3864 = vld [vmem:[%s1861 + $0x64] sm:$0xf]
      %v3865 = vld [vmem:[%s1861 + $0x68] sm:$0xf]
      %v3866 = vld [vmem:[%s1861 + $0x6c] sm:$0xf]
      %v3867 = vld [vmem:[%s1861 + $0x70] sm:$0xf]
      %v3868 = vld [vmem:[%s1861 + $0x74] sm:$0xf]
      %v3869 = vld [vmem:[%s1861 + $0x78] sm:$0xf]
      %v3870 = vld [vmem:[%s1861 + $0x7c] sm:$0xf]
      %v3871 = vld [vmem:[%s2 + $0xc] sm:$0xf]
      %v3872 = vld [vmem:[%s2 + $0x10] sm:$0x3]
      %v3905 = vunpack.c.l.b16 %v3839
      %v3906 = vunpack.c.l.b16 %v3840
      %v3907 = vunpack.c.l.b16 %v3841
      %v3908 = vunpack.c.l.b16 %v3842
      %v3909 = vunpack.c.l.b16 %v3843
      %v3910 = vunpack.c.l.b16 %v3844
      %v3911 = vunpack.c.l.b16 %v3845
      %v3912 = vunpack.c.l.b16 %v3846
      %v3913 = vunpack.c.l.b16 %v3847
      %v3914 = vunpack.c.l.b16 %v3848
      %v3915 = vunpack.c.l.b16 %v3849
      %v3916 = vunpack.c.l.b16 %v3850
      %v3917 = vunpack.c.l.b16 %v3851
      %v3918 = vunpack.c.l.b16 %v3852
      %v3919 = vunpack.c.l.b16 %v3853
      %v3920 = vunpack.c.l.b16 %v3854
      %v3921 = vunpack.c.l.b16 %v3855
      %v3922 = vunpack.c.l.b16 %v3856
      %v3923 = vunpack.c.l.b16 %v3857
      %v3924 = vunpack.c.l.b16 %v3858
      %v3925 = vunpack.c.l.b16 %v3859
      %v3926 = vunpack.c.l.b16 %v3860
      %v3927 = vunpack.c.l.b16 %v3861
      %v3928 = vunpack.c.l.b16 %v3862
      %v3929 = vunpack.c.l.b16 %v3863
      %v3930 = vunpack.c.l.b16 %v3864
      %v3931 = vunpack.c.l.b16 %v3865
      %v3932 = vunpack.c.l.b16 %v3866
      %v3933 = vunpack.c.l.b16 %v3867
      %v3934 = vunpack.c.l.b16 %v3868
      %v3935 = vunpack.c.l.b16 %v3869
      %v3936 = vunpack.c.l.b16 %v3870
      %v3937 = vpack.c.b16 %v3906, %v3905
      %v3938 = vpack.c.b16 %v3908, %v3907
      %v3939 = vpack.c.b16 %v3910, %v3909
      %v3940 = vpack.c.b16 %v3912, %v3911
      %v3941 = vpack.c.b16 %v3914, %v3913
      %v3942 = vpack.c.b16 %v3916, %v3915
      %v3943 = vpack.c.b16 %v3918, %v3917
      %v3944 = vpack.c.b16 %v3920, %v3919
      %v3945 = vpack.c.b16 %v3922, %v3921
      %v3946 = vpack.c.b16 %v3924, %v3923
      %v3947 = vpack.c.b16 %v3926, %v3925
      %v3948 = vpack.c.b16 %v3928, %v3927
      %v3949 = vpack.c.b16 %v3930, %v3929
      %v3950 = vpack.c.b16 %v3932, %v3931
      %v3951 = vpack.c.b16 %v3934, %v3933
      %v3952 = vpack.c.b16 %v3936, %v3935
      %v3955 = vunpack.c.l.b16 %v3871
      %v3956 = vunpack.c.l.b16 %v3872
      %v3957 = vpack.c.b16 %v3956, %v3955
      %v3959 = vsel %vm1350, %v3937, 0
      %v3962 = vsel %vm1350, %v3938, 0
      %v3965 = vsel %vm1350, %v3939, 0
      %v3968 = vsel %vm1350, %v3940, 0
      %v3971 = vsel %vm1350, %v3941, 0
      %v3974 = vsel %vm1350, %v3942, 0
      %v3977 = vsel %vm1350, %v3943, 0
      %v3980 = vsel %vm1350, %v3944, 0
      %v3983 = vsel %vm1350, %v3945, 0
      %v3986 = vsel %vm1350, %v3946, 0
      %v3989 = vsel %vm1350, %v3947, 0
      %v3992 = vsel %vm1350, %v3948, 0
      %v3995 = vsel %vm1350, %v3949, 0
      %v3998 = vsel %vm1350, %v3950, 0
      %v4001 = vsel %vm1350, %v3951, 0
      %v4004 = vsel %vm1350, %v3952, 0
      %v4007 = vsel %vm1399, %v3957, 0
      %4009 = vmatprep.subr.bf16.mxu0 0
      %4010 = vmatpush1.bf16.msra.mxu0 0
      %4011 = vmatprep.subr.bf16.mxu0 0
      %4012 = vmatpush1.bf16.msra.mxu0 0
      %4013 = vmatprep.subr.bf16.mxu0 0
      %4014 = vmatpush1.bf16.msra.mxu0 0
      %4015 = vmatprep.subr.bf16.mxu0 0
      %4016 = vmatpush1.bf16.msra.mxu0 0
      %4017 = vmatprep.subr.bf16.mxu0 0
      %4018 = vmatpush1.bf16.msra.mxu0 0
      %4019 = vmatprep.subr.bf16.mxu0 0
      %4020 = vmatpush1.bf16.msra.mxu0 0
      %4021 = vmatprep.subr.bf16.mxu0 0
      %4022 = vmatpush1.bf16.msra.mxu0 0
      %4023 = vmatprep.subr.bf16.mxu0 0
      %4024 = vmatpush1.bf16.msra.mxu0 %v4007
      %4025 = vmatprep.subr.bf16.mxu0 0
      %4026 = vmatpush2.bf16.msra.mxu0 0
      %4027 = vmatprep.subr.bf16.mxu0 0
      %4028 = vmatpush2.bf16.msra.mxu0 0
      %4029 = vmatprep.subr.bf16.mxu0 0
      %4030 = vmatpush2.bf16.msra.mxu0 0
      %4031 = vmatprep.subr.bf16.mxu0 0
      %4032 = vmatpush2.bf16.msra.mxu0 0
      %4033 = vmatprep.subr.bf16.mxu0 0
      %4034 = vmatpush2.bf16.msra.mxu0 0
      %4035 = vmatprep.subr.bf16.mxu0 0
      %4036 = vmatpush2.bf16.msra.mxu0 0
      %4037 = vmatprep.subr.bf16.mxu0 0
      %4038 = vmatpush2.bf16.msra.mxu0 0
      %4039 = vmatprep.subr.bf16.mxu0 0
      %4040 = vmatpush2.bf16.msra.mxu0 0
      %4041 = vmatprep.mubr.bf16.mxu0 0
      %4042 = vmatmul.mubr.bf16.gmra.mxu0 %v3959
      %v4043 = vpop.f32.mrf.mxu0
      %v4044 = vadd.f32 0.0, %v4043
      %v4045 = vpop.f32.mrf.mxu0
      %v4046 = vpop.f32.mrf.mxu0
      %v4047 = vadd.f32 0.0, %v4046
      %v4048 = vpop.f32.mrf.mxu0
      %4049 = vmatprep.mubr.bf16.mxu0 0
      %4050 = vmatmul.mubr.bf16.gmra.mxu0 %v3962
      %v4051 = vpop.f32.mrf.mxu0
      %v4052 = vadd.f32 0.0, %v4051
      %v4053 = vpop.f32.mrf.mxu0
      %v4054 = vpop.f32.mrf.mxu0
      %v4055 = vadd.f32 0.0, %v4054
      %v4056 = vpop.f32.mrf.mxu0
      %4057 = vmatprep.mubr.bf16.mxu0 0
      %4058 = vmatmul.mubr.bf16.gmra.mxu0 %v3965
      %v4059 = vpop.f32.mrf.mxu0
      %v4060 = vadd.f32 0.0, %v4059
      %v4061 = vpop.f32.mrf.mxu0
      %v4062 = vpop.f32.mrf.mxu0
      %v4063 = vadd.f32 0.0, %v4062
      %v4064 = vpop.f32.mrf.mxu0
      %4065 = vmatprep.mubr.bf16.mxu0 0
      %4066 = vmatmul.mubr.bf16.gmra.mxu0 %v3968
      %v4067 = vpop.f32.mrf.mxu0
      %v4068 = vadd.f32 0.0, %v4067
      %v4069 = vpop.f32.mrf.mxu0
      %v4070 = vpop.f32.mrf.mxu0
      %v4071 = vadd.f32 0.0, %v4070
      %v4072 = vpop.f32.mrf.mxu0
      %4073 = vmatprep.mubr.bf16.mxu0 0
      %4074 = vmatmul.mubr.bf16.gmra.mxu0 %v3971
      %v4075 = vpop.f32.mrf.mxu0
      %v4076 = vadd.f32 0.0, %v4075
      %v4077 = vpop.f32.mrf.mxu0
      %v4078 = vpop.f32.mrf.mxu0
      %v4079 = vadd.f32 0.0, %v4078
      %v4080 = vpop.f32.mrf.mxu0
      %4081 = vmatprep.mubr.bf16.mxu0 0
      %4082 = vmatmul.mubr.bf16.gmra.mxu0 %v3974
      %v4083 = vpop.f32.mrf.mxu0
      %v4084 = vadd.f32 0.0, %v4083
      %v4085 = vpop.f32.mrf.mxu0
      %v4086 = vpop.f32.mrf.mxu0
      %v4087 = vadd.f32 0.0, %v4086
      %v4088 = vpop.f32.mrf.mxu0
      %4089 = vmatprep.mubr.bf16.mxu0 0
      %4090 = vmatmul.mubr.bf16.gmra.mxu0 %v3977
      %v4091 = vpop.f32.mrf.mxu0
      %v4092 = vadd.f32 0.0, %v4091
      %v4093 = vpop.f32.mrf.mxu0
      %v4094 = vpop.f32.mrf.mxu0
      %v4095 = vadd.f32 0.0, %v4094
      %v4096 = vpop.f32.mrf.mxu0
      %4097 = vmatprep.mubr.bf16.mxu0 0
      %4098 = vmatmul.mubr.bf16.gmra.mxu0 %v3980
      %v4099 = vpop.f32.mrf.mxu0
      %v4100 = vadd.f32 0.0, %v4099
      %v4101 = vpop.f32.mrf.mxu0
      %v4102 = vpop.f32.mrf.mxu0
      %v4103 = vadd.f32 0.0, %v4102
      %v4104 = vpop.f32.mrf.mxu0
      %4105 = vmatprep.mubr.bf16.mxu0 0
      %4106 = vmatmul.mubr.bf16.gmra.mxu0 %v3983
      %v4107 = vpop.f32.mrf.mxu0
      %v4108 = vadd.f32 0.0, %v4107
      %v4109 = vpop.f32.mrf.mxu0
      %v4110 = vpop.f32.mrf.mxu0
      %v4111 = vadd.f32 0.0, %v4110
      %v4112 = vpop.f32.mrf.mxu0
      %4113 = vmatprep.mubr.bf16.mxu0 0
      %4114 = vmatmul.mubr.bf16.gmra.mxu0 %v3986
      %v4115 = vpop.f32.mrf.mxu0
      %v4116 = vadd.f32 0.0, %v4115
      %v4117 = vpop.f32.mrf.mxu0
      %v4118 = vpop.f32.mrf.mxu0
      %v4119 = vadd.f32 0.0, %v4118
      %v4120 = vpop.f32.mrf.mxu0
      %4121 = vmatprep.mubr.bf16.mxu0 0
      %4122 = vmatmul.mubr.bf16.gmra.mxu0 %v3989
      %v4123 = vpop.f32.mrf.mxu0
      %v4124 = vadd.f32 0.0, %v4123
      %v4125 = vpop.f32.mrf.mxu0
      %v4126 = vpop.f32.mrf.mxu0
      %v4127 = vadd.f32 0.0, %v4126
      %v4128 = vpop.f32.mrf.mxu0
      %4129 = vmatprep.mubr.bf16.mxu0 0
      %4130 = vmatmul.mubr.bf16.gmra.mxu0 %v3992
      %v4131 = vpop.f32.mrf.mxu0
      %v4132 = vadd.f32 0.0, %v4131
      %v4133 = vpop.f32.mrf.mxu0
      %v4134 = vpop.f32.mrf.mxu0
      %v4135 = vadd.f32 0.0, %v4134
      %v4136 = vpop.f32.mrf.mxu0
      %4137 = vmatprep.mubr.bf16.mxu0 0
      %4138 = vmatmul.mubr.bf16.gmra.mxu0 %v3995
      %v4139 = vpop.f32.mrf.mxu0
      %v4140 = vadd.f32 0.0, %v4139
      %v4141 = vpop.f32.mrf.mxu0
      %v4142 = vpop.f32.mrf.mxu0
      %v4143 = vadd.f32 0.0, %v4142
      %v4144 = vpop.f32.mrf.mxu0
      %4145 = vmatprep.mubr.bf16.mxu0 0
      %4146 = vmatmul.mubr.bf16.gmra.mxu0 %v3998
      %v4147 = vpop.f32.mrf.mxu0
      %v4148 = vadd.f32 0.0, %v4147
      %v4149 = vpop.f32.mrf.mxu0
      %v4150 = vpop.f32.mrf.mxu0
      %v4151 = vadd.f32 0.0, %v4150
      %v4152 = vpop.f32.mrf.mxu0
      %4153 = vmatprep.mubr.bf16.mxu0 0
      %4154 = vmatmul.mubr.bf16.gmra.mxu0 %v4001
      %v4155 = vpop.f32.mrf.mxu0
      %v4156 = vadd.f32 0.0, %v4155
      %v4157 = vpop.f32.mrf.mxu0
      %v4158 = vpop.f32.mrf.mxu0
      %v4159 = vadd.f32 0.0, %v4158
      %v4160 = vpop.f32.mrf.mxu0
      %4161 = vmatprep.mubr.bf16.mxu0 0
      %4162 = vmatmul.mubr.bf16.gmra.mxu0 %v4004
      %v4163 = vpop.f32.mrf.mxu0
      %v4164 = vadd.f32 0.0, %v4163
      %v4165 = vpop.f32.mrf.mxu0
      %v4166 = vpop.f32.mrf.mxu0
      %v4167 = vadd.f32 0.0, %v4166
      %v4168 = vpop.f32.mrf.mxu0
      %4169 = vdwg.mxu0
      %v4170 = vadd.f32 %v3713, %v4044
      %v4171 = vadd.f32 %v3716, %v4047
      %v4172 = vadd.f32 %v3721, %v4052
      %v4173 = vadd.f32 %v3724, %v4055
      %v4174 = vadd.f32 %v3729, %v4060
      %v4175 = vadd.f32 %v3732, %v4063
      %v4176 = vadd.f32 %v3737, %v4068
      %v4177 = vadd.f32 %v3740, %v4071
      %v4178 = vadd.f32 %v3745, %v4076
      %v4179 = vadd.f32 %v3748, %v4079
      %v4180 = vadd.f32 %v3753, %v4084
      %v4181 = vadd.f32 %v3756, %v4087
      %v4182 = vadd.f32 %v3761, %v4092
      %v4183 = vadd.f32 %v3764, %v4095
      %v4184 = vadd.f32 %v3769, %v4100
      %v4185 = vadd.f32 %v3772, %v4103
      %v4186 = vadd.f32 %v3777, %v4108
      %v4187 = vadd.f32 %v3780, %v4111
      %v4188 = vadd.f32 %v3785, %v4116
      %v4189 = vadd.f32 %v3788, %v4119
      %v4190 = vadd.f32 %v3793, %v4124
      %v4191 = vadd.f32 %v3796, %v4127
      %v4192 = vadd.f32 %v3801, %v4132
      %v4193 = vadd.f32 %v3804, %v4135
      %v4194 = vadd.f32 %v3809, %v4140
      %v4195 = vadd.f32 %v3812, %v4143
      %v4196 = vadd.f32 %v3817, %v4148
      %v4197 = vadd.f32 %v3820, %v4151
      %v4198 = vadd.f32 %v3825, %v4156
      %v4199 = vadd.f32 %v3828, %v4159
      %v4200 = vadd.f32 %v3833, %v4164
      %v4201 = vadd.f32 %v3836, %v4167
      %v4202 = vld [vmem:[%s4] sm:$0x1]
      %v4204 = vlaneseq
      %v4205 = vshrl.u32 %v4204, 7
      %v4206 = vsub.s32 0, %v4205
      %v4207 = vrot.slane %v4202, %v4206
      %v4209 = vadd.f32 %v4170, %v4207
      %v4210 = vadd.f32 %v4171, %v4207
      %v4211 = vadd.f32 %v4172, %v4207
      %v4212 = vadd.f32 %v4173, %v4207
      %v4213 = vadd.f32 %v4174, %v4207
      %v4214 = vadd.f32 %v4175, %v4207
      %v4215 = vadd.f32 %v4176, %v4207
      %v4216 = vadd.f32 %v4177, %v4207
      %v4217 = vadd.f32 %v4178, %v4207
      %v4218 = vadd.f32 %v4179, %v4207
      %v4219 = vadd.f32 %v4180, %v4207
      %v4220 = vadd.f32 %v4181, %v4207
      %v4221 = vadd.f32 %v4182, %v4207
      %v4222 = vadd.f32 %v4183, %v4207
      %v4223 = vadd.f32 %v4184, %v4207
      %v4224 = vadd.f32 %v4185, %v4207
      %v4225 = vadd.f32 %v4186, %v4207
      %v4226 = vadd.f32 %v4187, %v4207
      %v4227 = vadd.f32 %v4188, %v4207
      %v4228 = vadd.f32 %v4189, %v4207
      %v4229 = vadd.f32 %v4190, %v4207
      %v4230 = vadd.f32 %v4191, %v4207
      %v4231 = vadd.f32 %v4192, %v4207
      %v4232 = vadd.f32 %v4193, %v4207
      %v4233 = vadd.f32 %v4194, %v4207
      %v4234 = vadd.f32 %v4195, %v4207
      %v4235 = vadd.f32 %v4196, %v4207
      %v4236 = vadd.f32 %v4197, %v4207
      %v4237 = vadd.f32 %v4198, %v4207
      %v4238 = vadd.f32 %v4199, %v4207
      %v4239 = vadd.f32 %v4200, %v4207
      %v4240 = vadd.f32 %v4201, %v4207
      %v4241 = vld [vmem:[%s219] sm:$0xf]
      %v4242 = vld [vmem:[%s219 + $0x4] sm:$0xf]
      %v4243 = vld [vmem:[%s219 + $0x8] sm:$0xf]
      %v4244 = vld [vmem:[%s219 + $0xc] sm:$0xf]
      %v4245 = vld [vmem:[%s219 + $0x10] sm:$0xf]
      %v4246 = vld [vmem:[%s219 + $0x14] sm:$0xf]
      %v4247 = vld [vmem:[%s219 + $0x18] sm:$0xf]
      %v4248 = vld [vmem:[%s219 + $0x1c] sm:$0xf]
      %v4249 = vld [vmem:[%s219 + $0x20] sm:$0xf]
      %v4250 = vld [vmem:[%s219 + $0x24] sm:$0xf]
      %v4251 = vld [vmem:[%s219 + $0x28] sm:$0xf]
      %v4252 = vld [vmem:[%s219 + $0x2c] sm:$0xf]
      %v4253 = vld [vmem:[%s219 + $0x30] sm:$0xf]
      %v4254 = vld [vmem:[%s219 + $0x34] sm:$0xf]
      %v4255 = vld [vmem:[%s219 + $0x38] sm:$0xf]
      %v4256 = vld [vmem:[%s219 + $0x3c] sm:$0xf]
      %v4257 = vld [vmem:[%s219 + $0x40] sm:$0xf]
      %v4258 = vld [vmem:[%s219 + $0x44] sm:$0xf]
      %v4259 = vld [vmem:[%s219 + $0x48] sm:$0xf]
      %v4260 = vld [vmem:[%s219 + $0x4c] sm:$0xf]
      %v4261 = vld [vmem:[%s219 + $0x50] sm:$0xf]
      %v4262 = vld [vmem:[%s219 + $0x54] sm:$0xf]
      %v4263 = vld [vmem:[%s219 + $0x58] sm:$0xf]
      %v4264 = vld [vmem:[%s219 + $0x5c] sm:$0xf]
      %v4265 = vld [vmem:[%s219 + $0x60] sm:$0xf]
      %v4266 = vld [vmem:[%s219 + $0x64] sm:$0xf]
      %v4267 = vld [vmem:[%s219 + $0x68] sm:$0xf]
      %v4268 = vld [vmem:[%s219 + $0x6c] sm:$0xf]
      %v4269 = vld [vmem:[%s219 + $0x70] sm:$0xf]
      %v4270 = vld [vmem:[%s219 + $0x74] sm:$0xf]
      %v4271 = vld [vmem:[%s219 + $0x78] sm:$0xf]
      %v4272 = vld [vmem:[%s219 + $0x7c] sm:$0xf]
      %v4273 = vunpack.c.l.bf16 %v4241
      %v4274 = vunpack.c.l.bf16 %v4242
      %v4275 = vunpack.c.l.bf16 %v4243
      %v4276 = vunpack.c.l.bf16 %v4244
      %v4277 = vunpack.c.l.bf16 %v4245
      %v4278 = vunpack.c.l.bf16 %v4246
      %v4279 = vunpack.c.l.bf16 %v4247
      %v4280 = vunpack.c.l.bf16 %v4248
      %v4281 = vunpack.c.l.bf16 %v4249
      %v4282 = vunpack.c.l.bf16 %v4250
      %v4283 = vunpack.c.l.bf16 %v4251
      %v4284 = vunpack.c.l.bf16 %v4252
      %v4285 = vunpack.c.l.bf16 %v4253
      %v4286 = vunpack.c.l.bf16 %v4254
      %v4287 = vunpack.c.l.bf16 %v4255
      %v4288 = vunpack.c.l.bf16 %v4256
      %v4289 = vunpack.c.l.bf16 %v4257
      %v4290 = vunpack.c.l.bf16 %v4258
      %v4291 = vunpack.c.l.bf16 %v4259
      %v4292 = vunpack.c.l.bf16 %v4260
      %v4293 = vunpack.c.l.bf16 %v4261
      %v4294 = vunpack.c.l.bf16 %v4262
      %v4295 = vunpack.c.l.bf16 %v4263
      %v4296 = vunpack.c.l.bf16 %v4264
      %v4297 = vunpack.c.l.bf16 %v4265
      %v4298 = vunpack.c.l.bf16 %v4266
      %v4299 = vunpack.c.l.bf16 %v4267
      %v4300 = vunpack.c.l.bf16 %v4268
      %v4301 = vunpack.c.l.bf16 %v4269
      %v4302 = vunpack.c.l.bf16 %v4270
      %v4303 = vunpack.c.l.bf16 %v4271
      %v4304 = vunpack.c.l.bf16 %v4272
      %v4305 = vadd.f32 %v4209, %v4273
      %v4306 = vadd.f32 %v4210, %v4274
      %v4307 = vadd.f32 %v4211, %v4275
      %v4308 = vadd.f32 %v4212, %v4276
      %v4309 = vadd.f32 %v4213, %v4277
      %v4310 = vadd.f32 %v4214, %v4278
      %v4311 = vadd.f32 %v4215, %v4279
      %v4312 = vadd.f32 %v4216, %v4280
      %v4313 = vadd.f32 %v4217, %v4281
      %v4314 = vadd.f32 %v4218, %v4282
      %v4315 = vadd.f32 %v4219, %v4283
      %v4316 = vadd.f32 %v4220, %v4284
      %v4317 = vadd.f32 %v4221, %v4285
      %v4318 = vadd.f32 %v4222, %v4286
      %v4319 = vadd.f32 %v4223, %v4287
      %v4320 = vadd.f32 %v4224, %v4288
      %v4321 = vadd.f32 %v4225, %v4289
      %v4322 = vadd.f32 %v4226, %v4290
      %v4323 = vadd.f32 %v4227, %v4291
      %v4324 = vadd.f32 %v4228, %v4292
      %v4325 = vadd.f32 %v4229, %v4293
      %v4326 = vadd.f32 %v4230, %v4294
      %v4327 = vadd.f32 %v4231, %v4295
      %v4328 = vadd.f32 %v4232, %v4296
      %v4329 = vadd.f32 %v4233, %v4297
      %v4330 = vadd.f32 %v4234, %v4298
      %v4331 = vadd.f32 %v4235, %v4299
      %v4332 = vadd.f32 %v4236, %v4300
      %v4333 = vadd.f32 %v4237, %v4301
      %v4334 = vadd.f32 %v4238, %v4302
      %v4335 = vadd.f32 %v4239, %v4303
      %v4336 = vadd.f32 %v4240, %v4304
      %v4337 = vmax.f32 %v4305, 0.0
      %v4338 = vmax.f32 %v4306, 0.0
      %v4339 = vmax.f32 %v4307, 0.0
      %v4340 = vmax.f32 %v4308, 0.0
      %v4341 = vmax.f32 %v4309, 0.0
      %v4342 = vmax.f32 %v4310, 0.0
      %v4343 = vmax.f32 %v4311, 0.0
      %v4344 = vmax.f32 %v4312, 0.0
      %v4345 = vmax.f32 %v4313, 0.0
      %v4346 = vmax.f32 %v4314, 0.0
      %v4347 = vmax.f32 %v4315, 0.0
      %v4348 = vmax.f32 %v4316, 0.0
      %v4349 = vmax.f32 %v4317, 0.0
      %v4350 = vmax.f32 %v4318, 0.0
      %v4351 = vmax.f32 %v4319, 0.0
      %v4352 = vmax.f32 %v4320, 0.0
      %v4353 = vmax.f32 %v4321, 0.0
      %v4354 = vmax.f32 %v4322, 0.0
      %v4355 = vmax.f32 %v4323, 0.0
      %v4356 = vmax.f32 %v4324, 0.0
      %v4357 = vmax.f32 %v4325, 0.0
      %v4358 = vmax.f32 %v4326, 0.0
      %v4359 = vmax.f32 %v4327, 0.0
      %v4360 = vmax.f32 %v4328, 0.0
      %v4361 = vmax.f32 %v4329, 0.0
      %v4362 = vmax.f32 %v4330, 0.0
      %v4363 = vmax.f32 %v4331, 0.0
      %v4364 = vmax.f32 %v4332, 0.0
      %v4365 = vmax.f32 %v4333, 0.0
      %v4366 = vmax.f32 %v4334, 0.0
      %v4367 = vmax.f32 %v4335, 0.0
      %v4368 = vmax.f32 %v4336, 0.0
      %v4369 = vpack.c.bf16 %v4338, %v4337
      %v4370 = vpack.c.bf16 %v4340, %v4339
      %v4371 = vpack.c.bf16 %v4342, %v4341
      %v4372 = vpack.c.bf16 %v4344, %v4343
      %v4373 = vpack.c.bf16 %v4346, %v4345
      %v4374 = vpack.c.bf16 %v4348, %v4347
      %v4375 = vpack.c.bf16 %v4350, %v4349
      %v4376 = vpack.c.bf16 %v4352, %v4351
      %v4377 = vpack.c.bf16 %v4354, %v4353
      %v4378 = vpack.c.bf16 %v4356, %v4355
      %v4379 = vpack.c.bf16 %v4358, %v4357
      %v4380 = vpack.c.bf16 %v4360, %v4359
      %v4381 = vpack.c.bf16 %v4362, %v4361
      %v4382 = vpack.c.bf16 %v4364, %v4363
      %v4383 = vpack.c.bf16 %v4366, %v4365
      %v4384 = vpack.c.bf16 %v4368, %v4367
      %v4401 = vunpack.c.l.b16 %v4369
      %v4402 = vunpack.c.h.b16 %v4369
      %v4403 = vunpack.c.l.b16 %v4370
      %v4404 = vunpack.c.h.b16 %v4370
      %v4405 = vunpack.c.l.b16 %v4371
      %v4406 = vunpack.c.h.b16 %v4371
      %v4407 = vunpack.c.l.b16 %v4372
      %v4408 = vunpack.c.h.b16 %v4372
      %v4409 = vunpack.c.l.b16 %v4373
      %v4410 = vunpack.c.h.b16 %v4373
      %v4411 = vunpack.c.l.b16 %v4374
      %v4412 = vunpack.c.h.b16 %v4374
      %v4413 = vunpack.c.l.b16 %v4375
      %v4414 = vunpack.c.h.b16 %v4375
      %v4415 = vunpack.c.l.b16 %v4376
      %v4416 = vunpack.c.h.b16 %v4376
      %v4417 = vunpack.c.l.b16 %v4377
      %v4418 = vunpack.c.h.b16 %v4377
      %v4419 = vunpack.c.l.b16 %v4378
      %v4420 = vunpack.c.h.b16 %v4378
      %v4421 = vunpack.c.l.b16 %v4379
      %v4422 = vunpack.c.h.b16 %v4379
      %v4423 = vunpack.c.l.b16 %v4380
      %v4424 = vunpack.c.h.b16 %v4380
      %v4425 = vunpack.c.l.b16 %v4381
      %v4426 = vunpack.c.h.b16 %v4381
      %v4427 = vunpack.c.l.b16 %v4382
      %v4428 = vunpack.c.h.b16 %v4382
      %v4429 = vunpack.c.l.b16 %v4383
      %v4430 = vunpack.c.h.b16 %v4383
      %v4431 = vunpack.c.l.b16 %v4384
      %v4432 = vunpack.c.h.b16 %v4384
      %v4433 = vpack.c.b16 %v4401, %v4401
      %v4434 = vpack.c.b16 %v4402, %v4402
      %v4435 = vpack.c.b16 %v4403, %v4403
      %v4436 = vpack.c.b16 %v4404, %v4404
      %v4437 = vpack.c.b16 %v4405, %v4405
      %v4438 = vpack.c.b16 %v4406, %v4406
      %v4439 = vpack.c.b16 %v4407, %v4407
      %v4440 = vpack.c.b16 %v4408, %v4408
      %v4441 = vpack.c.b16 %v4409, %v4409
      %v4442 = vpack.c.b16 %v4410, %v4410
      %v4443 = vpack.c.b16 %v4411, %v4411
      %v4444 = vpack.c.b16 %v4412, %v4412
      %v4445 = vpack.c.b16 %v4413, %v4413
      %v4446 = vpack.c.b16 %v4414, %v4414
      %v4447 = vpack.c.b16 %v4415, %v4415
      %v4448 = vpack.c.b16 %v4416, %v4416
      %v4449 = vpack.c.b16 %v4417, %v4417
      %v4450 = vpack.c.b16 %v4418, %v4418
      %v4451 = vpack.c.b16 %v4419, %v4419
      %v4452 = vpack.c.b16 %v4420, %v4420
      %v4453 = vpack.c.b16 %v4421, %v4421
      %v4454 = vpack.c.b16 %v4422, %v4422
      %v4455 = vpack.c.b16 %v4423, %v4423
      %v4456 = vpack.c.b16 %v4424, %v4424
      %v4457 = vpack.c.b16 %v4425, %v4425
      %v4458 = vpack.c.b16 %v4426, %v4426
      %v4459 = vpack.c.b16 %v4427, %v4427
      %v4460 = vpack.c.b16 %v4428, %v4428
      %v4461 = vpack.c.b16 %v4429, %v4429
      %v4462 = vpack.c.b16 %v4430, %v4430
      %v4463 = vpack.c.b16 %v4431, %v4431
      %v4464 = vpack.c.b16 %v4432, %v4432
      %4497 = vst.msk [vmem:[%s224] sm:$0xf] %vm717, %v4433
      %4498 = vst.msk [vmem:[%s224 + $0x4] sm:$0xf] %vm717, %v4434
      %4499 = vst.msk [vmem:[%s224 + $0x8] sm:$0xf] %vm717, %v4435
      %4500 = vst.msk [vmem:[%s224 + $0xc] sm:$0xf] %vm717, %v4436
      %4501 = vst.msk [vmem:[%s224 + $0x10] sm:$0xf] %vm717, %v4437
      %4502 = vst.msk [vmem:[%s224 + $0x14] sm:$0xf] %vm717, %v4438
      %4503 = vst.msk [vmem:[%s224 + $0x18] sm:$0xf] %vm717, %v4439
      %4504 = vst.msk [vmem:[%s224 + $0x1c] sm:$0xf] %vm717, %v4440
      %4505 = vst.msk [vmem:[%s224 + $0x20] sm:$0xf] %vm717, %v4441
      %4506 = vst.msk [vmem:[%s224 + $0x24] sm:$0xf] %vm717, %v4442
      %4507 = vst.msk [vmem:[%s224 + $0x28] sm:$0xf] %vm717, %v4443
      %4508 = vst.msk [vmem:[%s224 + $0x2c] sm:$0xf] %vm717, %v4444
      %4509 = vst.msk [vmem:[%s224 + $0x30] sm:$0xf] %vm717, %v4445
      %4510 = vst.msk [vmem:[%s224 + $0x34] sm:$0xf] %vm717, %v4446
      %4511 = vst.msk [vmem:[%s224 + $0x38] sm:$0xf] %vm717, %v4447
      %4512 = vst.msk [vmem:[%s224 + $0x3c] sm:$0xf] %vm717, %v4448
      %4513 = vst.msk [vmem:[%s224 + $0x40] sm:$0xf] %vm717, %v4449
      %4514 = vst.msk [vmem:[%s224 + $0x44] sm:$0xf] %vm717, %v4450
      %4515 = vst.msk [vmem:[%s224 + $0x48] sm:$0xf] %vm717, %v4451
      %4516 = vst.msk [vmem:[%s224 + $0x4c] sm:$0xf] %vm717, %v4452
      %4517 = vst.msk [vmem:[%s224 + $0x50] sm:$0xf] %vm717, %v4453
      %4518 = vst.msk [vmem:[%s224 + $0x54] sm:$0xf] %vm717, %v4454
      %4519 = vst.msk [vmem:[%s224 + $0x58] sm:$0xf] %vm717, %v4455
      %4520 = vst.msk [vmem:[%s224 + $0x5c] sm:$0xf] %vm717, %v4456
      %4521 = vst.msk [vmem:[%s224 + $0x60] sm:$0xf] %vm717, %v4457
      %4522 = vst.msk [vmem:[%s224 + $0x64] sm:$0xf] %vm717, %v4458
      %4523 = vst.msk [vmem:[%s224 + $0x68] sm:$0xf] %vm717, %v4459
      %4524 = vst.msk [vmem:[%s224 + $0x6c] sm:$0xf] %vm717, %v4460
      %4525 = vst.msk [vmem:[%s224 + $0x70] sm:$0xf] %vm717, %v4461
      %4526 = vst.msk [vmem:[%s224 + $0x74] sm:$0xf] %vm717, %v4462
      %4527 = vst.msk [vmem:[%s224 + $0x78] sm:$0xf] %vm717, %v4463
      %4528 = vst.msk [vmem:[%s224 + $0x7c] sm:$0xf] %vm717, %v4464
      %p4529 = scmp.lt.s32.totalorder %s16, 1
      %s4530 = scalar_select %p4529, %s16, 1
      %s4531 = smul.addr %s4530, 32
      %s4532 = smul.addr %s4531, 4
      %s4533 = scalar_lea.vmem %s5, %s4532
      // Predicated region
      $region41: #{tpu_custom_call.1} parent=39 // pred_check
        %p4534 = pneg %p144
      $region42: #{tpu_custom_call.1} parent=39 // pred_check_branch
        %4536 = sbr.rel (%p4534) target = $region44
      $region43: #{tpu_custom_call.1} parent=39 // pred_region
        _
      $region44: #{tpu_custom_call.1} parent=39 // pred_fallthru
        _
    $region40: #{tpu_custom_call.1} parent=5 // pred_fallthru
      _
    %p4537 = scmp.le.s32.totalorder 2, %s11
    // Predicated region
    $region45: #{tpu_custom_call.1} parent=5 // pred_check
      %p4538 = pneg %p4537
    $region46: #{tpu_custom_call.1} parent=5 // pred_check_branch
      %4540 = sbr.rel (%p4538) target = $region48
    $region47: #{tpu_custom_call.1} parent=5 // pred_region
      %s4541 = ssub.s32 %s11, 2
      // Predicated region
      $region49: #{tpu_custom_call.1} parent=47 // pred_check
        %p4542 = pneg %p150
      $region50: #{tpu_custom_call.1} parent=47 // pred_check_branch
        %4544 = sbr.rel (%p4542) target = $region52
      $region51: #{tpu_custom_call.1} parent=47 // pred_region
        %p4545 = scmp.lt.s32.totalorder %s17, 1
        %s4546 = scalar_select %p4545, %s17, 1
        %s4547 = smul.addr %s4546, 32
        %s4548 = smul.addr %s4547, 4
        %s4549 = scalar_lea.vmem %s5, %s4548
      $region52: #{tpu_custom_call.1} parent=47 // pred_fallthru
        _
    $region48: #{tpu_custom_call.1} parent=5 // pred_fallthru
      _
  $region6: #{tpu_custom_call.1} parent=0 // loop_footer
    %s15 = sadd.s32 1, %s11
  $region7: #{tpu_custom_call.1} parent=0 // loop_footer_branch
    %10 = sbr.rel target = $region3
  $region8: #{tpu_custom_call.1} parent=0 // loop_exit
    _

</llo_original>
